<compile_context>
chip_gen: v7x
topology: tpu7x:2x2x1
jax: 0.10.0
libtpu: 0.0.40
codegen_flags: <defaults>
</compile_context>

<pallas_src>
import numpy as np

import jax
import jax.numpy as jnp
from jax.experimental import pallas as pl
from jax.experimental.pallas import tpu as pltpu


# ---------------------------------------------------------------------------
# One-time parameter packing (all runtime transposes folded into init)
# ---------------------------------------------------------------------------
def _conv_toeplitz(w, out_w):
    """PyTorch conv weight (Cout, Cin, KH, KW) -> (KH, W_in*Cin, out_w*Cout).

    Row index = w_in_col*Cin + ci, col index = ow*Cout + co, so that
    act(H, W*Cin)[kh:kh+OH, :] @ T[kh] accumulates the conv output in the
    folded (OH, OW*Cout) layout.
    """
    w = np.asarray(w, np.float32)
    cout, cin, ksh, ksw = w.shape
    w_in = out_w + ksw - 1
    t = np.zeros((ksh, w_in * cin, out_w * cout), np.float32)
    for kh in range(ksh):
        for ow in range(out_w):
            for kw in range(ksw):
                col = ow + kw
                t[kh, col * cin:(col + 1) * cin, ow * cout:(ow + 1) * cout] = \
                    w[:, :, kh, kw].T  # (cin, cout)
    return t


def _pool_row_selectors(h_out):
    """(2, h_out, 2*h_out): pick even / odd rows of a 2*h_out-row activation."""
    p = np.zeros((2, h_out, 2 * h_out), np.float32)
    for r in range(h_out):
        p[0, r, 2 * r] = 1.0
        p[1, r, 2 * r + 1] = 1.0
    return p


def _pool_col_selectors(w_out, c):
    """(2, 2*w_out*c, w_out*c): pick even / odd W-positions in (W*C) lanes."""
    s = np.zeros((2, 2 * w_out * c, w_out * c), np.float32)
    for w in range(w_out):
        for ch in range(c):
            s[0, (2 * w) * c + ch, w * c + ch] = 1.0
            s[1, (2 * w + 1) * c + ch, w * c + ch] = 1.0
    return s


def init_params(key):
    """Raw parameters in PyTorch layout (conv: OIHW, fc: (out, in))."""
    ks = jax.random.split(key, 10)
    s = 0.1
    return {
        "conv1_w": jax.random.normal(ks[0], (6, 1, 5, 5), jnp.float32) * s,
        "conv1_b": jax.random.normal(ks[1], (6,), jnp.float32) * s,
        "conv2_w": jax.random.normal(ks[2], (16, 6, 5, 5), jnp.float32) * s,
        "conv2_b": jax.random.normal(ks[3], (16,), jnp.float32) * s,
        "fc1_w": jax.random.normal(ks[4], (120, 16 * 5 * 5), jnp.float32) * s,
        "fc1_b": jax.random.normal(ks[5], (120,), jnp.float32) * s,
        "fc2_w": jax.random.normal(ks[6], (84, 120), jnp.float32) * s,
        "fc2_b": jax.random.normal(ks[7], (84,), jnp.float32) * s,
        "fc3_w": jax.random.normal(ks[8], (10, 84), jnp.float32) * s,
        "fc3_b": jax.random.normal(ks[9], (10,), jnp.float32) * s,
    }


def prepare_params(raw):
    """Repack PyTorch-layout params into the fused-kernel layout (once)."""
    f32 = np.float32
    fc1_w = np.asarray(raw["fc1_w"], f32)                      # (120, 400)
    # PyTorch flatten order of the (16,5,5) feature map is (c, h, w); our
    # pooled activation is (h, w*16 + c) -> permute fc1 rows once.
    wf1 = fc1_w.reshape(120, 16, 5, 5).transpose(2, 3, 1, 0).reshape(5, 80, 120)
    return {
        "w1t": jnp.asarray(_conv_toeplitz(raw["conv1_w"], 28)),          # (5, 32, 168)
        "b1t": jnp.asarray(np.tile(np.asarray(raw["conv1_b"], f32), 28)[None, :]),  # (1, 168)
        "p1": jnp.asarray(_pool_row_selectors(14)),                      # (2, 14, 28)
        "s1": jnp.asarray(_pool_col_selectors(14, 6)),                   # (2, 168, 84)
        "w2t": jnp.asarray(_conv_toeplitz(raw["conv2_w"], 10)),          # (5, 84, 160)
        "b2t": jnp.asarray(np.tile(np.asarray(raw["conv2_b"], f32), 10)[None, :]),  # (1, 160)
        "p2": jnp.asarray(_pool_row_selectors(5)),                       # (2, 5, 10)
        "s2": jnp.asarray(_pool_col_selectors(5, 16)),                   # (2, 160, 80)
        "wf1": jnp.asarray(wf1),                                         # (5, 80, 120)
        "bf1": jnp.asarray(np.asarray(raw["fc1_b"], f32)[None, :]),      # (1, 120)
        "wf2": jnp.asarray(np.asarray(raw["fc2_w"], f32).T),             # (120, 84)
        "bf2": jnp.asarray(np.asarray(raw["fc2_b"], f32)[None, :]),      # (1, 84)
        "wf3": jnp.asarray(np.asarray(raw["fc3_w"], f32).T),             # (84, 10)
        "bf3": jnp.asarray(np.asarray(raw["fc3_b"], f32)[None, :]),      # (1, 10)
    }


# ---------------------------------------------------------------------------
# Fused Pallas kernel: one grid step == one sample, everything VMEM-resident
# ---------------------------------------------------------------------------
def _dot(a, b):
    return jnp.dot(a, b, preferred_element_type=jnp.float32)


def _lenet_kernel(x_ref, w1t_ref, b1t_ref, p1_ref, s1_ref,
                  w2t_ref, b2t_ref, p2_ref, s2_ref,
                  wf1_ref, bf1_ref, wf2_ref, bf2_ref, wf3_ref, bf3_ref,
                  out_ref, a1_s, a2_s):
    # ---- conv1 + ReLU: (32, 32) -> (28, 28*6) ----------------------------
    acc1 = _dot(x_ref[0, 0:28, :], w1t_ref[0])
    for kh in range(1, 5):
        acc1 = acc1 + _dot(x_ref[0, kh:kh + 28, :], w1t_ref[kh])
    out1 = jnp.maximum(acc1 + b1t_ref[...], 0.0)

    # ---- maxpool1 2x2: (28, 168) -> (14, 168) -> (14, 84) -----------------
    rp1 = jnp.maximum(_dot(p1_ref[0], out1), _dot(p1_ref[1], out1))
    a1_s[...] = jnp.maximum(_dot(rp1, s1_ref[0]), _dot(rp1, s1_ref[1]))

    # ---- conv2 (no ReLU, matching the reference module): (14,84)->(10,160)
    acc2 = _dot(a1_s[0:10, :], w2t_ref[0])
    for kh in range(1, 5):
        acc2 = acc2 + _dot(a1_s[kh:kh + 10, :], w2t_ref[kh])
    out2 = acc2 + b2t_ref[...]

    # ---- maxpool2 2x2: (10, 160) -> (5, 160) -> (5, 80) -------------------
    rp2 = jnp.maximum(_dot(p2_ref[0], out2), _dot(p2_ref[1], out2))
    a2_s[...] = jnp.maximum(_dot(rp2, s2_ref[0]), _dot(rp2, s2_ref[1]))

    # ---- fc1 + ReLU: contract (5, 80) against (5, 80, 120) ----------------
    h = _dot(a2_s[0:1, :], wf1_ref[0])
    for r in range(1, 5):
        h = h + _dot(a2_s[r:r + 1, :], wf1_ref[r])
    h = jnp.maximum(h + bf1_ref[...], 0.0)                    # (1, 120)

    # ---- fc2 + ReLU, fc3, log_softmax -------------------------------------
    h = jnp.maximum(_dot(h, wf2_ref[...]) + bf2_ref[...], 0.0)  # (1, 84)
    logits = _dot(h, wf3_ref[...]) + bf3_ref[...]               # (1, 10)
    m = jnp.max(logits, axis=-1, keepdims=True)
    z = logits - m
    lse = jnp.log(jnp.sum(jnp.exp(z), axis=-1, keepdims=True))
    out_ref[0] = (z - lse).astype(out_ref.dtype)


def _full_block(shape):
    # whole array resident in VMEM, same block for every grid step
    return pl.BlockSpec(shape, lambda b: (0,) * len(shape))


@jax.jit
def lenet_forward(prepared, x_nchw):
    """x_nchw: (B, 1, 32, 32) float32 (PyTorch NCHW) -> (B, 10) log-probs."""
    B = x_nchw.shape[0]
    xs = x_nchw.reshape(B, 32, 32).astype(jnp.float32)   # Cin == 1

    out = pl.pallas_call(
        _lenet_kernel,
        out_shape=jax.ShapeDtypeStruct((B, 1, 10), jnp.float32),
        grid=(B,),
        in_specs=[
            pl.BlockSpec((1, 32, 32), lambda b: (b, 0, 0)),   # x, one sample/step
            _full_block((5, 32, 168)),   # w1t
            _full_block((1, 168)),       # b1t
            _full_block((2, 14, 28)),    # p1
            _full_block((2, 168, 84)),   # s1
            _full_block((5, 84, 160)),   # w2t
            _full_block((1, 160)),       # b2t
            _full_block((2, 5, 10)),     # p2
            _full_block((2, 160, 80)),   # s2
            _full_block((5, 80, 120)),   # wf1
            _full_block((1, 120)),       # bf1
            _full_block((120, 84)),      # wf2
            _full_block((1, 84)),        # bf2
            _full_block((84, 10)),       # wf3
            _full_block((1, 10)),        # bf3
        ],
        out_specs=pl.BlockSpec((1, 1, 10), lambda b: (b, 0, 0)),
        scratch_shapes=[
            pltpu.VMEM((14, 84), jnp.float32),   # pooled conv1 activation
            pltpu.VMEM((5, 80), jnp.float32),    # pooled conv2 activation
        ],
        compiler_params=pltpu.CompilerParams(
            dimension_semantics=("parallel",)),
    )(xs, prepared["w1t"], prepared["b1t"], prepared["p1"], prepared["s1"],
      prepared["w2t"], prepared["b2t"], prepared["p2"], prepared["s2"],
      prepared["wf1"], prepared["bf1"], prepared["wf2"], prepared["bf2"],
      prepared["wf3"], prepared["bf3"])
    return out.reshape(B, 10)


# ---------------------------------------------------------------------------
# Plain-XLA reference of the PyTorch module (for correctness check only)
# ---------------------------------------------------------------------------
def lenet_reference(raw, x_nchw):
    hi = jax.lax.Precision.HIGHEST
    dn = ("NCHW", "OIHW", "NCHW")
    x = jax.lax.conv_general_dilated(x_nchw, raw["conv1_w"], (1, 1), "VALID",
                                     dimension_numbers=dn, precision=hi)
    x = jnp.maximum(x + raw["conv1_b"][None, :, None, None], 0.0)
    x = jax.lax.reduce_window(x, -jnp.inf, jax.lax.max,
                              (1, 1, 2, 2), (1, 1, 2, 2), "VALID")
    x = jax.lax.conv_general_dilated(x, raw["conv2_w"], (1, 1), "VALID",
                                     dimension_numbers=dn, precision=hi)
    x = x + raw["conv2_b"][None, :, None, None]          # no ReLU (per spec)
    x = jax.lax.reduce_window(x, -jnp.inf, jax.lax.max,
                              (1, 1, 2, 2), (1, 1, 2, 2), "VALID")
    x = x.reshape(x.shape[0], -1)                         # (B, 400), (c,h,w) order
    x = jnp.maximum(jnp.dot(x, raw["fc1_w"].T, precision=hi) + raw["fc1_b"], 0.0)
    x = jnp.maximum(jnp.dot(x, raw["fc2_w"].T, precision=hi) + raw["fc2_b"], 0.0)
    logits = jnp.dot(x, raw["fc3_w"].T, precision=hi) + raw["fc3_b"]
    return jax.nn.log_softmax(logits, axis=-1)


if __name__ == "__main__":
    key = jax.random.PRNGKey(0)
    k_param, k_x = jax.random.split(key)

    raw = init_params(k_param)
    prepared = prepare_params(raw)
    x = jax.random.normal(k_x, (2, 1, 32, 32), jnp.float32)

    out = lenet_forward(prepared, x)
    out = jax.block_until_ready(out)

    assert out.shape == (2, 10), out.shape
    # log_softmax self-consistency: exp(rows) must sum to 1
    row_sums = jnp.exp(out).sum(axis=1)
    assert bool(jnp.all(jnp.abs(row_sums - 1.0) < 1e-3)), row_sums
    # cross-check against the plain-XLA implementation of the PyTorch module
    ref = lenet_reference(raw, x)
    max_err = float(jnp.max(jnp.abs(out - ref)))
    assert max_err < 5e-2, max_err

    print("KERNEL_OK")
</pallas_src>

<mosaic_0001>
module attributes {stable_mosaic.version = 11 : i64} {
  func.func @_lenet_kernel(%arg0: i32, %arg1: memref<1x32x32xf32, #tpu.memory_space<vmem>>, %arg2: memref<5x32x168xf32, #tpu.memory_space<vmem>>, %arg3: memref<1x168xf32, #tpu.memory_space<vmem>>, %arg4: memref<2x14x28xf32, #tpu.memory_space<vmem>>, %arg5: memref<2x168x84xf32, #tpu.memory_space<vmem>>, %arg6: memref<5x84x160xf32, #tpu.memory_space<vmem>>, %arg7: memref<1x160xf32, #tpu.memory_space<vmem>>, %arg8: memref<2x5x10xf32, #tpu.memory_space<vmem>>, %arg9: memref<2x160x80xf32, #tpu.memory_space<vmem>>, %arg10: memref<5x80x120xf32, #tpu.memory_space<vmem>>, %arg11: memref<1x120xf32, #tpu.memory_space<vmem>>, %arg12: memref<120x84xf32, #tpu.memory_space<vmem>>, %arg13: memref<1x84xf32, #tpu.memory_space<vmem>>, %arg14: memref<84x10xf32, #tpu.memory_space<vmem>>, %arg15: memref<1x10xf32, #tpu.memory_space<vmem>>, %arg16: memref<1x1x10xf32, #tpu.memory_space<vmem>>, %arg17: memref<14x84xf32, #tpu.memory_space<vmem>>, %arg18: memref<5x80xf32, #tpu.memory_space<vmem>>) attributes {dimension_semantics = [#tpu.dimension_semantics<parallel>], iteration_bounds = array<i64: 2>, scalar_prefetch = 0 : i64, scratch_operands = 2 : i64, tpu.core_type = #tpu.core_type<tc>, window_params = [{transform_indices = @transform_0, window_bounds = array<i64: 1, 32, 32>}, {pipeline_mode = #tpu.pipeline_mode<synchronous>, transform_indices = @transform_1, window_bounds = array<i64: 5, 32, 168>}, {pipeline_mode = #tpu.pipeline_mode<synchronous>, transform_indices = @transform_2, window_bounds = array<i64: 1, 168>}, {pipeline_mode = #tpu.pipeline_mode<synchronous>, transform_indices = @transform_3, window_bounds = array<i64: 2, 14, 28>}, {pipeline_mode = #tpu.pipeline_mode<synchronous>, transform_indices = @transform_4, window_bounds = array<i64: 2, 168, 84>}, {pipeline_mode = #tpu.pipeline_mode<synchronous>, transform_indices = @transform_5, window_bounds = array<i64: 5, 84, 160>}, {pipeline_mode = #tpu.pipeline_mode<synchronous>, transform_indices = @transform_6, window_bounds = array<i64: 1, 160>}, {pipeline_mode = #tpu.pipeline_mode<synchronous>, transform_indices = @transform_7, window_bounds = array<i64: 2, 5, 10>}, {pipeline_mode = #tpu.pipeline_mode<synchronous>, transform_indices = @transform_8, window_bounds = array<i64: 2, 160, 80>}, {pipeline_mode = #tpu.pipeline_mode<synchronous>, transform_indices = @transform_9, window_bounds = array<i64: 5, 80, 120>}, {pipeline_mode = #tpu.pipeline_mode<synchronous>, transform_indices = @transform_10, window_bounds = array<i64: 1, 120>}, {pipeline_mode = #tpu.pipeline_mode<synchronous>, transform_indices = @transform_11, window_bounds = array<i64: 120, 84>}, {pipeline_mode = #tpu.pipeline_mode<synchronous>, transform_indices = @transform_12, window_bounds = array<i64: 1, 84>}, {pipeline_mode = #tpu.pipeline_mode<synchronous>, transform_indices = @transform_13, window_bounds = array<i64: 84, 10>}, {pipeline_mode = #tpu.pipeline_mode<synchronous>, transform_indices = @transform_14, window_bounds = array<i64: 1, 10>}, {transform_indices = @transform_15, window_bounds = array<i64: 1, 1, 10>}]} {
    %c0 = arith.constant 0 : index
    %c0_0 = arith.constant 0 : index
    %c0_1 = arith.constant 0 : index
    %0 = vector.load %arg1[%c0, %c0_0, %c0_1] : memref<1x32x32xf32, #tpu.memory_space<vmem>>, vector<1x28x32xf32>
    %1 = vector.shape_cast %0 : vector<1x28x32xf32> to vector<28x32xf32>
    %c0_2 = arith.constant 0 : index
    %c0_3 = arith.constant 0 : index
    %c0_4 = arith.constant 0 : index
    %2 = vector.load %arg2[%c0_2, %c0_3, %c0_4] : memref<5x32x168xf32, #tpu.memory_space<vmem>>, vector<1x32x168xf32>
    %3 = vector.shape_cast %2 : vector<1x32x168xf32> to vector<32x168xf32>
    %cst = arith.constant dense<0.000000e+00> : vector<28x168xf32>
    %4 = tpu.matmul %1, %3, %cst {dimension_numbers = #tpu.dot_dimension_numbers<[1], [0], [0], [1], [0, 0, 1, 1], [], []>} : vector<28x32xf32>, vector<32x168xf32>, vector<28x168xf32> -> vector<28x168xf32>
    %c0_5 = arith.constant 0 : index
    %c1 = arith.constant 1 : index
    %c0_6 = arith.constant 0 : index
    %5 = vector.load %arg1[%c0_5, %c1, %c0_6] : memref<1x32x32xf32, #tpu.memory_space<vmem>>, vector<1x28x32xf32>
    %6 = vector.shape_cast %5 : vector<1x28x32xf32> to vector<28x32xf32>
    %c1_7 = arith.constant 1 : index
    %c0_8 = arith.constant 0 : index
    %c0_9 = arith.constant 0 : index
    %7 = vector.load %arg2[%c1_7, %c0_8, %c0_9] : memref<5x32x168xf32, #tpu.memory_space<vmem>>, vector<1x32x168xf32>
    %8 = vector.shape_cast %7 : vector<1x32x168xf32> to vector<32x168xf32>
    %cst_10 = arith.constant dense<0.000000e+00> : vector<28x168xf32>
    %9 = tpu.matmul %6, %8, %cst_10 {dimension_numbers = #tpu.dot_dimension_numbers<[1], [0], [0], [1], [0, 0, 1, 1], [], []>} : vector<28x32xf32>, vector<32x168xf32>, vector<28x168xf32> -> vector<28x168xf32>
    %10 = arith.addf %4, %9 : vector<28x168xf32>
    %c0_11 = arith.constant 0 : index
    %c2 = arith.constant 2 : index
    %c0_12 = arith.constant 0 : index
    %11 = vector.load %arg1[%c0_11, %c2, %c0_12] : memref<1x32x32xf32, #tpu.memory_space<vmem>>, vector<1x28x32xf32>
    %12 = vector.shape_cast %11 : vector<1x28x32xf32> to vector<28x32xf32>
    %c2_13 = arith.constant 2 : index
    %c0_14 = arith.constant 0 : index
    %c0_15 = arith.constant 0 : index
    %13 = vector.load %arg2[%c2_13, %c0_14, %c0_15] : memref<5x32x168xf32, #tpu.memory_space<vmem>>, vector<1x32x168xf32>
    %14 = vector.shape_cast %13 : vector<1x32x168xf32> to vector<32x168xf32>
    %cst_16 = arith.constant dense<0.000000e+00> : vector<28x168xf32>
    %15 = tpu.matmul %12, %14, %cst_16 {dimension_numbers = #tpu.dot_dimension_numbers<[1], [0], [0], [1], [0, 0, 1, 1], [], []>} : vector<28x32xf32>, vector<32x168xf32>, vector<28x168xf32> -> vector<28x168xf32>
    %16 = arith.addf %10, %15 : vector<28x168xf32>
    %c0_17 = arith.constant 0 : index
    %c3 = arith.constant 3 : index
    %c0_18 = arith.constant 0 : index
    %17 = vector.load %arg1[%c0_17, %c3, %c0_18] : memref<1x32x32xf32, #tpu.memory_space<vmem>>, vector<1x28x32xf32>
    %18 = vector.shape_cast %17 : vector<1x28x32xf32> to vector<28x32xf32>
    %c3_19 = arith.constant 3 : index
    %c0_20 = arith.constant 0 : index
    %c0_21 = arith.constant 0 : index
    %19 = vector.load %arg2[%c3_19, %c0_20, %c0_21] : memref<5x32x168xf32, #tpu.memory_space<vmem>>, vector<1x32x168xf32>
    %20 = vector.shape_cast %19 : vector<1x32x168xf32> to vector<32x168xf32>
    %cst_22 = arith.constant dense<0.000000e+00> : vector<28x168xf32>
    %21 = tpu.matmul %18, %20, %cst_22 {dimension_numbers = #tpu.dot_dimension_numbers<[1], [0], [0], [1], [0, 0, 1, 1], [], []>} : vector<28x32xf32>, vector<32x168xf32>, vector<28x168xf32> -> vector<28x168xf32>
    %22 = arith.addf %16, %21 : vector<28x168xf32>
    %c0_23 = arith.constant 0 : index
    %c4 = arith.constant 4 : index
    %c0_24 = arith.constant 0 : index
    %23 = vector.load %arg1[%c0_23, %c4, %c0_24] : memref<1x32x32xf32, #tpu.memory_space<vmem>>, vector<1x28x32xf32>
    %24 = vector.shape_cast %23 : vector<1x28x32xf32> to vector<28x32xf32>
    %c4_25 = arith.constant 4 : index
    %c0_26 = arith.constant 0 : index
    %c0_27 = arith.constant 0 : index
    %25 = vector.load %arg2[%c4_25, %c0_26, %c0_27] : memref<5x32x168xf32, #tpu.memory_space<vmem>>, vector<1x32x168xf32>
    %26 = vector.shape_cast %25 : vector<1x32x168xf32> to vector<32x168xf32>
    %cst_28 = arith.constant dense<0.000000e+00> : vector<28x168xf32>
    %27 = tpu.matmul %24, %26, %cst_28 {dimension_numbers = #tpu.dot_dimension_numbers<[1], [0], [0], [1], [0, 0, 1, 1], [], []>} : vector<28x32xf32>, vector<32x168xf32>, vector<28x168xf32> -> vector<28x168xf32>
    %28 = arith.addf %22, %27 : vector<28x168xf32>
    %c0_29 = arith.constant 0 : index
    %c0_30 = arith.constant 0 : index
    %29 = vector.load %arg3[%c0_29, %c0_30] : memref<1x168xf32, #tpu.memory_space<vmem>>, vector<1x168xf32>
    %30 = vector.broadcast %29 : vector<1x168xf32> to vector<28x168xf32>
    %31 = arith.addf %28, %30 : vector<28x168xf32>
    %cst_31 = arith.constant 0.000000e+00 : f32
    %32 = vector.broadcast %cst_31 : f32 to vector<28x168xf32>
    %33 = arith.maximumf %31, %32 : vector<28x168xf32>
    %c0_32 = arith.constant 0 : index
    %c0_33 = arith.constant 0 : index
    %c0_34 = arith.constant 0 : index
    %34 = vector.load %arg4[%c0_32, %c0_33, %c0_34] : memref<2x14x28xf32, #tpu.memory_space<vmem>>, vector<1x14x28xf32>
    %35 = vector.shape_cast %34 : vector<1x14x28xf32> to vector<14x28xf32>
    %cst_35 = arith.constant dense<0.000000e+00> : vector<14x168xf32>
    %36 = tpu.matmul %35, %33, %cst_35 {dimension_numbers = #tpu.dot_dimension_numbers<[1], [0], [0], [1], [0, 0, 1, 1], [], []>} : vector<14x28xf32>, vector<28x168xf32>, vector<14x168xf32> -> vector<14x168xf32>
    %c1_36 = arith.constant 1 : index
    %c0_37 = arith.constant 0 : index
    %c0_38 = arith.constant 0 : index
    %37 = vector.load %arg4[%c1_36, %c0_37, %c0_38] : memref<2x14x28xf32, #tpu.memory_space<vmem>>, vector<1x14x28xf32>
    %38 = vector.shape_cast %37 : vector<1x14x28xf32> to vector<14x28xf32>
    %cst_39 = arith.constant dense<0.000000e+00> : vector<14x168xf32>
    %39 = tpu.matmul %38, %33, %cst_39 {dimension_numbers = #tpu.dot_dimension_numbers<[1], [0], [0], [1], [0, 0, 1, 1], [], []>} : vector<14x28xf32>, vector<28x168xf32>, vector<14x168xf32> -> vector<14x168xf32>
    %40 = arith.maximumf %36, %39 : vector<14x168xf32>
    %c0_40 = arith.constant 0 : index
    %c0_41 = arith.constant 0 : index
    %c0_42 = arith.constant 0 : index
    %41 = vector.load %arg5[%c0_40, %c0_41, %c0_42] : memref<2x168x84xf32, #tpu.memory_space<vmem>>, vector<1x168x84xf32>
    %42 = vector.shape_cast %41 : vector<1x168x84xf32> to vector<168x84xf32>
    %cst_43 = arith.constant dense<0.000000e+00> : vector<14x84xf32>
    %43 = tpu.matmul %40, %42, %cst_43 {dimension_numbers = #tpu.dot_dimension_numbers<[1], [0], [0], [1], [0, 0, 1, 1], [], []>} : vector<14x168xf32>, vector<168x84xf32>, vector<14x84xf32> -> vector<14x84xf32>
    %c1_44 = arith.constant 1 : index
    %c0_45 = arith.constant 0 : index
    %c0_46 = arith.constant 0 : index
    %44 = vector.load %arg5[%c1_44, %c0_45, %c0_46] : memref<2x168x84xf32, #tpu.memory_space<vmem>>, vector<1x168x84xf32>
    %45 = vector.shape_cast %44 : vector<1x168x84xf32> to vector<168x84xf32>
    %cst_47 = arith.constant dense<0.000000e+00> : vector<14x84xf32>
    %46 = tpu.matmul %40, %45, %cst_47 {dimension_numbers = #tpu.dot_dimension_numbers<[1], [0], [0], [1], [0, 0, 1, 1], [], []>} : vector<14x168xf32>, vector<168x84xf32>, vector<14x84xf32> -> vector<14x84xf32>
    %47 = arith.maximumf %43, %46 : vector<14x84xf32>
    %c0_48 = arith.constant 0 : index
    %c0_49 = arith.constant 0 : index
    %48 = vector.load %arg17[%c0_48, %c0_49] : memref<14x84xf32, #tpu.memory_space<vmem>>, vector<14x84xf32>
    tpu.vector_store %arg17[%c0_48, %c0_49], %47 {strides = array<i32>} : memref<14x84xf32, #tpu.memory_space<vmem>>, vector<14x84xf32>,
    %c0_50 = arith.constant 0 : index
    %c0_51 = arith.constant 0 : index
    %49 = vector.load %arg17[%c0_50, %c0_51] : memref<14x84xf32, #tpu.memory_space<vmem>>, vector<10x84xf32>
    %c0_52 = arith.constant 0 : index
    %c0_53 = arith.constant 0 : index
    %c0_54 = arith.constant 0 : index
    %50 = vector.load %arg6[%c0_52, %c0_53, %c0_54] : memref<5x84x160xf32, #tpu.memory_space<vmem>>, vector<1x84x160xf32>
    %51 = vector.shape_cast %50 : vector<1x84x160xf32> to vector<84x160xf32>
    %cst_55 = arith.constant dense<0.000000e+00> : vector<10x160xf32>
    %52 = tpu.matmul %49, %51, %cst_55 {dimension_numbers = #tpu.dot_dimension_numbers<[1], [0], [0], [1], [0, 0, 1, 1], [], []>} : vector<10x84xf32>, vector<84x160xf32>, vector<10x160xf32> -> vector<10x160xf32>
    %c1_56 = arith.constant 1 : index
    %c0_57 = arith.constant 0 : index
    %53 = vector.load %arg17[%c1_56, %c0_57] : memref<14x84xf32, #tpu.memory_space<vmem>>, vector<10x84xf32>
    %c1_58 = arith.constant 1 : index
    %c0_59 = arith.constant 0 : index
    %c0_60 = arith.constant 0 : index
    %54 = vector.load %arg6[%c1_58, %c0_59, %c0_60] : memref<5x84x160xf32, #tpu.memory_space<vmem>>, vector<1x84x160xf32>
    %55 = vector.shape_cast %54 : vector<1x84x160xf32> to vector<84x160xf32>
    %cst_61 = arith.constant dense<0.000000e+00> : vector<10x160xf32>
    %56 = tpu.matmul %53, %55, %cst_61 {dimension_numbers = #tpu.dot_dimension_numbers<[1], [0], [0], [1], [0, 0, 1, 1], [], []>} : vector<10x84xf32>, vector<84x160xf32>, vector<10x160xf32> -> vector<10x160xf32>
    %57 = arith.addf %52, %56 : vector<10x160xf32>
    %c2_62 = arith.constant 2 : index
    %c0_63 = arith.constant 0 : index
    %58 = vector.load %arg17[%c2_62, %c0_63] : memref<14x84xf32, #tpu.memory_space<vmem>>, vector<10x84xf32>
    %c2_64 = arith.constant 2 : index
    %c0_65 = arith.constant 0 : index
    %c0_66 = arith.constant 0 : index
    %59 = vector.load %arg6[%c2_64, %c0_65, %c0_66] : memref<5x84x160xf32, #tpu.memory_space<vmem>>, vector<1x84x160xf32>
    %60 = vector.shape_cast %59 : vector<1x84x160xf32> to vector<84x160xf32>
    %cst_67 = arith.constant dense<0.000000e+00> : vector<10x160xf32>
    %61 = tpu.matmul %58, %60, %cst_67 {dimension_numbers = #tpu.dot_dimension_numbers<[1], [0], [0], [1], [0, 0, 1, 1], [], []>} : vector<10x84xf32>, vector<84x160xf32>, vector<10x160xf32> -> vector<10x160xf32>
    %62 = arith.addf %57, %61 : vector<10x160xf32>
    %c3_68 = arith.constant 3 : index
    %c0_69 = arith.constant 0 : index
    %63 = vector.load %arg17[%c3_68, %c0_69] : memref<14x84xf32, #tpu.memory_space<vmem>>, vector<10x84xf32>
    %c3_70 = arith.constant 3 : index
    %c0_71 = arith.constant 0 : index
    %c0_72 = arith.constant 0 : index
    %64 = vector.load %arg6[%c3_70, %c0_71, %c0_72] : memref<5x84x160xf32, #tpu.memory_space<vmem>>, vector<1x84x160xf32>
    %65 = vector.shape_cast %64 : vector<1x84x160xf32> to vector<84x160xf32>
    %cst_73 = arith.constant dense<0.000000e+00> : vector<10x160xf32>
    %66 = tpu.matmul %63, %65, %cst_73 {dimension_numbers = #tpu.dot_dimension_numbers<[1], [0], [0], [1], [0, 0, 1, 1], [], []>} : vector<10x84xf32>, vector<84x160xf32>, vector<10x160xf32> -> vector<10x160xf32>
    %67 = arith.addf %62, %66 : vector<10x160xf32>
    %c4_74 = arith.constant 4 : index
    %c0_75 = arith.constant 0 : index
    %68 = vector.load %arg17[%c4_74, %c0_75] : memref<14x84xf32, #tpu.memory_space<vmem>>, vector<10x84xf32>
    %c4_76 = arith.constant 4 : index
    %c0_77 = arith.constant 0 : index
    %c0_78 = arith.constant 0 : index
    %69 = vector.load %arg6[%c4_76, %c0_77, %c0_78] : memref<5x84x160xf32, #tpu.memory_space<vmem>>, vector<1x84x160xf32>
    %70 = vector.shape_cast %69 : vector<1x84x160xf32> to vector<84x160xf32>
    %cst_79 = arith.constant dense<0.000000e+00> : vector<10x160xf32>
    %71 = tpu.matmul %68, %70, %cst_79 {dimension_numbers = #tpu.dot_dimension_numbers<[1], [0], [0], [1], [0, 0, 1, 1], [], []>} : vector<10x84xf32>, vector<84x160xf32>, vector<10x160xf32> -> vector<10x160xf32>
    %72 = arith.addf %67, %71 : vector<10x160xf32>
    %c0_80 = arith.constant 0 : index
    %c0_81 = arith.constant 0 : index
    %73 = vector.load %arg7[%c0_80, %c0_81] : memref<1x160xf32, #tpu.memory_space<vmem>>, vector<1x160xf32>
    %74 = vector.broadcast %73 : vector<1x160xf32> to vector<10x160xf32>
    %75 = arith.addf %72, %74 : vector<10x160xf32>
    %c0_82 = arith.constant 0 : index
    %c0_83 = arith.constant 0 : index
    %c0_84 = arith.constant 0 : index
    %76 = vector.load %arg8[%c0_82, %c0_83, %c0_84] : memref<2x5x10xf32, #tpu.memory_space<vmem>>, vector<1x5x10xf32>
    %77 = vector.shape_cast %76 : vector<1x5x10xf32> to vector<5x10xf32>
    %cst_85 = arith.constant dense<0.000000e+00> : vector<5x160xf32>
    %78 = tpu.matmul %77, %75, %cst_85 {dimension_numbers = #tpu.dot_dimension_numbers<[1], [0], [0], [1], [0, 0, 1, 1], [], []>} : vector<5x10xf32>, vector<10x160xf32>, vector<5x160xf32> -> vector<5x160xf32>
    %c1_86 = arith.constant 1 : index
    %c0_87 = arith.constant 0 : index
    %c0_88 = arith.constant 0 : index
    %79 = vector.load %arg8[%c1_86, %c0_87, %c0_88] : memref<2x5x10xf32, #tpu.memory_space<vmem>>, vector<1x5x10xf32>
    %80 = vector.shape_cast %79 : vector<1x5x10xf32> to vector<5x10xf32>
    %cst_89 = arith.constant dense<0.000000e+00> : vector<5x160xf32>
    %81 = tpu.matmul %80, %75, %cst_89 {dimension_numbers = #tpu.dot_dimension_numbers<[1], [0], [0], [1], [0, 0, 1, 1], [], []>} : vector<5x10xf32>, vector<10x160xf32>, vector<5x160xf32> -> vector<5x160xf32>
    %82 = arith.maximumf %78, %81 : vector<5x160xf32>
    %c0_90 = arith.constant 0 : index
    %c0_91 = arith.constant 0 : index
    %c0_92 = arith.constant 0 : index
    %83 = vector.load %arg9[%c0_90, %c0_91, %c0_92] : memref<2x160x80xf32, #tpu.memory_space<vmem>>, vector<1x160x80xf32>
    %84 = vector.shape_cast %83 : vector<1x160x80xf32> to vector<160x80xf32>
    %cst_93 = arith.constant dense<0.000000e+00> : vector<5x80xf32>
    %85 = tpu.matmul %82, %84, %cst_93 {dimension_numbers = #tpu.dot_dimension_numbers<[1], [0], [0], [1], [0, 0, 1, 1], [], []>} : vector<5x160xf32>, vector<160x80xf32>, vector<5x80xf32> -> vector<5x80xf32>
    %c1_94 = arith.constant 1 : index
    %c0_95 = arith.constant 0 : index
    %c0_96 = arith.constant 0 : index
    %86 = vector.load %arg9[%c1_94, %c0_95, %c0_96] : memref<2x160x80xf32, #tpu.memory_space<vmem>>, vector<1x160x80xf32>
    %87 = vector.shape_cast %86 : vector<1x160x80xf32> to vector<160x80xf32>
    %cst_97 = arith.constant dense<0.000000e+00> : vector<5x80xf32>
    %88 = tpu.matmul %82, %87, %cst_97 {dimension_numbers = #tpu.dot_dimension_numbers<[1], [0], [0], [1], [0, 0, 1, 1], [], []>} : vector<5x160xf32>, vector<160x80xf32>, vector<5x80xf32> -> vector<5x80xf32>
    %89 = arith.maximumf %85, %88 : vector<5x80xf32>
    %c0_98 = arith.constant 0 : index
    %c0_99 = arith.constant 0 : index
    %90 = vector.load %arg18[%c0_98, %c0_99] : memref<5x80xf32, #tpu.memory_space<vmem>>, vector<5x80xf32>
    tpu.vector_store %arg18[%c0_98, %c0_99], %89 {strides = array<i32>} : memref<5x80xf32, #tpu.memory_space<vmem>>, vector<5x80xf32>,
    %c0_100 = arith.constant 0 : index
    %c0_101 = arith.constant 0 : index
    %91 = vector.load %arg18[%c0_100, %c0_101] : memref<5x80xf32, #tpu.memory_space<vmem>>, vector<1x80xf32>
    %c0_102 = arith.constant 0 : index
    %c0_103 = arith.constant 0 : index
    %c0_104 = arith.constant 0 : index
    %92 = vector.load %arg10[%c0_102, %c0_103, %c0_104] : memref<5x80x120xf32, #tpu.memory_space<vmem>>, vector<1x80x120xf32>
    %93 = vector.shape_cast %92 : vector<1x80x120xf32> to vector<80x120xf32>
    %cst_105 = arith.constant dense<0.000000e+00> : vector<1x120xf32>
    %94 = tpu.matmul %91, %93, %cst_105 {dimension_numbers = #tpu.dot_dimension_numbers<[1], [0], [0], [1], [0, 0, 1, 1], [], []>} : vector<1x80xf32>, vector<80x120xf32>, vector<1x120xf32> -> vector<1x120xf32>
    %c1_106 = arith.constant 1 : index
    %c0_107 = arith.constant 0 : index
    %95 = vector.load %arg18[%c1_106, %c0_107] : memref<5x80xf32, #tpu.memory_space<vmem>>, vector<1x80xf32>
    %c1_108 = arith.constant 1 : index
    %c0_109 = arith.constant 0 : index
    %c0_110 = arith.constant 0 : index
    %96 = vector.load %arg10[%c1_108, %c0_109, %c0_110] : memref<5x80x120xf32, #tpu.memory_space<vmem>>, vector<1x80x120xf32>
    %97 = vector.shape_cast %96 : vector<1x80x120xf32> to vector<80x120xf32>
    %cst_111 = arith.constant dense<0.000000e+00> : vector<1x120xf32>
    %98 = tpu.matmul %95, %97, %cst_111 {dimension_numbers = #tpu.dot_dimension_numbers<[1], [0], [0], [1], [0, 0, 1, 1], [], []>} : vector<1x80xf32>, vector<80x120xf32>, vector<1x120xf32> -> vector<1x120xf32>
    %99 = arith.addf %94, %98 : vector<1x120xf32>
    %c2_112 = arith.constant 2 : index
    %c0_113 = arith.constant 0 : index
    %100 = vector.load %arg18[%c2_112, %c0_113] : memref<5x80xf32, #tpu.memory_space<vmem>>, vector<1x80xf32>
    %c2_114 = arith.constant 2 : index
    %c0_115 = arith.constant 0 : index
    %c0_116 = arith.constant 0 : index
    %101 = vector.load %arg10[%c2_114, %c0_115, %c0_116] : memref<5x80x120xf32, #tpu.memory_space<vmem>>, vector<1x80x120xf32>
    %102 = vector.shape_cast %101 : vector<1x80x120xf32> to vector<80x120xf32>
    %cst_117 = arith.constant dense<0.000000e+00> : vector<1x120xf32>
    %103 = tpu.matmul %100, %102, %cst_117 {dimension_numbers = #tpu.dot_dimension_numbers<[1], [0], [0], [1], [0, 0, 1, 1], [], []>} : vector<1x80xf32>, vector<80x120xf32>, vector<1x120xf32> -> vector<1x120xf32>
    %104 = arith.addf %99, %103 : vector<1x120xf32>
    %c3_118 = arith.constant 3 : index
    %c0_119 = arith.constant 0 : index
    %105 = vector.load %arg18[%c3_118, %c0_119] : memref<5x80xf32, #tpu.memory_space<vmem>>, vector<1x80xf32>
    %c3_120 = arith.constant 3 : index
    %c0_121 = arith.constant 0 : index
    %c0_122 = arith.constant 0 : index
    %106 = vector.load %arg10[%c3_120, %c0_121, %c0_122] : memref<5x80x120xf32, #tpu.memory_space<vmem>>, vector<1x80x120xf32>
    %107 = vector.shape_cast %106 : vector<1x80x120xf32> to vector<80x120xf32>
    %cst_123 = arith.constant dense<0.000000e+00> : vector<1x120xf32>
    %108 = tpu.matmul %105, %107, %cst_123 {dimension_numbers = #tpu.dot_dimension_numbers<[1], [0], [0], [1], [0, 0, 1, 1], [], []>} : vector<1x80xf32>, vector<80x120xf32>, vector<1x120xf32> -> vector<1x120xf32>
    %109 = arith.addf %104, %108 : vector<1x120xf32>
    %c4_124 = arith.constant 4 : index
    %c0_125 = arith.constant 0 : index
    %110 = vector.load %arg18[%c4_124, %c0_125] : memref<5x80xf32, #tpu.memory_space<vmem>>, vector<1x80xf32>
    %c4_126 = arith.constant 4 : index
    %c0_127 = arith.constant 0 : index
    %c0_128 = arith.constant 0 : index
    %111 = vector.load %arg10[%c4_126, %c0_127, %c0_128] : memref<5x80x120xf32, #tpu.memory_space<vmem>>, vector<1x80x120xf32>
    %112 = vector.shape_cast %111 : vector<1x80x120xf32> to vector<80x120xf32>
    %cst_129 = arith.constant dense<0.000000e+00> : vector<1x120xf32>
    %113 = tpu.matmul %110, %112, %cst_129 {dimension_numbers = #tpu.dot_dimension_numbers<[1], [0], [0], [1], [0, 0, 1, 1], [], []>} : vector<1x80xf32>, vector<80x120xf32>, vector<1x120xf32> -> vector<1x120xf32>
    %114 = arith.addf %109, %113 : vector<1x120xf32>
    %c0_130 = arith.constant 0 : index
    %c0_131 = arith.constant 0 : index
    %115 = vector.load %arg11[%c0_130, %c0_131] : memref<1x120xf32, #tpu.memory_space<vmem>>, vector<1x120xf32>
    %116 = arith.addf %114, %115 : vector<1x120xf32>
    %cst_132 = arith.constant 0.000000e+00 : f32
    %117 = vector.broadcast %cst_132 : f32 to vector<1x120xf32>
    %118 = arith.maximumf %116, %117 : vector<1x120xf32>
    %c0_133 = arith.constant 0 : index
    %c0_134 = arith.constant 0 : index
    %119 = vector.load %arg12[%c0_133, %c0_134] : memref<120x84xf32, #tpu.memory_space<vmem>>, vector<120x84xf32>
    %cst_135 = arith.constant dense<0.000000e+00> : vector<1x84xf32>
    %120 = tpu.matmul %118, %119, %cst_135 {dimension_numbers = #tpu.dot_dimension_numbers<[1], [0], [0], [1], [0, 0, 1, 1], [], []>} : vector<1x120xf32>, vector<120x84xf32>, vector<1x84xf32> -> vector<1x84xf32>
    %c0_136 = arith.constant 0 : index
    %c0_137 = arith.constant 0 : index
    %121 = vector.load %arg13[%c0_136, %c0_137] : memref<1x84xf32, #tpu.memory_space<vmem>>, vector<1x84xf32>
    %122 = arith.addf %120, %121 : vector<1x84xf32>
    %cst_138 = arith.constant 0.000000e+00 : f32
    %123 = vector.broadcast %cst_138 : f32 to vector<1x84xf32>
    %124 = arith.maximumf %122, %123 : vector<1x84xf32>
    %c0_139 = arith.constant 0 : index
    %c0_140 = arith.constant 0 : index
    %125 = vector.load %arg14[%c0_139, %c0_140] : memref<84x10xf32, #tpu.memory_space<vmem>>, vector<84x10xf32>
    %cst_141 = arith.constant dense<0.000000e+00> : vector<1x10xf32>
    %126 = tpu.matmul %124, %125, %cst_141 {dimension_numbers = #tpu.dot_dimension_numbers<[1], [0], [0], [1], [0, 0, 1, 1], [], []>} : vector<1x84xf32>, vector<84x10xf32>, vector<1x10xf32> -> vector<1x10xf32>
    %c0_142 = arith.constant 0 : index
    %c0_143 = arith.constant 0 : index
    %127 = vector.load %arg15[%c0_142, %c0_143] : memref<1x10xf32, #tpu.memory_space<vmem>>, vector<1x10xf32>
    %128 = arith.addf %126, %127 : vector<1x10xf32>
    %cst_144 = arith.constant dense<0xFF800000> : vector<1xf32>
    %129 = vector.multi_reduction <maximumf>, %128, %cst_144 [1] : vector<1x10xf32> to vector<1xf32>
    %130 = vector.shape_cast %129 : vector<1xf32> to vector<1x1xf32>
    %131 = vector.broadcast %130 : vector<1x1xf32> to vector<1x10xf32>
    %132 = arith.subf %128, %131 : vector<1x10xf32>
    %133 = math.exp %132 : vector<1x10xf32>
    %cst_145 = arith.constant dense<0.000000e+00> : vector<1xf32>
    %134 = vector.multi_reduction <add>, %133, %cst_145 [1] : vector<1x10xf32> to vector<1xf32>
    %135 = vector.shape_cast %134 : vector<1xf32> to vector<1x1xf32>
    %136 = math.log %135 : vector<1x1xf32>
    %137 = vector.broadcast %136 : vector<1x1xf32> to vector<1x10xf32>
    %138 = arith.subf %132, %137 : vector<1x10xf32>
    %c0_146 = arith.constant 0 : index
    %c0_147 = arith.constant 0 : index
    %c0_148 = arith.constant 0 : index
    %139 = vector.load %arg16[%c0_146, %c0_147, %c0_148] : memref<1x1x10xf32, #tpu.memory_space<vmem>>, vector<1x1x10xf32>
    %140 = vector.shape_cast %139 : vector<1x1x10xf32> to vector<1x10xf32>
    %141 = vector.shape_cast %138 : vector<1x10xf32> to vector<1x1x10xf32>
    tpu.vector_store %arg16[%c0_146, %c0_147, %c0_148], %141 {strides = array<i32>} : memref<1x1x10xf32, #tpu.memory_space<vmem>>, vector<1x1x10xf32>,
    return
  }
  func.func @transform_0(%arg0: i32) -> (i32, i32, i32) {
    %c0_i32 = arith.constant 0 : i32
    %c0_i32_0 = arith.constant 0 : i32
    %c0_i32_1 = arith.constant 0 : i32
    return %arg0, %c0_i32, %c0_i32_0 : i32, i32, i32
  }
  func.func @transform_1(%arg0: i32) -> (i32, i32, i32) {
    %c0_i32 = arith.constant 0 : i32
    %c0_i32_0 = arith.constant 0 : i32
    %c0_i32_1 = arith.constant 0 : i32
    %c0_i32_2 = arith.constant 0 : i32
    return %c0_i32, %c0_i32_0, %c0_i32_1 : i32, i32, i32
  }
  func.func @transform_2(%arg0: i32) -> (i32, i32) {
    %c0_i32 = arith.constant 0 : i32
    %c0_i32_0 = arith.constant 0 : i32
    %c0_i32_1 = arith.constant 0 : i32
    return %c0_i32, %c0_i32_0 : i32, i32
  }
  func.func @transform_3(%arg0: i32) -> (i32, i32, i32) {
    %c0_i32 = arith.constant 0 : i32
    %c0_i32_0 = arith.constant 0 : i32
    %c0_i32_1 = arith.constant 0 : i32
    %c0_i32_2 = arith.constant 0 : i32
    return %c0_i32, %c0_i32_0, %c0_i32_1 : i32, i32, i32
  }
  func.func @transform_4(%arg0: i32) -> (i32, i32, i32) {
    %c0_i32 = arith.constant 0 : i32
    %c0_i32_0 = arith.constant 0 : i32
    %c0_i32_1 = arith.constant 0 : i32
    %c0_i32_2 = arith.constant 0 : i32
    return %c0_i32, %c0_i32_0, %c0_i32_1 : i32, i32, i32
  }
  func.func @transform_5(%arg0: i32) -> (i32, i32, i32) {
    %c0_i32 = arith.constant 0 : i32
    %c0_i32_0 = arith.constant 0 : i32
    %c0_i32_1 = arith.constant 0 : i32
    %c0_i32_2 = arith.constant 0 : i32
    return %c0_i32, %c0_i32_0, %c0_i32_1 : i32, i32, i32
  }
  func.func @transform_6(%arg0: i32) -> (i32, i32) {
    %c0_i32 = arith.constant 0 : i32
    %c0_i32_0 = arith.constant 0 : i32
    %c0_i32_1 = arith.constant 0 : i32
    return %c0_i32, %c0_i32_0 : i32, i32
  }
  func.func @transform_7(%arg0: i32) -> (i32, i32, i32) {
    %c0_i32 = arith.constant 0 : i32
    %c0_i32_0 = arith.constant 0 : i32
    %c0_i32_1 = arith.constant 0 : i32
    %c0_i32_2 = arith.constant 0 : i32
    return %c0_i32, %c0_i32_0, %c0_i32_1 : i32, i32, i32
  }
  func.func @transform_8(%arg0: i32) -> (i32, i32, i32) {
    %c0_i32 = arith.constant 0 : i32
    %c0_i32_0 = arith.constant 0 : i32
    %c0_i32_1 = arith.constant 0 : i32
    %c0_i32_2 = arith.constant 0 : i32
    return %c0_i32, %c0_i32_0, %c0_i32_1 : i32, i32, i32
  }
  func.func @transform_9(%arg0: i32) -> (i32, i32, i32) {
    %c0_i32 = arith.constant 0 : i32
    %c0_i32_0 = arith.constant 0 : i32
    %c0_i32_1 = arith.constant 0 : i32
    %c0_i32_2 = arith.constant 0 : i32
    return %c0_i32, %c0_i32_0, %c0_i32_1 : i32, i32, i32
  }
  func.func @transform_10(%arg0: i32) -> (i32, i32) {
    %c0_i32 = arith.constant 0 : i32
    %c0_i32_0 = arith.constant 0 : i32
    %c0_i32_1 = arith.constant 0 : i32
    return %c0_i32, %c0_i32_0 : i32, i32
  }
  func.func @transform_11(%arg0: i32) -> (i32, i32) {
    %c0_i32 = arith.constant 0 : i32
    %c0_i32_0 = arith.constant 0 : i32
    %c0_i32_1 = arith.constant 0 : i32
    return %c0_i32, %c0_i32_0 : i32, i32
  }
  func.func @transform_12(%arg0: i32) -> (i32, i32) {
    %c0_i32 = arith.constant 0 : i32
    %c0_i32_0 = arith.constant 0 : i32
    %c0_i32_1 = arith.constant 0 : i32
    return %c0_i32, %c0_i32_0 : i32, i32
  }
  func.func @transform_13(%arg0: i32) -> (i32, i32) {
    %c0_i32 = arith.constant 0 : i32
    %c0_i32_0 = arith.constant 0 : i32
    %c0_i32_1 = arith.constant 0 : i32
    return %c0_i32, %c0_i32_0 : i32, i32
  }
  func.func @transform_14(%arg0: i32) -> (i32, i32) {
    %c0_i32 = arith.constant 0 : i32
    %c0_i32_0 = arith.constant 0 : i32
    %c0_i32_1 = arith.constant 0 : i32
    return %c0_i32, %c0_i32_0 : i32, i32
  }
  func.func @transform_15(%arg0: i32) -> (i32, i32, i32) {
    %c0_i32 = arith.constant 0 : i32
    %c0_i32_0 = arith.constant 0 : i32
    %c0_i32_1 = arith.constant 0 : i32
    return %arg0, %c0_i32, %c0_i32_0 : i32, i32, i32
  }
}

</mosaic_0001>

<llo_original>
// kernel: lenet_forward.1
$region0: #{lenet_forward.1}
  #allocation0 [shape = 'u32[]', space=smem, size = 0x4, offset = 0x4, fixed_abs, tag = 'smem constant byte address 0x4 - core index']
  #allocation1 [shape = 'u32[144,128]{1,0:T(1,128)}', space=vmem, size = 0x12000, scoped, tag = 'internal scratch']
  #allocation2 [shape = 'f32[14,84]{1,0:T(8,128)}', space=vmem, size = 0x2000, scoped, tag = 'scratch operand']
  #allocation3 [shape = 'f32[5,80]{1,0:T(8,128)}', space=vmem, size = 0x1000, scoped, tag = 'scratch operand']
  %s0 = inlined_call_operand.vmem [shape: f32[2,32,32], index: 0, kind: input, shape index: {}]
  %s1 = inlined_call_operand.vmem [shape: f32[5,32,168], index: 1, kind: input, shape index: {}]
  %s2 = inlined_call_operand.vmem [shape: f32[1,168], index: 2, kind: input, shape index: {}]
  %s3 = inlined_call_operand.vmem [shape: f32[2,14,28], index: 3, kind: input, shape index: {}]
  %s4 = inlined_call_operand.vmem [shape: f32[2,168,84], index: 4, kind: input, shape index: {}]
  %s5 = inlined_call_operand.vmem [shape: f32[5,84,160], index: 5, kind: input, shape index: {}]
  %s6 = inlined_call_operand.vmem [shape: f32[1,160], index: 6, kind: input, shape index: {}]
  %s7 = inlined_call_operand.vmem [shape: f32[2,5,10], index: 7, kind: input, shape index: {}]
  %s8 = inlined_call_operand.vmem [shape: f32[2,160,80], index: 8, kind: input, shape index: {}]
  %s9 = inlined_call_operand.vmem [shape: f32[5,80,120], index: 9, kind: input, shape index: {}]
  %s10 = inlined_call_operand.vmem [shape: f32[1,120], index: 10, kind: input, shape index: {}]
  %s11 = inlined_call_operand.vmem [shape: f32[120,84], index: 11, kind: input, shape index: {}]
  %s12 = inlined_call_operand.vmem [shape: f32[1,84], index: 12, kind: input, shape index: {}]
  %s13 = inlined_call_operand.vmem [shape: f32[84,10], index: 13, kind: input, shape index: {}]
  %s14 = inlined_call_operand.vmem [shape: f32[1,10], index: 14, kind: input, shape index: {}]
  %s15 = inlined_call_operand.hbm [shape: f32[2,1,10], index: 15, kind: output, shape index: {}]
  %s16 = sld [smem:[#allocation0]]
  $region93: #{lenet_forward.1} parent=0
    _
  %s18 = ssub.s32 1, %s16
  %s19 = scalar_select 0, %s18, %s16
  $region1: #{lenet_forward.1} parent=0
    #allocation4 [shape = 'u8[1024]{0}', space=vmem, size = 0x400, scoped, tag = 'output window, operand 0']
    #allocation5 [shape = 's32[2]{0}', space=sflag, size = 0x8, scoped, tag = 'scoped memory for lenet_forward.1']
    %20 = vsyncpa [#allocation5], 0
    %s21 = scalar_lea.sflag [#allocation5], 1
    %22 = vsyncpa %s21, 0
    loop: start=0, step=1, limit=4
    $region2: #{lenet_forward.1} parent=1 // loop_pre_header
      _
    $region3: #{lenet_forward.1} parent=1 // loop_header
      %s24 = sphi 0, %s28
      %p25 = scmp.ge.s32.totalorder %s24, 4
      %s34 = sphi 0, %s36
      %s37 = sphi 0, %s34
      %s38 = sphi 0, %s37
      %s54 = sphi 0, %s38
      %s58 = sphi 0, %s58
      %s60 = sphi 0, %s58
      %s61 = sphi 0, %s60
      %s75 = sphi 0, %s61
      %s79 = sphi 0, %s79
      %s81 = sphi 0, %s79
      %s82 = sphi 0, %s81
      %s96 = sphi 0, %s82
      %s100 = sphi 0, %s100
      %s102 = sphi 0, %s100
      %s103 = sphi 0, %s102
      %s117 = sphi 0, %s103
      %s121 = sphi 0, %s121
      %s123 = sphi 0, %s121
      %s124 = sphi 0, %s123
      %s138 = sphi 0, %s124
      %s142 = sphi 0, %s142
      %s144 = sphi 0, %s142
      %s145 = sphi 0, %s144
      %s159 = sphi 0, %s145
      %s163 = sphi 0, %s163
      %s165 = sphi 0, %s163
      %s166 = sphi 0, %s165
      %s180 = sphi 0, %s166
      %s184 = sphi 0, %s184
      %s186 = sphi 0, %s184
      %s187 = sphi 0, %s186
      %s201 = sphi 0, %s187
      %s205 = sphi 0, %s205
      %s207 = sphi 0, %s205
      %s208 = sphi 0, %s207
      %s222 = sphi 0, %s208
      %s226 = sphi 0, %s226
      %s228 = sphi 0, %s226
      %s229 = sphi 0, %s228
      %s243 = sphi 0, %s229
      %s247 = sphi 0, %s247
      %s249 = sphi 0, %s247
      %s250 = sphi 0, %s249
      %s264 = sphi 0, %s250
      %s268 = sphi 0, %s268
      %s270 = sphi 0, %s268
      %s271 = sphi 0, %s270
      %s285 = sphi 0, %s271
      %s289 = sphi 0, %s289
      %s291 = sphi 0, %s289
      %s292 = sphi 0, %s291
      %s306 = sphi 0, %s292
      %s310 = sphi 0, %s310
      %s312 = sphi 0, %s310
      %s313 = sphi 0, %s312
      %s327 = sphi 0, %s313
      %s331 = sphi 0, %s331
      %s333 = sphi 0, %s331
      %s334 = sphi 0, %s333
      %s348 = sphi 0, %s334
      %s354 = sphi 0, %s356
      %s357 = sphi 0, %s354
      %s358 = sphi 0, %s357
      %s374 = sphi 0, %s358
    $region4: #{lenet_forward.1} parent=1 // loop_header_branch
      %27 = sbr.rel (%p25) target = $region8
    $region5: #{lenet_forward.1} parent=1 // loop_body
      %s29 = ssub.s32 %s24, 1
      %s30 = ssub.s32 %s24, 2
      %s31 = sadd.s32 %s24, 1
      %s32 = ssub.s32 %s24, %s31
      %p33 = scmp.eq.s32.totalorder %s32, 0
      %s35 = sadd.s32 %s34, 1
      %s36 = scalar_select %p33, %s34, %s35
      %p39 = pneg %p33
      %p40 = scmp.eq.s32.totalorder %s24, 1
      %p41 = por %p39, %p40
      %p42 = scmp.ne.s32.totalorder %s34, %s37
      %p43 = scmp.eq.s32.totalorder %s24, 0
      %p44 = por %p42, %p43
      %p45 = scmp.ne.s32.totalorder %s34, %s37
      %p46 = scmp.eq.s32.totalorder %s29, 1
      %p47 = por %p45, %p46
      %p48 = scmp.ne.s32.totalorder %s37, %s38
      %p49 = scmp.eq.s32.totalorder %s29, 0
      %p50 = por %p48, %p49
      %p51 = scmp.ne.s32.totalorder %s37, %s38
      %p52 = scmp.eq.s32.totalorder %s30, 1
      %p53 = por %p51, %p52
      %p55 = scmp.ne.s32.totalorder %s38, %s54
      %p56 = scmp.eq.s32.totalorder %s30, 0
      %p57 = por %p55, %p56
      %s59 = sadd.s32 %s58, 1
      %p62 = scmp.eq.s32.totalorder %s24, 1
      %p63 = scmp.ne.s32.totalorder %s58, %s60
      %p64 = scmp.eq.s32.totalorder %s24, 0
      %p65 = por %p63, %p64
      %p66 = scmp.ne.s32.totalorder %s58, %s60
      %p67 = scmp.eq.s32.totalorder %s29, 1
      %p68 = por %p66, %p67
      %p69 = scmp.ne.s32.totalorder %s60, %s61
      %p70 = scmp.eq.s32.totalorder %s29, 0
      %p71 = por %p69, %p70
      %p72 = scmp.ne.s32.totalorder %s60, %s61
      %p73 = scmp.eq.s32.totalorder %s30, 1
      %p74 = por %p72, %p73
      %p76 = scmp.ne.s32.totalorder %s61, %s75
      %p77 = scmp.eq.s32.totalorder %s30, 0
      %p78 = por %p76, %p77
      %s80 = sadd.s32 %s79, 1
      %p83 = scmp.eq.s32.totalorder %s24, 1
      %p84 = scmp.ne.s32.totalorder %s79, %s81
      %p85 = scmp.eq.s32.totalorder %s24, 0
      %p86 = por %p84, %p85
      %p87 = scmp.ne.s32.totalorder %s79, %s81
      %p88 = scmp.eq.s32.totalorder %s29, 1
      %p89 = por %p87, %p88
      %p90 = scmp.ne.s32.totalorder %s81, %s82
      %p91 = scmp.eq.s32.totalorder %s29, 0
      %p92 = por %p90, %p91
      %p93 = scmp.ne.s32.totalorder %s81, %s82
      %p94 = scmp.eq.s32.totalorder %s30, 1
      %p95 = por %p93, %p94
      %p97 = scmp.ne.s32.totalorder %s82, %s96
      %p98 = scmp.eq.s32.totalorder %s30, 0
      %p99 = por %p97, %p98
      %s101 = sadd.s32 %s100, 1
      %p104 = scmp.eq.s32.totalorder %s24, 1
      %p105 = scmp.ne.s32.totalorder %s100, %s102
      %p106 = scmp.eq.s32.totalorder %s24, 0
      %p107 = por %p105, %p106
      %p108 = scmp.ne.s32.totalorder %s100, %s102
      %p109 = scmp.eq.s32.totalorder %s29, 1
      %p110 = por %p108, %p109
      %p111 = scmp.ne.s32.totalorder %s102, %s103
      %p112 = scmp.eq.s32.totalorder %s29, 0
      %p113 = por %p111, %p112
      %p114 = scmp.ne.s32.totalorder %s102, %s103
      %p115 = scmp.eq.s32.totalorder %s30, 1
      %p116 = por %p114, %p115
      %p118 = scmp.ne.s32.totalorder %s103, %s117
      %p119 = scmp.eq.s32.totalorder %s30, 0
      %p120 = por %p118, %p119
      %s122 = sadd.s32 %s121, 1
      %p125 = scmp.eq.s32.totalorder %s24, 1
      %p126 = scmp.ne.s32.totalorder %s121, %s123
      %p127 = scmp.eq.s32.totalorder %s24, 0
      %p128 = por %p126, %p127
      %p129 = scmp.ne.s32.totalorder %s121, %s123
      %p130 = scmp.eq.s32.totalorder %s29, 1
      %p131 = por %p129, %p130
      %p132 = scmp.ne.s32.totalorder %s123, %s124
      %p133 = scmp.eq.s32.totalorder %s29, 0
      %p134 = por %p132, %p133
      %p135 = scmp.ne.s32.totalorder %s123, %s124
      %p136 = scmp.eq.s32.totalorder %s30, 1
      %p137 = por %p135, %p136
      %p139 = scmp.ne.s32.totalorder %s124, %s138
      %p140 = scmp.eq.s32.totalorder %s30, 0
      %p141 = por %p139, %p140
      %s143 = sadd.s32 %s142, 1
      %p146 = scmp.eq.s32.totalorder %s24, 1
      %p147 = scmp.ne.s32.totalorder %s142, %s144
      %p148 = scmp.eq.s32.totalorder %s24, 0
      %p149 = por %p147, %p148
      %p150 = scmp.ne.s32.totalorder %s142, %s144
      %p151 = scmp.eq.s32.totalorder %s29, 1
      %p152 = por %p150, %p151
      %p153 = scmp.ne.s32.totalorder %s144, %s145
      %p154 = scmp.eq.s32.totalorder %s29, 0
      %p155 = por %p153, %p154
      %p156 = scmp.ne.s32.totalorder %s144, %s145
      %p157 = scmp.eq.s32.totalorder %s30, 1
      %p158 = por %p156, %p157
      %p160 = scmp.ne.s32.totalorder %s145, %s159
      %p161 = scmp.eq.s32.totalorder %s30, 0
      %p162 = por %p160, %p161
      %s164 = sadd.s32 %s163, 1
      %p167 = scmp.eq.s32.totalorder %s24, 1
      %p168 = scmp.ne.s32.totalorder %s163, %s165
      %p169 = scmp.eq.s32.totalorder %s24, 0
      %p170 = por %p168, %p169
      %p171 = scmp.ne.s32.totalorder %s163, %s165
      %p172 = scmp.eq.s32.totalorder %s29, 1
      %p173 = por %p171, %p172
      %p174 = scmp.ne.s32.totalorder %s165, %s166
      %p175 = scmp.eq.s32.totalorder %s29, 0
      %p176 = por %p174, %p175
      %p177 = scmp.ne.s32.totalorder %s165, %s166
      %p178 = scmp.eq.s32.totalorder %s30, 1
      %p179 = por %p177, %p178
      %p181 = scmp.ne.s32.totalorder %s166, %s180
      %p182 = scmp.eq.s32.totalorder %s30, 0
      %p183 = por %p181, %p182
      %s185 = sadd.s32 %s184, 1
      %p188 = scmp.eq.s32.totalorder %s24, 1
      %p189 = scmp.ne.s32.totalorder %s184, %s186
      %p190 = scmp.eq.s32.totalorder %s24, 0
      %p191 = por %p189, %p190
      %p192 = scmp.ne.s32.totalorder %s184, %s186
      %p193 = scmp.eq.s32.totalorder %s29, 1
      %p194 = por %p192, %p193
      %p195 = scmp.ne.s32.totalorder %s186, %s187
      %p196 = scmp.eq.s32.totalorder %s29, 0
      %p197 = por %p195, %p196
      %p198 = scmp.ne.s32.totalorder %s186, %s187
      %p199 = scmp.eq.s32.totalorder %s30, 1
      %p200 = por %p198, %p199
      %p202 = scmp.ne.s32.totalorder %s187, %s201
      %p203 = scmp.eq.s32.totalorder %s30, 0
      %p204 = por %p202, %p203
      %s206 = sadd.s32 %s205, 1
      %p209 = scmp.eq.s32.totalorder %s24, 1
      %p210 = scmp.ne.s32.totalorder %s205, %s207
      %p211 = scmp.eq.s32.totalorder %s24, 0
      %p212 = por %p210, %p211
      %p213 = scmp.ne.s32.totalorder %s205, %s207
      %p214 = scmp.eq.s32.totalorder %s29, 1
      %p215 = por %p213, %p214
      %p216 = scmp.ne.s32.totalorder %s207, %s208
      %p217 = scmp.eq.s32.totalorder %s29, 0
      %p218 = por %p216, %p217
      %p219 = scmp.ne.s32.totalorder %s207, %s208
      %p220 = scmp.eq.s32.totalorder %s30, 1
      %p221 = por %p219, %p220
      %p223 = scmp.ne.s32.totalorder %s208, %s222
      %p224 = scmp.eq.s32.totalorder %s30, 0
      %p225 = por %p223, %p224
      %s227 = sadd.s32 %s226, 1
      %p230 = scmp.eq.s32.totalorder %s24, 1
      %p231 = scmp.ne.s32.totalorder %s226, %s228
      %p232 = scmp.eq.s32.totalorder %s24, 0
      %p233 = por %p231, %p232
      %p234 = scmp.ne.s32.totalorder %s226, %s228
      %p235 = scmp.eq.s32.totalorder %s29, 1
      %p236 = por %p234, %p235
      %p237 = scmp.ne.s32.totalorder %s228, %s229
      %p238 = scmp.eq.s32.totalorder %s29, 0
      %p239 = por %p237, %p238
      %p240 = scmp.ne.s32.totalorder %s228, %s229
      %p241 = scmp.eq.s32.totalorder %s30, 1
      %p242 = por %p240, %p241
      %p244 = scmp.ne.s32.totalorder %s229, %s243
      %p245 = scmp.eq.s32.totalorder %s30, 0
      %p246 = por %p244, %p245
      %s248 = sadd.s32 %s247, 1
      %p251 = scmp.eq.s32.totalorder %s24, 1
      %p252 = scmp.ne.s32.totalorder %s247, %s249
      %p253 = scmp.eq.s32.totalorder %s24, 0
      %p254 = por %p252, %p253
      %p255 = scmp.ne.s32.totalorder %s247, %s249
      %p256 = scmp.eq.s32.totalorder %s29, 1
      %p257 = por %p255, %p256
      %p258 = scmp.ne.s32.totalorder %s249, %s250
      %p259 = scmp.eq.s32.totalorder %s29, 0
      %p260 = por %p258, %p259
      %p261 = scmp.ne.s32.totalorder %s249, %s250
      %p262 = scmp.eq.s32.totalorder %s30, 1
      %p263 = por %p261, %p262
      %p265 = scmp.ne.s32.totalorder %s250, %s264
      %p266 = scmp.eq.s32.totalorder %s30, 0
      %p267 = por %p265, %p266
      %s269 = sadd.s32 %s268, 1
      %p272 = scmp.eq.s32.totalorder %s24, 1
      %p273 = scmp.ne.s32.totalorder %s268, %s270
      %p274 = scmp.eq.s32.totalorder %s24, 0
      %p275 = por %p273, %p274
      %p276 = scmp.ne.s32.totalorder %s268, %s270
      %p277 = scmp.eq.s32.totalorder %s29, 1
      %p278 = por %p276, %p277
      %p279 = scmp.ne.s32.totalorder %s270, %s271
      %p280 = scmp.eq.s32.totalorder %s29, 0
      %p281 = por %p279, %p280
      %p282 = scmp.ne.s32.totalorder %s270, %s271
      %p283 = scmp.eq.s32.totalorder %s30, 1
      %p284 = por %p282, %p283
      %p286 = scmp.ne.s32.totalorder %s271, %s285
      %p287 = scmp.eq.s32.totalorder %s30, 0
      %p288 = por %p286, %p287
      %s290 = sadd.s32 %s289, 1
      %p293 = scmp.eq.s32.totalorder %s24, 1
      %p294 = scmp.ne.s32.totalorder %s289, %s291
      %p295 = scmp.eq.s32.totalorder %s24, 0
      %p296 = por %p294, %p295
      %p297 = scmp.ne.s32.totalorder %s289, %s291
      %p298 = scmp.eq.s32.totalorder %s29, 1
      %p299 = por %p297, %p298
      %p300 = scmp.ne.s32.totalorder %s291, %s292
      %p301 = scmp.eq.s32.totalorder %s29, 0
      %p302 = por %p300, %p301
      %p303 = scmp.ne.s32.totalorder %s291, %s292
      %p304 = scmp.eq.s32.totalorder %s30, 1
      %p305 = por %p303, %p304
      %p307 = scmp.ne.s32.totalorder %s292, %s306
      %p308 = scmp.eq.s32.totalorder %s30, 0
      %p309 = por %p307, %p308
      %s311 = sadd.s32 %s310, 1
      %p314 = scmp.eq.s32.totalorder %s24, 1
      %p315 = scmp.ne.s32.totalorder %s310, %s312
      %p316 = scmp.eq.s32.totalorder %s24, 0
      %p317 = por %p315, %p316
      %p318 = scmp.ne.s32.totalorder %s310, %s312
      %p319 = scmp.eq.s32.totalorder %s29, 1
      %p320 = por %p318, %p319
      %p321 = scmp.ne.s32.totalorder %s312, %s313
      %p322 = scmp.eq.s32.totalorder %s29, 0
      %p323 = por %p321, %p322
      %p324 = scmp.ne.s32.totalorder %s312, %s313
      %p325 = scmp.eq.s32.totalorder %s30, 1
      %p326 = por %p324, %p325
      %p328 = scmp.ne.s32.totalorder %s313, %s327
      %p329 = scmp.eq.s32.totalorder %s30, 0
      %p330 = por %p328, %p329
      %s332 = sadd.s32 %s331, 1
      %p335 = scmp.eq.s32.totalorder %s24, 1
      %p336 = scmp.ne.s32.totalorder %s331, %s333
      %p337 = scmp.eq.s32.totalorder %s24, 0
      %p338 = por %p336, %p337
      %p339 = scmp.ne.s32.totalorder %s331, %s333
      %p340 = scmp.eq.s32.totalorder %s29, 1
      %p341 = por %p339, %p340
      %p342 = scmp.ne.s32.totalorder %s333, %s334
      %p343 = scmp.eq.s32.totalorder %s29, 0
      %p344 = por %p342, %p343
      %p345 = scmp.ne.s32.totalorder %s333, %s334
      %p346 = scmp.eq.s32.totalorder %s30, 1
      %p347 = por %p345, %p346
      %p349 = scmp.ne.s32.totalorder %s334, %s348
      %p350 = scmp.eq.s32.totalorder %s30, 0
      %p351 = por %p349, %p350
      %s352 = ssub.s32 %s24, %s31
      %p353 = scmp.eq.s32.totalorder %s352, 0
      %s355 = sadd.s32 %s354, 1
      %s356 = scalar_select %p353, %s354, %s355
      %p359 = pneg %p353
      %p360 = scmp.eq.s32.totalorder %s24, 1
      %p361 = por %p359, %p360
      %p362 = scmp.ne.s32.totalorder %s354, %s357
      %p363 = scmp.eq.s32.totalorder %s24, 0
      %p364 = por %p362, %p363
      %p365 = scmp.ne.s32.totalorder %s354, %s357
      %p366 = scmp.eq.s32.totalorder %s29, 1
      %p367 = por %p365, %p366
      %p368 = scmp.ne.s32.totalorder %s357, %s358
      %p369 = scmp.eq.s32.totalorder %s29, 0
      %p370 = por %p368, %p369
      %p371 = scmp.ne.s32.totalorder %s357, %s358
      %p372 = scmp.eq.s32.totalorder %s30, 1
      %p373 = por %p371, %p372
      %p375 = scmp.ne.s32.totalorder %s358, %s374
      %p376 = scmp.eq.s32.totalorder %s30, 0
      %p377 = por %p375, %p376
      %p378 = scmp.le.s32.totalorder 1, %s24
      %p379 = scmp.lt.s32.totalorder %s24, 3
      %p380 = pnand %p378, %p379
      %p381 = pneg %p380
      // Predicated region
      $region9: #{lenet_forward.1} parent=5 // pred_check
        _
      $region10: #{lenet_forward.1} parent=5 // pred_check_branch
        %383 = sbr.rel (%p380) target = $region12
      $region11: #{lenet_forward.1} parent=5 // pred_region
        %s384 = ssub.s32 %s24, 1
        // Predicated region
        $region13: #{lenet_forward.1} parent=11 // pred_check
          %p385 = pneg %p71
        $region14: #{lenet_forward.1} parent=11 // pred_check_branch
          %387 = sbr.rel (%p385) target = $region16
        $region15: #{lenet_forward.1} parent=11 // pred_region
          _
        $region16: #{lenet_forward.1} parent=11 // pred_fallthru
          _
        // Predicated region
        $region17: #{lenet_forward.1} parent=11 // pred_check
          %p388 = pneg %p92
        $region18: #{lenet_forward.1} parent=11 // pred_check_branch
          %390 = sbr.rel (%p388) target = $region20
        $region19: #{lenet_forward.1} parent=11 // pred_region
          _
        $region20: #{lenet_forward.1} parent=11 // pred_fallthru
          _
        // Predicated region
        $region21: #{lenet_forward.1} parent=11 // pred_check
          %p391 = pneg %p113
        $region22: #{lenet_forward.1} parent=11 // pred_check_branch
          %393 = sbr.rel (%p391) target = $region24
        $region23: #{lenet_forward.1} parent=11 // pred_region
          _
        $region24: #{lenet_forward.1} parent=11 // pred_fallthru
          _
        // Predicated region
        $region25: #{lenet_forward.1} parent=11 // pred_check
          %p394 = pneg %p134
        $region26: #{lenet_forward.1} parent=11 // pred_check_branch
          %396 = sbr.rel (%p394) target = $region28
        $region27: #{lenet_forward.1} parent=11 // pred_region
          _
        $region28: #{lenet_forward.1} parent=11 // pred_fallthru
          _
        // Predicated region
        $region29: #{lenet_forward.1} parent=11 // pred_check
          %p397 = pneg %p155
        $region30: #{lenet_forward.1} parent=11 // pred_check_branch
          %399 = sbr.rel (%p397) target = $region32
        $region31: #{lenet_forward.1} parent=11 // pred_region
          _
        $region32: #{lenet_forward.1} parent=11 // pred_fallthru
          _
        // Predicated region
        $region33: #{lenet_forward.1} parent=11 // pred_check
          %p400 = pneg %p176
        $region34: #{lenet_forward.1} parent=11 // pred_check_branch
          %402 = sbr.rel (%p400) target = $region36
        $region35: #{lenet_forward.1} parent=11 // pred_region
          _
        $region36: #{lenet_forward.1} parent=11 // pred_fallthru
          _
        // Predicated region
        $region37: #{lenet_forward.1} parent=11 // pred_check
          %p403 = pneg %p197
        $region38: #{lenet_forward.1} parent=11 // pred_check_branch
          %405 = sbr.rel (%p403) target = $region40
        $region39: #{lenet_forward.1} parent=11 // pred_region
          _
        $region40: #{lenet_forward.1} parent=11 // pred_fallthru
          _
        // Predicated region
        $region41: #{lenet_forward.1} parent=11 // pred_check
          %p406 = pneg %p218
        $region42: #{lenet_forward.1} parent=11 // pred_check_branch
          %408 = sbr.rel (%p406) target = $region44
        $region43: #{lenet_forward.1} parent=11 // pred_region
          _
        $region44: #{lenet_forward.1} parent=11 // pred_fallthru
          _
        // Predicated region
        $region45: #{lenet_forward.1} parent=11 // pred_check
          %p409 = pneg %p239
        $region46: #{lenet_forward.1} parent=11 // pred_check_branch
          %411 = sbr.rel (%p409) target = $region48
        $region47: #{lenet_forward.1} parent=11 // pred_region
          _
        $region48: #{lenet_forward.1} parent=11 // pred_fallthru
          _
        // Predicated region
        $region49: #{lenet_forward.1} parent=11 // pred_check
          %p412 = pneg %p260
        $region50: #{lenet_forward.1} parent=11 // pred_check_branch
          %414 = sbr.rel (%p412) target = $region52
        $region51: #{lenet_forward.1} parent=11 // pred_region
          _
        $region52: #{lenet_forward.1} parent=11 // pred_fallthru
          _
        // Predicated region
        $region53: #{lenet_forward.1} parent=11 // pred_check
          %p415 = pneg %p281
        $region54: #{lenet_forward.1} parent=11 // pred_check_branch
          %417 = sbr.rel (%p415) target = $region56
        $region55: #{lenet_forward.1} parent=11 // pred_region
          _
        $region56: #{lenet_forward.1} parent=11 // pred_fallthru
          _
        // Predicated region
        $region57: #{lenet_forward.1} parent=11 // pred_check
          %p418 = pneg %p302
        $region58: #{lenet_forward.1} parent=11 // pred_check_branch
          %420 = sbr.rel (%p418) target = $region60
        $region59: #{lenet_forward.1} parent=11 // pred_region
          _
        $region60: #{lenet_forward.1} parent=11 // pred_fallthru
          _
        // Predicated region
        $region61: #{lenet_forward.1} parent=11 // pred_check
          %p421 = pneg %p323
        $region62: #{lenet_forward.1} parent=11 // pred_check_branch
          %423 = sbr.rel (%p421) target = $region64
        $region63: #{lenet_forward.1} parent=11 // pred_region
          _
        $region64: #{lenet_forward.1} parent=11 // pred_fallthru
          _
        // Predicated region
        $region65: #{lenet_forward.1} parent=11 // pred_check
          %p424 = pneg %p344
        $region66: #{lenet_forward.1} parent=11 // pred_check_branch
          %426 = sbr.rel (%p424) target = $region68
        $region67: #{lenet_forward.1} parent=11 // pred_region
          _
        $region68: #{lenet_forward.1} parent=11 // pred_fallthru
          _
      $region12: #{lenet_forward.1} parent=5 // pred_fallthru
        _
      %p427 = scmp.lt.s32.totalorder %s24, 2
      // Predicated region
      $region69: #{lenet_forward.1} parent=5 // pred_check
        %p428 = pneg %p427
      $region70: #{lenet_forward.1} parent=5 // pred_check_branch
        %430 = sbr.rel (%p428) target = $region72
      $region71: #{lenet_forward.1} parent=5 // pred_region
        // Predicated region
        $region73: #{lenet_forward.1} parent=71 // pred_check
          %p431 = pneg %p44
        $region74: #{lenet_forward.1} parent=71 // pred_check_branch
          %433 = sbr.rel (%p431) target = $region76
        $region75: #{lenet_forward.1} parent=71 // pred_region
          %p434 = scmp.lt.s32.totalorder %s24, 1
          %s435 = scalar_select %p434, %s24, 1
          %s436 = smul.addr %s435, 4
          %s437 = smul.addr %s436, 8
          %s438 = scalar_lea.vmem %s0, %s437
        $region76: #{lenet_forward.1} parent=71 // pred_fallthru
          _
      $region72: #{lenet_forward.1} parent=5 // pred_fallthru
        _
      %p439 = scmp.le.s32.totalorder 1, %s24
      %p440 = scmp.lt.s32.totalorder %s24, 3
      %p441 = pnand %p439, %p440
      %p442 = pneg %p441
      // Predicated region
      $region77: #{lenet_forward.1} parent=5 // pred_check
        _
      $region78: #{lenet_forward.1} parent=5 // pred_check_branch
        %444 = sbr.rel (%p441) target = $region80
      $region79: #{lenet_forward.1} parent=5 // pred_region
        %s445 = ssub.s32 %s24, 1
        %p446 = scmp.lt.s32.totalorder %s29, 1
        %s447 = scalar_select %p446, %s29, 1
        %s448 = smul.addr %s447, 4
        %s449 = smul.addr %s448, 8
        %s450 = scalar_lea.vmem %s0, %s449
        %p451 = pneg %p50
        %p452 = pneg %p47
        %p453 = pneg %p71
        %p454 = pneg %p68
        %p455 = pneg %p92
        %p456 = pneg %p89
        %p457 = pneg %p113
        %p458 = pneg %p110
        %p459 = pneg %p134
        %p460 = pneg %p131
        %p461 = pneg %p155
        %p462 = pneg %p152
        %p463 = pneg %p176
        %p464 = pneg %p173
        %p465 = pneg %p197
        %p466 = pneg %p194
        %p467 = pneg %p218
        %p468 = pneg %p215
        %p469 = pneg %p239
        %p470 = pneg %p236
        %p471 = pneg %p260
        %p472 = pneg %p257
        %p473 = pneg %p281
        %p474 = pneg %p278
        %p475 = pneg %p302
        %p476 = pneg %p299
        %p477 = pneg %p323
        %p478 = pneg %p320
        %p479 = pneg %p344
        %p480 = pneg %p341
        %p481 = pneg %p370
        %p482 = pneg %p367
        %s483 = sand.u32 %s357, 1
        %s484 = scalar_lea.sflag [#allocation5], %s483
        %s485 = sand.u32 %s357, 1
        %s486 = scalar_lea.vmem [#allocation4], %s485
        %p487 = scmp.lt.s32.totalorder %s29, 1
        %s488 = scalar_select %p487, %s29, 1
        %s489 = smul.addr %s488, 4
        %s490 = smul.addr %s489, 8
        %s491 = scalar_lea.vmem %s0, %s490
        %v492 = vld [vmem:[%s491] sm:$0xff]
        %v493 = vld [vmem:[%s491 + $0x8] sm:$0xff]
        %v494 = vld [vmem:[%s491 + $0x10] sm:$0xff]
        %v495 = vld [vmem:[%s491 + $0x18] sm:$0xf]
        %v496 = vld [vmem:[%s1] sm:$0xff]
        %v497 = vld [vmem:[%s1 + $0x8] sm:$0xff]
        %v498 = vld [vmem:[%s1 + $0x10] sm:$0xff]
        %v499 = vld [vmem:[%s1 + $0x18] sm:$0xff]
        %v500 = vld [vmem:[%s1 + $0x20] sm:$0xff]
        %v501 = vld [vmem:[%s1 + $0x28] sm:$0xff]
        %v502 = vld [vmem:[%s1 + $0x30] sm:$0xff]
        %v503 = vld [vmem:[%s1 + $0x38] sm:$0xff]
        %v504 = vld [vmem:[%s491 + $0x1] sm:$0xff]
        %v505 = vld [vmem:[%s491 + $0x9] sm:$0xff]
        %v506 = vld [vmem:[%s491 + $0x11] sm:$0xff]
        %v507 = vld [vmem:[%s491 + $0x19] sm:$0xf]
        %s508 = scalar_lea.vmem %s1, 64
        %v509 = vld [vmem:[%s508] sm:$0xff]
        %v510 = vld [vmem:[%s508 + $0x8] sm:$0xff]
        %v511 = vld [vmem:[%s508 + $0x10] sm:$0xff]
        %v512 = vld [vmem:[%s508 + $0x18] sm:$0xff]
        %v513 = vld [vmem:[%s508 + $0x20] sm:$0xff]
        %v514 = vld [vmem:[%s508 + $0x28] sm:$0xff]
        %v515 = vld [vmem:[%s508 + $0x30] sm:$0xff]
        %v516 = vld [vmem:[%s508 + $0x38] sm:$0xff]
        %vm517 = vcmask 261120
        %v519 = vsel %vm517, %v504, 0
        %v522 = vsel %vm517, %v505, 0
        %v525 = vsel %vm517, %v506, 0
        %v528 = vsel %vm517, %v507, 0
        %530 = vmatprep.subr.mxu0 %v510
        %531 = vmatpush1.msra.mxu0 %v509
        %532 = vmatprep.subr.mxu0 %v512
        %533 = vmatpush1.msra.mxu0 %v511
        %534 = vmatprep.subr.mxu0 %v514
        %535 = vmatpush1.msra.mxu0 %v513
        %536 = vmatprep.subr.mxu0 %v516
        %537 = vmatpush1.msra.mxu0 %v515
        %538 = vmatprep.subr.mxu0 0.0
        %539 = vmatpush1.msra.mxu0 0.0
        %540 = vmatprep.subr.mxu0 0.0
        %541 = vmatpush1.msra.mxu0 0.0
        %542 = vmatprep.subr.mxu0 0.0
        %543 = vmatpush1.msra.mxu0 0.0
        %544 = vmatprep.subr.mxu0 0.0
        %545 = vmatpush1.msra.mxu0 0.0
        %546 = vmatprep.subr.mxu0 0.0
        %547 = vmatpush1.msra.mxu0 0.0
        %548 = vmatprep.subr.mxu0 0.0
        %549 = vmatpush1.msra.mxu0 0.0
        %550 = vmatprep.subr.mxu0 0.0
        %551 = vmatpush1.msra.mxu0 0.0
        %552 = vmatprep.subr.mxu0 0.0
        %553 = vmatpush1.msra.mxu0 0.0
        %554 = vmatprep.subr.mxu0 0.0
        %555 = vmatpush1.msra.mxu0 0.0
        %556 = vmatprep.subr.mxu0 0.0
        %557 = vmatpush1.msra.mxu0 0.0
        %558 = vmatprep.subr.mxu0 0.0
        %559 = vmatpush1.msra.mxu0 0.0
        %560 = vmatprep.subr.mxu0 0.0
        %561 = vmatpush1.msra.mxu0 0.0
        %562 = vmatprep.subr.mxu0 0.0
        %563 = vmatpush1.msra.mxu0 0.0
        %564 = vmatprep.subr.mxu0 0.0
        %565 = vmatpush1.msra.mxu0 0.0
        %566 = vmatprep.subr.mxu0 0.0
        %567 = vmatpush1.msra.mxu0 0.0
        %568 = vmatprep.subr.mxu0 0.0
        %569 = vmatpush1.msra.mxu0 0.0
        %570 = vmatprep.subr.mxu0 0.0
        %571 = vmatpush1.msra.mxu0 0.0
        %572 = vmatprep.subr.mxu0 0.0
        %573 = vmatpush1.msra.mxu0 0.0
        %574 = vmatprep.subr.mxu0 0.0
        %575 = vmatpush1.msra.mxu0 0.0
        %576 = vmatprep.subr.mxu0 0.0
        %577 = vmatpush1.msra.mxu0 0.0
        %578 = vmatprep.subr.mxu0 0.0
        %579 = vmatpush1.msra.mxu0 0.0
        %580 = vmatprep.subr.mxu0 0.0
        %581 = vmatpush1.msra.mxu0 0.0
        %582 = vmatprep.subr.mxu0 0.0
        %583 = vmatpush1.msra.mxu0 0.0
        %584 = vmatprep.subr.mxu0 0.0
        %585 = vmatpush1.msra.mxu0 0.0
        %586 = vmatprep.subr.mxu0 0.0
        %587 = vmatpush1.msra.mxu0 0.0
        %588 = vmatprep.subr.mxu0 0.0
        %589 = vmatpush1.msra.mxu0 0.0
        %590 = vmatprep.subr.mxu0 0.0
        %591 = vmatpush1.msra.mxu0 0.0
        %592 = vmatprep.subr.mxu0 0.0
        %593 = vmatpush1.msra.mxu0 0.0
        %594 = vmatprep.mubr.f32.mxu0 0.0
        %595 = vmatmul.mubr.f32.gmra.mrb[0].mxu0 %v519
        %v596 = vpop.f32.mrb[0].mxu0
        %v597 = vadd.f32 0.0, %v596
        %v598 = vpop.f32.mrb[0].mxu0
        %v599 = vadd.f32 0.0, %v598
        %600 = vmatprep.mubr.f32.mxu0 0.0
        %601 = vmatmul.mubr.f32.gmra.mrb[0].mxu0 %v522
        %v602 = vpop.f32.mrb[0].mxu0
        %v603 = vadd.f32 0.0, %v602
        %v604 = vpop.f32.mrb[0].mxu0
        %v605 = vadd.f32 0.0, %v604
        %606 = vmatprep.mubr.f32.mxu0 0.0
        %607 = vmatmul.mubr.f32.gmra.mrb[0].mxu0 %v525
        %v608 = vpop.f32.mrb[0].mxu0
        %v609 = vadd.f32 0.0, %v608
        %v610 = vpop.f32.mrb[0].mxu0
        %v611 = vadd.f32 0.0, %v610
        %612 = vmatprep.mubr.f32.mxu0 0.0
        %613 = vmatmul.mubr.f32.gmra.mrb[0].mxu0 %v528
        %v614 = vpop.f32.mrb[0].mxu0
        %v615 = vadd.f32 0.0, %v614
        %v616 = vpop.f32.mrb[0].mxu0
        %v617 = vadd.f32 0.0, %v616
        %618 = vdwg.mxu0
        %v620 = vsel %vm517, %v492, 0
        %v623 = vsel %vm517, %v493, 0
        %v626 = vsel %vm517, %v494, 0
        %v629 = vsel %vm517, %v495, 0
        %631 = vmatprep.subr.mxu0 %v497
        %632 = vmatpush1.msra.mxu0 %v496
        %633 = vmatprep.subr.mxu0 %v499
        %634 = vmatpush1.msra.mxu0 %v498
        %635 = vmatprep.subr.mxu0 %v501
        %636 = vmatpush1.msra.mxu0 %v500
        %637 = vmatprep.subr.mxu0 %v503
        %638 = vmatpush1.msra.mxu0 %v502
        %639 = vmatprep.subr.mxu0 0.0
        %640 = vmatpush1.msra.mxu0 0.0
        %641 = vmatprep.subr.mxu0 0.0
        %642 = vmatpush1.msra.mxu0 0.0
        %643 = vmatprep.subr.mxu0 0.0
        %644 = vmatpush1.msra.mxu0 0.0
        %645 = vmatprep.subr.mxu0 0.0
        %646 = vmatpush1.msra.mxu0 0.0
        %647 = vmatprep.subr.mxu0 0.0
        %648 = vmatpush1.msra.mxu0 0.0
        %649 = vmatprep.subr.mxu0 0.0
        %650 = vmatpush1.msra.mxu0 0.0
        %651 = vmatprep.subr.mxu0 0.0
        %652 = vmatpush1.msra.mxu0 0.0
        %653 = vmatprep.subr.mxu0 0.0
        %654 = vmatpush1.msra.mxu0 0.0
        %655 = vmatprep.subr.mxu0 0.0
        %656 = vmatpush1.msra.mxu0 0.0
        %657 = vmatprep.subr.mxu0 0.0
        %658 = vmatpush1.msra.mxu0 0.0
        %659 = vmatprep.subr.mxu0 0.0
        %660 = vmatpush1.msra.mxu0 0.0
        %661 = vmatprep.subr.mxu0 0.0
        %662 = vmatpush1.msra.mxu0 0.0
        %663 = vmatprep.subr.mxu0 0.0
        %664 = vmatpush1.msra.mxu0 0.0
        %665 = vmatprep.subr.mxu0 0.0
        %666 = vmatpush1.msra.mxu0 0.0
        %667 = vmatprep.subr.mxu0 0.0
        %668 = vmatpush1.msra.mxu0 0.0
        %669 = vmatprep.subr.mxu0 0.0
        %670 = vmatpush1.msra.mxu0 0.0
        %671 = vmatprep.subr.mxu0 0.0
        %672 = vmatpush1.msra.mxu0 0.0
        %673 = vmatprep.subr.mxu0 0.0
        %674 = vmatpush1.msra.mxu0 0.0
        %675 = vmatprep.subr.mxu0 0.0
        %676 = vmatpush1.msra.mxu0 0.0
        %677 = vmatprep.subr.mxu0 0.0
        %678 = vmatpush1.msra.mxu0 0.0
        %679 = vmatprep.subr.mxu0 0.0
        %680 = vmatpush1.msra.mxu0 0.0
        %681 = vmatprep.subr.mxu0 0.0
        %682 = vmatpush1.msra.mxu0 0.0
        %683 = vmatprep.subr.mxu0 0.0
        %684 = vmatpush1.msra.mxu0 0.0
        %685 = vmatprep.subr.mxu0 0.0
        %686 = vmatpush1.msra.mxu0 0.0
        %687 = vmatprep.subr.mxu0 0.0
        %688 = vmatpush1.msra.mxu0 0.0
        %689 = vmatprep.subr.mxu0 0.0
        %690 = vmatpush1.msra.mxu0 0.0
        %691 = vmatprep.subr.mxu0 0.0
        %692 = vmatpush1.msra.mxu0 0.0
        %693 = vmatprep.subr.mxu0 0.0
        %694 = vmatpush1.msra.mxu0 0.0
        %695 = vmatprep.mubr.f32.mxu0 0.0
        %696 = vmatmul.mubr.f32.gmra.mrb[0].mxu0 %v620
        %v697 = vpop.f32.mrb[0].mxu0
        %v698 = vadd.f32 %v597, %v697
        %v699 = vpop.f32.mrb[0].mxu0
        %v700 = vadd.f32 %v599, %v699
        %701 = vmatprep.mubr.f32.mxu0 0.0
        %702 = vmatmul.mubr.f32.gmra.mrb[0].mxu0 %v623
        %v703 = vpop.f32.mrb[0].mxu0
        %v704 = vadd.f32 %v603, %v703
        %v705 = vpop.f32.mrb[0].mxu0
        %v706 = vadd.f32 %v605, %v705
        %707 = vmatprep.mubr.f32.mxu0 0.0
        %708 = vmatmul.mubr.f32.gmra.mrb[0].mxu0 %v626
        %v709 = vpop.f32.mrb[0].mxu0
        %v710 = vadd.f32 %v609, %v709
        %v711 = vpop.f32.mrb[0].mxu0
        %v712 = vadd.f32 %v611, %v711
        %713 = vmatprep.mubr.f32.mxu0 0.0
        %714 = vmatmul.mubr.f32.gmra.mrb[0].mxu0 %v629
        %v715 = vpop.f32.mrb[0].mxu0
        %v716 = vadd.f32 %v615, %v715
        %v717 = vpop.f32.mrb[0].mxu0
        %v718 = vadd.f32 %v617, %v717
        %719 = vdwg.mxu0
        %v720 = vld [vmem:[%s491 + $0x2] sm:$0xff]
        %v721 = vld [vmem:[%s491 + $0xa] sm:$0xff]
        %v722 = vld [vmem:[%s491 + $0x12] sm:$0xff]
        %v723 = vld [vmem:[%s491 + $0x1a] sm:$0xf]
        %s724 = scalar_lea.vmem %s1, 128
        %v725 = vld [vmem:[%s724] sm:$0xff]
        %v726 = vld [vmem:[%s724 + $0x8] sm:$0xff]
        %v727 = vld [vmem:[%s724 + $0x10] sm:$0xff]
        %v728 = vld [vmem:[%s724 + $0x18] sm:$0xff]
        %v729 = vld [vmem:[%s724 + $0x20] sm:$0xff]
        %v730 = vld [vmem:[%s724 + $0x28] sm:$0xff]
        %v731 = vld [vmem:[%s724 + $0x30] sm:$0xff]
        %v732 = vld [vmem:[%s724 + $0x38] sm:$0xff]
        %v734 = vsel %vm517, %v720, 0
        %v737 = vsel %vm517, %v721, 0
        %v740 = vsel %vm517, %v722, 0
        %v743 = vsel %vm517, %v723, 0
        %745 = vmatprep.subr.mxu0 %v726
        %746 = vmatpush1.msra.mxu0 %v725
        %747 = vmatprep.subr.mxu0 %v728
        %748 = vmatpush1.msra.mxu0 %v727
        %749 = vmatprep.subr.mxu0 %v730
        %750 = vmatpush1.msra.mxu0 %v729
        %751 = vmatprep.subr.mxu0 %v732
        %752 = vmatpush1.msra.mxu0 %v731
        %753 = vmatprep.subr.mxu0 0.0
        %754 = vmatpush1.msra.mxu0 0.0
        %755 = vmatprep.subr.mxu0 0.0
        %756 = vmatpush1.msra.mxu0 0.0
        %757 = vmatprep.subr.mxu0 0.0
        %758 = vmatpush1.msra.mxu0 0.0
        %759 = vmatprep.subr.mxu0 0.0
        %760 = vmatpush1.msra.mxu0 0.0
        %761 = vmatprep.subr.mxu0 0.0
        %762 = vmatpush1.msra.mxu0 0.0
        %763 = vmatprep.subr.mxu0 0.0
        %764 = vmatpush1.msra.mxu0 0.0
        %765 = vmatprep.subr.mxu0 0.0
        %766 = vmatpush1.msra.mxu0 0.0
        %767 = vmatprep.subr.mxu0 0.0
        %768 = vmatpush1.msra.mxu0 0.0
        %769 = vmatprep.subr.mxu0 0.0
        %770 = vmatpush1.msra.mxu0 0.0
        %771 = vmatprep.subr.mxu0 0.0
        %772 = vmatpush1.msra.mxu0 0.0
        %773 = vmatprep.subr.mxu0 0.0
        %774 = vmatpush1.msra.mxu0 0.0
        %775 = vmatprep.subr.mxu0 0.0
        %776 = vmatpush1.msra.mxu0 0.0
        %777 = vmatprep.subr.mxu0 0.0
        %778 = vmatpush1.msra.mxu0 0.0
        %779 = vmatprep.subr.mxu0 0.0
        %780 = vmatpush1.msra.mxu0 0.0
        %781 = vmatprep.subr.mxu0 0.0
        %782 = vmatpush1.msra.mxu0 0.0
        %783 = vmatprep.subr.mxu0 0.0
        %784 = vmatpush1.msra.mxu0 0.0
        %785 = vmatprep.subr.mxu0 0.0
        %786 = vmatpush1.msra.mxu0 0.0
        %787 = vmatprep.subr.mxu0 0.0
        %788 = vmatpush1.msra.mxu0 0.0
        %789 = vmatprep.subr.mxu0 0.0
        %790 = vmatpush1.msra.mxu0 0.0
        %791 = vmatprep.subr.mxu0 0.0
        %792 = vmatpush1.msra.mxu0 0.0
        %793 = vmatprep.subr.mxu0 0.0
        %794 = vmatpush1.msra.mxu0 0.0
        %795 = vmatprep.subr.mxu0 0.0
        %796 = vmatpush1.msra.mxu0 0.0
        %797 = vmatprep.subr.mxu0 0.0
        %798 = vmatpush1.msra.mxu0 0.0
        %799 = vmatprep.subr.mxu0 0.0
        %800 = vmatpush1.msra.mxu0 0.0
        %801 = vmatprep.subr.mxu0 0.0
        %802 = vmatpush1.msra.mxu0 0.0
        %803 = vmatprep.subr.mxu0 0.0
        %804 = vmatpush1.msra.mxu0 0.0
        %805 = vmatprep.subr.mxu0 0.0
        %806 = vmatpush1.msra.mxu0 0.0
        %807 = vmatprep.subr.mxu0 0.0
        %808 = vmatpush1.msra.mxu0 0.0
        %809 = vmatprep.mubr.f32.mxu0 0.0
        %810 = vmatmul.mubr.f32.gmra.mrb[0].mxu0 %v734
        %v811 = vpop.f32.mrb[0].mxu0
        %v812 = vadd.f32 0.0, %v811
        %v813 = vpop.f32.mrb[0].mxu0
        %v814 = vadd.f32 0.0, %v813
        %815 = vmatprep.mubr.f32.mxu0 0.0
        %816 = vmatmul.mubr.f32.gmra.mrb[0].mxu0 %v737
        %v817 = vpop.f32.mrb[0].mxu0
        %v818 = vadd.f32 0.0, %v817
        %v819 = vpop.f32.mrb[0].mxu0
        %v820 = vadd.f32 0.0, %v819
        %821 = vmatprep.mubr.f32.mxu0 0.0
        %822 = vmatmul.mubr.f32.gmra.mrb[0].mxu0 %v740
        %v823 = vpop.f32.mrb[0].mxu0
        %v824 = vadd.f32 0.0, %v823
        %v825 = vpop.f32.mrb[0].mxu0
        %v826 = vadd.f32 0.0, %v825
        %827 = vmatprep.mubr.f32.mxu0 0.0
        %828 = vmatmul.mubr.f32.gmra.mrb[0].mxu0 %v743
        %v829 = vpop.f32.mrb[0].mxu0
        %v830 = vadd.f32 0.0, %v829
        %v831 = vpop.f32.mrb[0].mxu0
        %v832 = vadd.f32 0.0, %v831
        %833 = vdwg.mxu0
        %v834 = vadd.f32 %v698, %v812
        %v835 = vadd.f32 %v700, %v814
        %v836 = vadd.f32 %v704, %v818
        %v837 = vadd.f32 %v706, %v820
        %v838 = vadd.f32 %v710, %v824
        %v839 = vadd.f32 %v712, %v826
        %v840 = vadd.f32 %v716, %v830
        %v841 = vadd.f32 %v718, %v832
        %v842 = vld [vmem:[%s491 + $0x3] sm:$0xff]
        %v843 = vld [vmem:[%s491 + $0xb] sm:$0xff]
        %v844 = vld [vmem:[%s491 + $0x13] sm:$0xff]
        %v845 = vld [vmem:[%s491 + $0x1b] sm:$0xf]
        %s846 = scalar_lea.vmem %s1, 192
        %v847 = vld [vmem:[%s846] sm:$0xff]
        %v848 = vld [vmem:[%s846 + $0x8] sm:$0xff]
        %v849 = vld [vmem:[%s846 + $0x10] sm:$0xff]
        %v850 = vld [vmem:[%s846 + $0x18] sm:$0xff]
        %v851 = vld [vmem:[%s846 + $0x20] sm:$0xff]
        %v852 = vld [vmem:[%s846 + $0x28] sm:$0xff]
        %v853 = vld [vmem:[%s846 + $0x30] sm:$0xff]
        %v854 = vld [vmem:[%s846 + $0x38] sm:$0xff]
        %v856 = vsel %vm517, %v842, 0
        %v859 = vsel %vm517, %v843, 0
        %v862 = vsel %vm517, %v844, 0
        %v865 = vsel %vm517, %v845, 0
        %867 = vmatprep.subr.mxu0 %v848
        %868 = vmatpush1.msra.mxu0 %v847
        %869 = vmatprep.subr.mxu0 %v850
        %870 = vmatpush1.msra.mxu0 %v849
        %871 = vmatprep.subr.mxu0 %v852
        %872 = vmatpush1.msra.mxu0 %v851
        %873 = vmatprep.subr.mxu0 %v854
        %874 = vmatpush1.msra.mxu0 %v853
        %875 = vmatprep.subr.mxu0 0.0
        %876 = vmatpush1.msra.mxu0 0.0
        %877 = vmatprep.subr.mxu0 0.0
        %878 = vmatpush1.msra.mxu0 0.0
        %879 = vmatprep.subr.mxu0 0.0
        %880 = vmatpush1.msra.mxu0 0.0
        %881 = vmatprep.subr.mxu0 0.0
        %882 = vmatpush1.msra.mxu0 0.0
        %883 = vmatprep.subr.mxu0 0.0
        %884 = vmatpush1.msra.mxu0 0.0
        %885 = vmatprep.subr.mxu0 0.0
        %886 = vmatpush1.msra.mxu0 0.0
        %887 = vmatprep.subr.mxu0 0.0
        %888 = vmatpush1.msra.mxu0 0.0
        %889 = vmatprep.subr.mxu0 0.0
        %890 = vmatpush1.msra.mxu0 0.0
        %891 = vmatprep.subr.mxu0 0.0
        %892 = vmatpush1.msra.mxu0 0.0
        %893 = vmatprep.subr.mxu0 0.0
        %894 = vmatpush1.msra.mxu0 0.0
        %895 = vmatprep.subr.mxu0 0.0
        %896 = vmatpush1.msra.mxu0 0.0
        %897 = vmatprep.subr.mxu0 0.0
        %898 = vmatpush1.msra.mxu0 0.0
        %899 = vmatprep.subr.mxu0 0.0
        %900 = vmatpush1.msra.mxu0 0.0
        %901 = vmatprep.subr.mxu0 0.0
        %902 = vmatpush1.msra.mxu0 0.0
        %903 = vmatprep.subr.mxu0 0.0
        %904 = vmatpush1.msra.mxu0 0.0
        %905 = vmatprep.subr.mxu0 0.0
        %906 = vmatpush1.msra.mxu0 0.0
        %907 = vmatprep.subr.mxu0 0.0
        %908 = vmatpush1.msra.mxu0 0.0
        %909 = vmatprep.subr.mxu0 0.0
        %910 = vmatpush1.msra.mxu0 0.0
        %911 = vmatprep.subr.mxu0 0.0
        %912 = vmatpush1.msra.mxu0 0.0
        %913 = vmatprep.subr.mxu0 0.0
        %914 = vmatpush1.msra.mxu0 0.0
        %915 = vmatprep.subr.mxu0 0.0
        %916 = vmatpush1.msra.mxu0 0.0
        %917 = vmatprep.subr.mxu0 0.0
        %918 = vmatpush1.msra.mxu0 0.0
        %919 = vmatprep.subr.mxu0 0.0
        %920 = vmatpush1.msra.mxu0 0.0
        %921 = vmatprep.subr.mxu0 0.0
        %922 = vmatpush1.msra.mxu0 0.0
        %923 = vmatprep.subr.mxu0 0.0
        %924 = vmatpush1.msra.mxu0 0.0
        %925 = vmatprep.subr.mxu0 0.0
        %926 = vmatpush1.msra.mxu0 0.0
        %927 = vmatprep.subr.mxu0 0.0
        %928 = vmatpush1.msra.mxu0 0.0
        %929 = vmatprep.subr.mxu0 0.0
        %930 = vmatpush1.msra.mxu0 0.0
        %931 = vmatprep.mubr.f32.mxu0 0.0
        %932 = vmatmul.mubr.f32.gmra.mrb[0].mxu0 %v856
        %v933 = vpop.f32.mrb[0].mxu0
        %v934 = vadd.f32 0.0, %v933
        %v935 = vpop.f32.mrb[0].mxu0
        %v936 = vadd.f32 0.0, %v935
        %937 = vmatprep.mubr.f32.mxu0 0.0
        %938 = vmatmul.mubr.f32.gmra.mrb[0].mxu0 %v859
        %v939 = vpop.f32.mrb[0].mxu0
        %v940 = vadd.f32 0.0, %v939
        %v941 = vpop.f32.mrb[0].mxu0
        %v942 = vadd.f32 0.0, %v941
        %943 = vmatprep.mubr.f32.mxu0 0.0
        %944 = vmatmul.mubr.f32.gmra.mrb[0].mxu0 %v862
        %v945 = vpop.f32.mrb[0].mxu0
        %v946 = vadd.f32 0.0, %v945
        %v947 = vpop.f32.mrb[0].mxu0
        %v948 = vadd.f32 0.0, %v947
        %949 = vmatprep.mubr.f32.mxu0 0.0
        %950 = vmatmul.mubr.f32.gmra.mrb[0].mxu0 %v865
        %v951 = vpop.f32.mrb[0].mxu0
        %v952 = vadd.f32 0.0, %v951
        %v953 = vpop.f32.mrb[0].mxu0
        %v954 = vadd.f32 0.0, %v953
        %955 = vdwg.mxu0
        %v956 = vadd.f32 %v834, %v934
        %v957 = vadd.f32 %v835, %v936
        %v958 = vadd.f32 %v836, %v940
        %v959 = vadd.f32 %v837, %v942
        %v960 = vadd.f32 %v838, %v946
        %v961 = vadd.f32 %v839, %v948
        %v962 = vadd.f32 %v840, %v952
        %v963 = vadd.f32 %v841, %v954
        %v964 = vld [vmem:[%s491 + $0x4] sm:$0xff]
        %v965 = vld [vmem:[%s491 + $0xc] sm:$0xff]
        %v966 = vld [vmem:[%s491 + $0x14] sm:$0xff]
        %v967 = vld [vmem:[%s491 + $0x1c] sm:$0xf]
        %s968 = scalar_lea.vmem %s1, 256
        %v969 = vld [vmem:[%s968] sm:$0xff]
        %v970 = vld [vmem:[%s968 + $0x8] sm:$0xff]
        %v971 = vld [vmem:[%s968 + $0x10] sm:$0xff]
        %v972 = vld [vmem:[%s968 + $0x18] sm:$0xff]
        %v973 = vld [vmem:[%s968 + $0x20] sm:$0xff]
        %v974 = vld [vmem:[%s968 + $0x28] sm:$0xff]
        %v975 = vld [vmem:[%s968 + $0x30] sm:$0xff]
        %v976 = vld [vmem:[%s968 + $0x38] sm:$0xff]
        %v978 = vsel %vm517, %v964, 0
        %v981 = vsel %vm517, %v965, 0
        %v984 = vsel %vm517, %v966, 0
        %v987 = vsel %vm517, %v967, 0
        %989 = vmatprep.subr.mxu0 %v970
        %990 = vmatpush1.msra.mxu0 %v969
        %991 = vmatprep.subr.mxu0 %v972
        %992 = vmatpush1.msra.mxu0 %v971
        %993 = vmatprep.subr.mxu0 %v974
        %994 = vmatpush1.msra.mxu0 %v973
        %995 = vmatprep.subr.mxu0 %v976
        %996 = vmatpush1.msra.mxu0 %v975
        %997 = vmatprep.subr.mxu0 0.0
        %998 = vmatpush1.msra.mxu0 0.0
        %999 = vmatprep.subr.mxu0 0.0
        %1000 = vmatpush1.msra.mxu0 0.0
        %1001 = vmatprep.subr.mxu0 0.0
        %1002 = vmatpush1.msra.mxu0 0.0
        %1003 = vmatprep.subr.mxu0 0.0
        %1004 = vmatpush1.msra.mxu0 0.0
        %1005 = vmatprep.subr.mxu0 0.0
        %1006 = vmatpush1.msra.mxu0 0.0
        %1007 = vmatprep.subr.mxu0 0.0
        %1008 = vmatpush1.msra.mxu0 0.0
        %1009 = vmatprep.subr.mxu0 0.0
        %1010 = vmatpush1.msra.mxu0 0.0
        %1011 = vmatprep.subr.mxu0 0.0
        %1012 = vmatpush1.msra.mxu0 0.0
        %1013 = vmatprep.subr.mxu0 0.0
        %1014 = vmatpush1.msra.mxu0 0.0
        %1015 = vmatprep.subr.mxu0 0.0
        %1016 = vmatpush1.msra.mxu0 0.0
        %1017 = vmatprep.subr.mxu0 0.0
        %1018 = vmatpush1.msra.mxu0 0.0
        %1019 = vmatprep.subr.mxu0 0.0
        %1020 = vmatpush1.msra.mxu0 0.0
        %1021 = vmatprep.subr.mxu0 0.0
        %1022 = vmatpush1.msra.mxu0 0.0
        %1023 = vmatprep.subr.mxu0 0.0
        %1024 = vmatpush1.msra.mxu0 0.0
        %1025 = vmatprep.subr.mxu0 0.0
        %1026 = vmatpush1.msra.mxu0 0.0
        %1027 = vmatprep.subr.mxu0 0.0
        %1028 = vmatpush1.msra.mxu0 0.0
        %1029 = vmatprep.subr.mxu0 0.0
        %1030 = vmatpush1.msra.mxu0 0.0
        %1031 = vmatprep.subr.mxu0 0.0
        %1032 = vmatpush1.msra.mxu0 0.0
        %1033 = vmatprep.subr.mxu0 0.0
        %1034 = vmatpush1.msra.mxu0 0.0
        %1035 = vmatprep.subr.mxu0 0.0
        %1036 = vmatpush1.msra.mxu0 0.0
        %1037 = vmatprep.subr.mxu0 0.0
        %1038 = vmatpush1.msra.mxu0 0.0
        %1039 = vmatprep.subr.mxu0 0.0
        %1040 = vmatpush1.msra.mxu0 0.0
        %1041 = vmatprep.subr.mxu0 0.0
        %1042 = vmatpush1.msra.mxu0 0.0
        %1043 = vmatprep.subr.mxu0 0.0
        %1044 = vmatpush1.msra.mxu0 0.0
        %1045 = vmatprep.subr.mxu0 0.0
        %1046 = vmatpush1.msra.mxu0 0.0
        %1047 = vmatprep.subr.mxu0 0.0
        %1048 = vmatpush1.msra.mxu0 0.0
        %1049 = vmatprep.subr.mxu0 0.0
        %1050 = vmatpush1.msra.mxu0 0.0
        %1051 = vmatprep.subr.mxu0 0.0
        %1052 = vmatpush1.msra.mxu0 0.0
        %1053 = vmatprep.mubr.f32.mxu0 0.0
        %1054 = vmatmul.mubr.f32.gmra.mrb[0].mxu0 %v978
        %v1055 = vpop.f32.mrb[0].mxu0
        %v1056 = vadd.f32 0.0, %v1055
        %v1057 = vpop.f32.mrb[0].mxu0
        %v1058 = vadd.f32 0.0, %v1057
        %1059 = vmatprep.mubr.f32.mxu0 0.0
        %1060 = vmatmul.mubr.f32.gmra.mrb[0].mxu0 %v981
        %v1061 = vpop.f32.mrb[0].mxu0
        %v1062 = vadd.f32 0.0, %v1061
        %v1063 = vpop.f32.mrb[0].mxu0
        %v1064 = vadd.f32 0.0, %v1063
        %1065 = vmatprep.mubr.f32.mxu0 0.0
        %1066 = vmatmul.mubr.f32.gmra.mrb[0].mxu0 %v984
        %v1067 = vpop.f32.mrb[0].mxu0
        %v1068 = vadd.f32 0.0, %v1067
        %v1069 = vpop.f32.mrb[0].mxu0
        %v1070 = vadd.f32 0.0, %v1069
        %1071 = vmatprep.mubr.f32.mxu0 0.0
        %1072 = vmatmul.mubr.f32.gmra.mrb[0].mxu0 %v987
        %v1073 = vpop.f32.mrb[0].mxu0
        %v1074 = vadd.f32 0.0, %v1073
        %v1075 = vpop.f32.mrb[0].mxu0
        %v1076 = vadd.f32 0.0, %v1075
        %1077 = vdwg.mxu0
        %v1078 = vadd.f32 %v956, %v1056
        %v1079 = vadd.f32 %v957, %v1058
        %v1080 = vadd.f32 %v958, %v1062
        %v1081 = vadd.f32 %v959, %v1064
        %v1082 = vadd.f32 %v960, %v1068
        %v1083 = vadd.f32 %v961, %v1070
        %v1084 = vadd.f32 %v962, %v1074
        %v1085 = vadd.f32 %v963, %v1076
        %v1086 = vld [vmem:[%s2] sm:$0x3]
        %v1088 = vlaneseq
        %v1089 = vshrl.u32 %v1088, 7
        %v1090 = vsub.s32 0, %v1089
        %v1091 = vrot.slane %v1086, %v1090
        %v1092 = vlaneseq
        %v1093 = vshrl.u32 %v1092, 7
        %v1094 = vsub.s32 1, %v1093
        %v1095 = vrot.slane %v1086, %v1094
        %v1098 = vadd.f32 %v1078, %v1091
        %v1099 = vadd.f32 %v1079, %v1095
        %v1100 = vadd.f32 %v1080, %v1091
        %v1101 = vadd.f32 %v1081, %v1095
        %v1102 = vadd.f32 %v1082, %v1091
        %v1103 = vadd.f32 %v1083, %v1095
        %v1104 = vadd.f32 %v1084, %v1091
        %v1105 = vadd.f32 %v1085, %v1095
        %v1106 = vmax.f32 %v1098, 0.0
        %v1107 = vmax.f32 %v1099, 0.0
        %v1108 = vmax.f32 %v1100, 0.0
        %v1109 = vmax.f32 %v1101, 0.0
        %v1110 = vmax.f32 %v1102, 0.0
        %v1111 = vmax.f32 %v1103, 0.0
        %v1112 = vmax.f32 %v1104, 0.0
        %v1113 = vmax.f32 %v1105, 0.0
        %v1114 = vld [vmem:[%s3] sm:$0xff]
        %v1115 = vld [vmem:[%s3 + $0x8] sm:$0x3f]
        %vm1116 = vcmask 228352
        %v1118 = vsel %vm1116, %v1114, 0
        %v1121 = vsel %vm1116, %v1115, 0
        %vm1123 = vcmask 1043456
        %v1125 = vsel %vm1123, %v1112, 0
        %v1128 = vsel %vm1123, %v1113, 0
        %1130 = vmatprep.subr.mxu0 %v1107
        %1131 = vmatpush1.msra.mxu0 %v1106
        %1132 = vmatprep.subr.mxu0 %v1109
        %1133 = vmatpush1.msra.mxu0 %v1108
        %1134 = vmatprep.subr.mxu0 %v1111
        %1135 = vmatpush1.msra.mxu0 %v1110
        %1136 = vmatprep.subr.mxu0 %v1128
        %1137 = vmatpush1.msra.mxu0 %v1125
        %1138 = vmatprep.subr.mxu0 0.0
        %1139 = vmatpush1.msra.mxu0 0.0
        %1140 = vmatprep.subr.mxu0 0.0
        %1141 = vmatpush1.msra.mxu0 0.0
        %1142 = vmatprep.subr.mxu0 0.0
        %1143 = vmatpush1.msra.mxu0 0.0
        %1144 = vmatprep.subr.mxu0 0.0
        %1145 = vmatpush1.msra.mxu0 0.0
        %1146 = vmatprep.subr.mxu0 0.0
        %1147 = vmatpush1.msra.mxu0 0.0
        %1148 = vmatprep.subr.mxu0 0.0
        %1149 = vmatpush1.msra.mxu0 0.0
        %1150 = vmatprep.subr.mxu0 0.0
        %1151 = vmatpush1.msra.mxu0 0.0
        %1152 = vmatprep.subr.mxu0 0.0
        %1153 = vmatpush1.msra.mxu0 0.0
        %1154 = vmatprep.subr.mxu0 0.0
        %1155 = vmatpush1.msra.mxu0 0.0
        %1156 = vmatprep.subr.mxu0 0.0
        %1157 = vmatpush1.msra.mxu0 0.0
        %1158 = vmatprep.subr.mxu0 0.0
        %1159 = vmatpush1.msra.mxu0 0.0
        %1160 = vmatprep.subr.mxu0 0.0
        %1161 = vmatpush1.msra.mxu0 0.0
        %1162 = vmatprep.subr.mxu0 0.0
        %1163 = vmatpush1.msra.mxu0 0.0
        %1164 = vmatprep.subr.mxu0 0.0
        %1165 = vmatpush1.msra.mxu0 0.0
        %1166 = vmatprep.subr.mxu0 0.0
        %1167 = vmatpush1.msra.mxu0 0.0
        %1168 = vmatprep.subr.mxu0 0.0
        %1169 = vmatpush1.msra.mxu0 0.0
        %1170 = vmatprep.subr.mxu0 0.0
        %1171 = vmatpush1.msra.mxu0 0.0
        %1172 = vmatprep.subr.mxu0 0.0
        %1173 = vmatpush1.msra.mxu0 0.0
        %1174 = vmatprep.subr.mxu0 0.0
        %1175 = vmatpush1.msra.mxu0 0.0
        %1176 = vmatprep.subr.mxu0 0.0
        %1177 = vmatpush1.msra.mxu0 0.0
        %1178 = vmatprep.subr.mxu0 0.0
        %1179 = vmatpush1.msra.mxu0 0.0
        %1180 = vmatprep.subr.mxu0 0.0
        %1181 = vmatpush1.msra.mxu0 0.0
        %1182 = vmatprep.subr.mxu0 0.0
        %1183 = vmatpush1.msra.mxu0 0.0
        %1184 = vmatprep.subr.mxu0 0.0
        %1185 = vmatpush1.msra.mxu0 0.0
        %1186 = vmatprep.subr.mxu0 0.0
        %1187 = vmatpush1.msra.mxu0 0.0
        %1188 = vmatprep.subr.mxu0 0.0
        %1189 = vmatpush1.msra.mxu0 0.0
        %1190 = vmatprep.subr.mxu0 0.0
        %1191 = vmatpush1.msra.mxu0 0.0
        %1192 = vmatprep.subr.mxu0 0.0
        %1193 = vmatpush1.msra.mxu0 0.0
        %1194 = vmatprep.mubr.f32.mxu0 0.0
        %1195 = vmatmul.mubr.f32.gmra.mrb[0].mxu0 %v1118
        %v1196 = vpop.f32.mrb[0].mxu0
        %v1197 = vadd.f32 0.0, %v1196
        %v1198 = vpop.f32.mrb[0].mxu0
        %v1199 = vadd.f32 0.0, %v1198
        %1200 = vmatprep.mubr.f32.mxu0 0.0
        %1201 = vmatmul.mubr.f32.gmra.mrb[0].mxu0 %v1121
        %v1202 = vpop.f32.mrb[0].mxu0
        %v1203 = vadd.f32 0.0, %v1202
        %v1204 = vpop.f32.mrb[0].mxu0
        %v1205 = vadd.f32 0.0, %v1204
        %1206 = vdwg.mxu0
        %s1207 = scalar_lea.vmem %s3, 16
        %v1208 = vld [vmem:[%s1207] sm:$0xff]
        %v1209 = vld [vmem:[%s1207 + $0x8] sm:$0x3f]
        %v1211 = vsel %vm1116, %v1208, 0
        %v1214 = vsel %vm1116, %v1209, 0
        %1216 = vmatprep.subr.mxu0 %v1107
        %1217 = vmatpush1.msra.mxu0 %v1106
        %1218 = vmatprep.subr.mxu0 %v1109
        %1219 = vmatpush1.msra.mxu0 %v1108
        %1220 = vmatprep.subr.mxu0 %v1111
        %1221 = vmatpush1.msra.mxu0 %v1110
        %1222 = vmatprep.subr.mxu0 %v1128
        %1223 = vmatpush1.msra.mxu0 %v1125
        %1224 = vmatprep.subr.mxu0 0.0
        %1225 = vmatpush1.msra.mxu0 0.0
        %1226 = vmatprep.subr.mxu0 0.0
        %1227 = vmatpush1.msra.mxu0 0.0
        %1228 = vmatprep.subr.mxu0 0.0
        %1229 = vmatpush1.msra.mxu0 0.0
        %1230 = vmatprep.subr.mxu0 0.0
        %1231 = vmatpush1.msra.mxu0 0.0
        %1232 = vmatprep.subr.mxu0 0.0
        %1233 = vmatpush1.msra.mxu0 0.0
        %1234 = vmatprep.subr.mxu0 0.0
        %1235 = vmatpush1.msra.mxu0 0.0
        %1236 = vmatprep.subr.mxu0 0.0
        %1237 = vmatpush1.msra.mxu0 0.0
        %1238 = vmatprep.subr.mxu0 0.0
        %1239 = vmatpush1.msra.mxu0 0.0
        %1240 = vmatprep.subr.mxu0 0.0
        %1241 = vmatpush1.msra.mxu0 0.0
        %1242 = vmatprep.subr.mxu0 0.0
        %1243 = vmatpush1.msra.mxu0 0.0
        %1244 = vmatprep.subr.mxu0 0.0
        %1245 = vmatpush1.msra.mxu0 0.0
        %1246 = vmatprep.subr.mxu0 0.0
        %1247 = vmatpush1.msra.mxu0 0.0
        %1248 = vmatprep.subr.mxu0 0.0
        %1249 = vmatpush1.msra.mxu0 0.0
        %1250 = vmatprep.subr.mxu0 0.0
        %1251 = vmatpush1.msra.mxu0 0.0
        %1252 = vmatprep.subr.mxu0 0.0
        %1253 = vmatpush1.msra.mxu0 0.0
        %1254 = vmatprep.subr.mxu0 0.0
        %1255 = vmatpush1.msra.mxu0 0.0
        %1256 = vmatprep.subr.mxu0 0.0
        %1257 = vmatpush1.msra.mxu0 0.0
        %1258 = vmatprep.subr.mxu0 0.0
        %1259 = vmatpush1.msra.mxu0 0.0
        %1260 = vmatprep.subr.mxu0 0.0
        %1261 = vmatpush1.msra.mxu0 0.0
        %1262 = vmatprep.subr.mxu0 0.0
        %1263 = vmatpush1.msra.mxu0 0.0
        %1264 = vmatprep.subr.mxu0 0.0
        %1265 = vmatpush1.msra.mxu0 0.0
        %1266 = vmatprep.subr.mxu0 0.0
        %1267 = vmatpush1.msra.mxu0 0.0
        %1268 = vmatprep.subr.mxu0 0.0
        %1269 = vmatpush1.msra.mxu0 0.0
        %1270 = vmatprep.subr.mxu0 0.0
        %1271 = vmatpush1.msra.mxu0 0.0
        %1272 = vmatprep.subr.mxu0 0.0
        %1273 = vmatpush1.msra.mxu0 0.0
        %1274 = vmatprep.subr.mxu0 0.0
        %1275 = vmatpush1.msra.mxu0 0.0
        %1276 = vmatprep.subr.mxu0 0.0
        %1277 = vmatpush1.msra.mxu0 0.0
        %1278 = vmatprep.subr.mxu0 0.0
        %1279 = vmatpush1.msra.mxu0 0.0
        %1280 = vmatprep.mubr.f32.mxu0 0.0
        %1281 = vmatmul.mubr.f32.gmra.mrb[0].mxu0 %v1211
        %v1282 = vpop.f32.mrb[0].mxu0
        %v1283 = vadd.f32 0.0, %v1282
        %v1284 = vpop.f32.mrb[0].mxu0
        %v1285 = vadd.f32 0.0, %v1284
        %1286 = vmatprep.mubr.f32.mxu0 0.0
        %1287 = vmatmul.mubr.f32.gmra.mrb[0].mxu0 %v1214
        %v1288 = vpop.f32.mrb[0].mxu0
        %v1289 = vadd.f32 0.0, %v1288
        %v1290 = vpop.f32.mrb[0].mxu0
        %v1291 = vadd.f32 0.0, %v1290
        %1292 = vdwg.mxu0
        %v1293 = vmax.f32 %v1197, %v1283
        %v1294 = vmax.f32 %v1199, %v1285
        %v1295 = vmax.f32 %v1203, %v1289
        %v1296 = vmax.f32 %v1205, %v1291
        %v1297 = vld [vmem:[%s4] sm:$0xff]
        %v1298 = vld [vmem:[%s4 + $0x8] sm:$0xff]
        %v1299 = vld [vmem:[%s4 + $0x10] sm:$0xff]
        %v1300 = vld [vmem:[%s4 + $0x18] sm:$0xff]
        %v1301 = vld [vmem:[%s4 + $0x20] sm:$0xff]
        %v1302 = vld [vmem:[%s4 + $0x28] sm:$0xff]
        %v1303 = vld [vmem:[%s4 + $0x30] sm:$0xff]
        %v1304 = vld [vmem:[%s4 + $0x38] sm:$0xff]
        %v1305 = vld [vmem:[%s4 + $0x40] sm:$0xff]
        %v1306 = vld [vmem:[%s4 + $0x48] sm:$0xff]
        %v1307 = vld [vmem:[%s4 + $0x50] sm:$0xff]
        %v1308 = vld [vmem:[%s4 + $0x58] sm:$0xff]
        %v1309 = vld [vmem:[%s4 + $0x60] sm:$0xff]
        %v1310 = vld [vmem:[%s4 + $0x68] sm:$0xff]
        %v1311 = vld [vmem:[%s4 + $0x70] sm:$0xff]
        %v1312 = vld [vmem:[%s4 + $0x78] sm:$0xff]
        %v1313 = vld [vmem:[%s4 + $0x80] sm:$0xff]
        %v1314 = vld [vmem:[%s4 + $0x88] sm:$0xff]
        %v1315 = vld [vmem:[%s4 + $0x90] sm:$0xff]
        %v1316 = vld [vmem:[%s4 + $0x98] sm:$0xff]
        %v1317 = vld [vmem:[%s4 + $0xa0] sm:$0xff]
        %vm1318 = vcmask 326656
        %v1320 = vsel %vm1318, %v1294, 0
        %v1323 = vsel %vm1318, %v1296, 0
        %1325 = vmatprep.subr.mxu0 0.0
        %1326 = vmatpush1.msra.mxu0 %v1297
        %1327 = vmatprep.subr.mxu0 0.0
        %1328 = vmatpush1.msra.mxu0 %v1298
        %1329 = vmatprep.subr.mxu0 0.0
        %1330 = vmatpush1.msra.mxu0 %v1299
        %1331 = vmatprep.subr.mxu0 0.0
        %1332 = vmatpush1.msra.mxu0 %v1300
        %1333 = vmatprep.subr.mxu0 0.0
        %1334 = vmatpush1.msra.mxu0 %v1301
        %1335 = vmatprep.subr.mxu0 0.0
        %1336 = vmatpush1.msra.mxu0 %v1302
        %1337 = vmatprep.subr.mxu0 0.0
        %1338 = vmatpush1.msra.mxu0 %v1303
        %1339 = vmatprep.subr.mxu0 0.0
        %1340 = vmatpush1.msra.mxu0 %v1304
        %1341 = vmatprep.subr.mxu0 0.0
        %1342 = vmatpush1.msra.mxu0 %v1305
        %1343 = vmatprep.subr.mxu0 0.0
        %1344 = vmatpush1.msra.mxu0 %v1306
        %1345 = vmatprep.subr.mxu0 0.0
        %1346 = vmatpush1.msra.mxu0 %v1307
        %1347 = vmatprep.subr.mxu0 0.0
        %1348 = vmatpush1.msra.mxu0 %v1308
        %1349 = vmatprep.subr.mxu0 0.0
        %1350 = vmatpush1.msra.mxu0 %v1309
        %1351 = vmatprep.subr.mxu0 0.0
        %1352 = vmatpush1.msra.mxu0 %v1310
        %1353 = vmatprep.subr.mxu0 0.0
        %1354 = vmatpush1.msra.mxu0 %v1311
        %1355 = vmatprep.subr.mxu0 0.0
        %1356 = vmatpush1.msra.mxu0 %v1312
        %1357 = vmatprep.subr.mxu0 0.0
        %1358 = vmatpush1.msra.mxu0 %v1313
        %1359 = vmatprep.subr.mxu0 0.0
        %1360 = vmatpush1.msra.mxu0 %v1314
        %1361 = vmatprep.subr.mxu0 0.0
        %1362 = vmatpush1.msra.mxu0 %v1315
        %1363 = vmatprep.subr.mxu0 0.0
        %1364 = vmatpush1.msra.mxu0 %v1316
        %1365 = vmatprep.subr.mxu0 0.0
        %1366 = vmatpush1.msra.mxu0 %v1317
        %1367 = vmatprep.subr.mxu0 0.0
        %1368 = vmatpush1.msra.mxu0 0.0
        %1369 = vmatprep.subr.mxu0 0.0
        %1370 = vmatpush1.msra.mxu0 0.0
        %1371 = vmatprep.subr.mxu0 0.0
        %1372 = vmatpush1.msra.mxu0 0.0
        %1373 = vmatprep.subr.mxu0 0.0
        %1374 = vmatpush1.msra.mxu0 0.0
        %1375 = vmatprep.subr.mxu0 0.0
        %1376 = vmatpush1.msra.mxu0 0.0
        %1377 = vmatprep.subr.mxu0 0.0
        %1378 = vmatpush1.msra.mxu0 0.0
        %1379 = vmatprep.subr.mxu0 0.0
        %1380 = vmatpush1.msra.mxu0 0.0
        %1381 = vmatprep.subr.mxu0 0.0
        %1382 = vmatpush1.msra.mxu0 0.0
        %1383 = vmatprep.subr.mxu0 0.0
        %1384 = vmatpush1.msra.mxu0 0.0
        %1385 = vmatprep.subr.mxu0 0.0
        %1386 = vmatpush1.msra.mxu0 0.0
        %1387 = vmatprep.subr.mxu0 0.0
        %1388 = vmatpush1.msra.mxu0 0.0
        %1389 = vmatprep.mubr.f32.mxu0 %v1320
        %1390 = vmatmul.mubr.f32.gmra.mrb[0].mxu0 %v1293
        %v1391 = vpop.f32.mrb[0].mxu0
        %v1392 = vadd.f32 0.0, %v1391
        %v1393 = vpop.f32.mrb[0].mxu0
        %1394 = vmatprep.mubr.f32.mxu0 %v1323
        %1395 = vmatmul.mubr.f32.gmra.mrb[0].mxu0 %v1295
        %v1396 = vpop.f32.mrb[0].mxu0
        %v1397 = vadd.f32 0.0, %v1396
        %v1398 = vpop.f32.mrb[0].mxu0
        %1399 = vdwg.mxu0
        %s1400 = scalar_lea.vmem %s4, 168
        %v1401 = vld [vmem:[%s1400] sm:$0xff]
        %v1402 = vld [vmem:[%s1400 + $0x8] sm:$0xff]
        %v1403 = vld [vmem:[%s1400 + $0x10] sm:$0xff]
        %v1404 = vld [vmem:[%s1400 + $0x18] sm:$0xff]
        %v1405 = vld [vmem:[%s1400 + $0x20] sm:$0xff]
        %v1406 = vld [vmem:[%s1400 + $0x28] sm:$0xff]
        %v1407 = vld [vmem:[%s1400 + $0x30] sm:$0xff]
        %v1408 = vld [vmem:[%s1400 + $0x38] sm:$0xff]
        %v1409 = vld [vmem:[%s1400 + $0x40] sm:$0xff]
        %v1410 = vld [vmem:[%s1400 + $0x48] sm:$0xff]
        %v1411 = vld [vmem:[%s1400 + $0x50] sm:$0xff]
        %v1412 = vld [vmem:[%s1400 + $0x58] sm:$0xff]
        %v1413 = vld [vmem:[%s1400 + $0x60] sm:$0xff]
        %v1414 = vld [vmem:[%s1400 + $0x68] sm:$0xff]
        %v1415 = vld [vmem:[%s1400 + $0x70] sm:$0xff]
        %v1416 = vld [vmem:[%s1400 + $0x78] sm:$0xff]
        %v1417 = vld [vmem:[%s1400 + $0x80] sm:$0xff]
        %v1418 = vld [vmem:[%s1400 + $0x88] sm:$0xff]
        %v1419 = vld [vmem:[%s1400 + $0x90] sm:$0xff]
        %v1420 = vld [vmem:[%s1400 + $0x98] sm:$0xff]
        %v1421 = vld [vmem:[%s1400 + $0xa0] sm:$0xff]
        %1422 = vmatprep.subr.mxu0 0.0
        %1423 = vmatpush1.msra.mxu0 %v1401
        %1424 = vmatprep.subr.mxu0 0.0
        %1425 = vmatpush1.msra.mxu0 %v1402
        %1426 = vmatprep.subr.mxu0 0.0
        %1427 = vmatpush1.msra.mxu0 %v1403
        %1428 = vmatprep.subr.mxu0 0.0
        %1429 = vmatpush1.msra.mxu0 %v1404
        %1430 = vmatprep.subr.mxu0 0.0
        %1431 = vmatpush1.msra.mxu0 %v1405
        %1432 = vmatprep.subr.mxu0 0.0
        %1433 = vmatpush1.msra.mxu0 %v1406
        %1434 = vmatprep.subr.mxu0 0.0
        %1435 = vmatpush1.msra.mxu0 %v1407
        %1436 = vmatprep.subr.mxu0 0.0
        %1437 = vmatpush1.msra.mxu0 %v1408
        %1438 = vmatprep.subr.mxu0 0.0
        %1439 = vmatpush1.msra.mxu0 %v1409
        %1440 = vmatprep.subr.mxu0 0.0
        %1441 = vmatpush1.msra.mxu0 %v1410
        %1442 = vmatprep.subr.mxu0 0.0
        %1443 = vmatpush1.msra.mxu0 %v1411
        %1444 = vmatprep.subr.mxu0 0.0
        %1445 = vmatpush1.msra.mxu0 %v1412
        %1446 = vmatprep.subr.mxu0 0.0
        %1447 = vmatpush1.msra.mxu0 %v1413
        %1448 = vmatprep.subr.mxu0 0.0
        %1449 = vmatpush1.msra.mxu0 %v1414
        %1450 = vmatprep.subr.mxu0 0.0
        %1451 = vmatpush1.msra.mxu0 %v1415
        %1452 = vmatprep.subr.mxu0 0.0
        %1453 = vmatpush1.msra.mxu0 %v1416
        %1454 = vmatprep.subr.mxu0 0.0
        %1455 = vmatpush1.msra.mxu0 %v1417
        %1456 = vmatprep.subr.mxu0 0.0
        %1457 = vmatpush1.msra.mxu0 %v1418
        %1458 = vmatprep.subr.mxu0 0.0
        %1459 = vmatpush1.msra.mxu0 %v1419
        %1460 = vmatprep.subr.mxu0 0.0
        %1461 = vmatpush1.msra.mxu0 %v1420
        %1462 = vmatprep.subr.mxu0 0.0
        %1463 = vmatpush1.msra.mxu0 %v1421
        %1464 = vmatprep.subr.mxu0 0.0
        %1465 = vmatpush1.msra.mxu0 0.0
        %1466 = vmatprep.subr.mxu0 0.0
        %1467 = vmatpush1.msra.mxu0 0.0
        %1468 = vmatprep.subr.mxu0 0.0
        %1469 = vmatpush1.msra.mxu0 0.0
        %1470 = vmatprep.subr.mxu0 0.0
        %1471 = vmatpush1.msra.mxu0 0.0
        %1472 = vmatprep.subr.mxu0 0.0
        %1473 = vmatpush1.msra.mxu0 0.0
        %1474 = vmatprep.subr.mxu0 0.0
        %1475 = vmatpush1.msra.mxu0 0.0
        %1476 = vmatprep.subr.mxu0 0.0
        %1477 = vmatpush1.msra.mxu0 0.0
        %1478 = vmatprep.subr.mxu0 0.0
        %1479 = vmatpush1.msra.mxu0 0.0
        %1480 = vmatprep.subr.mxu0 0.0
        %1481 = vmatpush1.msra.mxu0 0.0
        %1482 = vmatprep.subr.mxu0 0.0
        %1483 = vmatpush1.msra.mxu0 0.0
        %1484 = vmatprep.subr.mxu0 0.0
        %1485 = vmatpush1.msra.mxu0 0.0
        %1486 = vmatprep.mubr.f32.mxu0 %v1320
        %1487 = vmatmul.mubr.f32.gmra.mrb[0].mxu0 %v1293
        %v1488 = vpop.f32.mrb[0].mxu0
        %v1489 = vadd.f32 0.0, %v1488
        %v1490 = vpop.f32.mrb[0].mxu0
        %1491 = vmatprep.mubr.f32.mxu0 %v1323
        %1492 = vmatmul.mubr.f32.gmra.mrb[0].mxu0 %v1295
        %v1493 = vpop.f32.mrb[0].mxu0
        %v1494 = vadd.f32 0.0, %v1493
        %v1495 = vpop.f32.mrb[0].mxu0
        %1496 = vdwg.mxu0
        %v1497 = vmax.f32 %v1392, %v1489
        %v1498 = vmax.f32 %v1397, %v1494
        %vm1499 = vcmask 687104
        %1500 = vst.msk [vmem:[#allocation2] sm:$0xff] %vm1499, %v1497
        %vm1501 = vcmask 685056
        %1502 = vst.msk [vmem:[#allocation2 + $0x8] sm:$0x3f] %vm1501, %v1498
        %v1503 = vld [vmem:[#allocation2] sm:$0xff]
        %v1504 = vld [vmem:[#allocation2 + $0x8] sm:$0x3]
        %v1505 = vld [vmem:[%s5] sm:$0xff]
        %v1506 = vld [vmem:[%s5 + $0x8] sm:$0xff]
        %v1507 = vld [vmem:[%s5 + $0x10] sm:$0xff]
        %v1508 = vld [vmem:[%s5 + $0x18] sm:$0xff]
        %v1509 = vld [vmem:[%s5 + $0x20] sm:$0xff]
        %v1510 = vld [vmem:[%s5 + $0x28] sm:$0xff]
        %v1511 = vld [vmem:[%s5 + $0x30] sm:$0xff]
        %v1512 = vld [vmem:[%s5 + $0x38] sm:$0xff]
        %v1513 = vld [vmem:[%s5 + $0x40] sm:$0xff]
        %v1514 = vld [vmem:[%s5 + $0x48] sm:$0xff]
        %v1515 = vld [vmem:[%s5 + $0x50] sm:$0xff]
        %v1516 = vld [vmem:[%s5 + $0x58] sm:$0xff]
        %v1517 = vld [vmem:[%s5 + $0x60] sm:$0xff]
        %v1518 = vld [vmem:[%s5 + $0x68] sm:$0xff]
        %v1519 = vld [vmem:[%s5 + $0x70] sm:$0xff]
        %v1520 = vld [vmem:[%s5 + $0x78] sm:$0xff]
        %v1521 = vld [vmem:[%s5 + $0x80] sm:$0xff]
        %v1522 = vld [vmem:[%s5 + $0x88] sm:$0xff]
        %v1523 = vld [vmem:[%s5 + $0x90] sm:$0xff]
        %v1524 = vld [vmem:[%s5 + $0x98] sm:$0xff]
        %v1525 = vld [vmem:[%s5 + $0xa0] sm:$0xf]
        %v1526 = vld [vmem:[%s5 + $0xa8] sm:$0xf]
        %v1527 = vld [vmem:[#allocation2 + $0x1] sm:$0xff]
        %v1528 = vld [vmem:[#allocation2 + $0x9] sm:$0x3]
        %s1529 = scalar_lea.vmem %s5, 176
        %v1530 = vld [vmem:[%s1529] sm:$0xff]
        %v1531 = vld [vmem:[%s1529 + $0x8] sm:$0xff]
        %v1532 = vld [vmem:[%s1529 + $0x10] sm:$0xff]
        %v1533 = vld [vmem:[%s1529 + $0x18] sm:$0xff]
        %v1534 = vld [vmem:[%s1529 + $0x20] sm:$0xff]
        %v1535 = vld [vmem:[%s1529 + $0x28] sm:$0xff]
        %v1536 = vld [vmem:[%s1529 + $0x30] sm:$0xff]
        %v1537 = vld [vmem:[%s1529 + $0x38] sm:$0xff]
        %v1538 = vld [vmem:[%s1529 + $0x40] sm:$0xff]
        %v1539 = vld [vmem:[%s1529 + $0x48] sm:$0xff]
        %v1540 = vld [vmem:[%s1529 + $0x50] sm:$0xff]
        %v1541 = vld [vmem:[%s1529 + $0x58] sm:$0xff]
        %v1542 = vld [vmem:[%s1529 + $0x60] sm:$0xff]
        %v1543 = vld [vmem:[%s1529 + $0x68] sm:$0xff]
        %v1544 = vld [vmem:[%s1529 + $0x70] sm:$0xff]
        %v1545 = vld [vmem:[%s1529 + $0x78] sm:$0xff]
        %v1546 = vld [vmem:[%s1529 + $0x80] sm:$0xff]
        %v1547 = vld [vmem:[%s1529 + $0x88] sm:$0xff]
        %v1548 = vld [vmem:[%s1529 + $0x90] sm:$0xff]
        %v1549 = vld [vmem:[%s1529 + $0x98] sm:$0xff]
        %v1550 = vld [vmem:[%s1529 + $0xa0] sm:$0xf]
        %v1551 = vld [vmem:[%s1529 + $0xa8] sm:$0xf]
        %v1553 = vsel %vm1499, %v1527, 0
        %v1556 = vsel %vm1499, %v1528, 0
        %v1559 = vsel %vm1123, %v1550, 0
        %v1562 = vsel %vm1123, %v1551, 0
        %1564 = vmatprep.subr.mxu0 %v1531
        %1565 = vmatpush1.msra.mxu0 %v1530
        %1566 = vmatprep.subr.mxu0 %v1533
        %1567 = vmatpush1.msra.mxu0 %v1532
        %1568 = vmatprep.subr.mxu0 %v1535
        %1569 = vmatpush1.msra.mxu0 %v1534
        %1570 = vmatprep.subr.mxu0 %v1537
        %1571 = vmatpush1.msra.mxu0 %v1536
        %1572 = vmatprep.subr.mxu0 %v1539
        %1573 = vmatpush1.msra.mxu0 %v1538
        %1574 = vmatprep.subr.mxu0 %v1541
        %1575 = vmatpush1.msra.mxu0 %v1540
        %1576 = vmatprep.subr.mxu0 %v1543
        %1577 = vmatpush1.msra.mxu0 %v1542
        %1578 = vmatprep.subr.mxu0 %v1545
        %1579 = vmatpush1.msra.mxu0 %v1544
        %1580 = vmatprep.subr.mxu0 %v1547
        %1581 = vmatpush1.msra.mxu0 %v1546
        %1582 = vmatprep.subr.mxu0 %v1549
        %1583 = vmatpush1.msra.mxu0 %v1548
        %1584 = vmatprep.subr.mxu0 %v1562
        %1585 = vmatpush1.msra.mxu0 %v1559
        %1586 = vmatprep.subr.mxu0 0.0
        %1587 = vmatpush1.msra.mxu0 0.0
        %1588 = vmatprep.subr.mxu0 0.0
        %1589 = vmatpush1.msra.mxu0 0.0
        %1590 = vmatprep.subr.mxu0 0.0
        %1591 = vmatpush1.msra.mxu0 0.0
        %1592 = vmatprep.subr.mxu0 0.0
        %1593 = vmatpush1.msra.mxu0 0.0
        %1594 = vmatprep.subr.mxu0 0.0
        %1595 = vmatpush1.msra.mxu0 0.0
        %1596 = vmatprep.subr.mxu0 0.0
        %1597 = vmatpush1.msra.mxu0 0.0
        %1598 = vmatprep.subr.mxu0 0.0
        %1599 = vmatpush1.msra.mxu0 0.0
        %1600 = vmatprep.subr.mxu0 0.0
        %1601 = vmatpush1.msra.mxu0 0.0
        %1602 = vmatprep.subr.mxu0 0.0
        %1603 = vmatpush1.msra.mxu0 0.0
        %1604 = vmatprep.subr.mxu0 0.0
        %1605 = vmatpush1.msra.mxu0 0.0
        %1606 = vmatprep.subr.mxu0 0.0
        %1607 = vmatpush1.msra.mxu0 0.0
        %1608 = vmatprep.subr.mxu0 0.0
        %1609 = vmatpush1.msra.mxu0 0.0
        %1610 = vmatprep.subr.mxu0 0.0
        %1611 = vmatpush1.msra.mxu0 0.0
        %1612 = vmatprep.subr.mxu0 0.0
        %1613 = vmatpush1.msra.mxu0 0.0
        %1614 = vmatprep.subr.mxu0 0.0
        %1615 = vmatpush1.msra.mxu0 0.0
        %1616 = vmatprep.subr.mxu0 0.0
        %1617 = vmatpush1.msra.mxu0 0.0
        %1618 = vmatprep.subr.mxu0 0.0
        %1619 = vmatpush1.msra.mxu0 0.0
        %1620 = vmatprep.subr.mxu0 0.0
        %1621 = vmatpush1.msra.mxu0 0.0
        %1622 = vmatprep.subr.mxu0 0.0
        %1623 = vmatpush1.msra.mxu0 0.0
        %1624 = vmatprep.subr.mxu0 0.0
        %1625 = vmatpush1.msra.mxu0 0.0
        %1626 = vmatprep.subr.mxu0 0.0
        %1627 = vmatpush1.msra.mxu0 0.0
        %1628 = vmatprep.mubr.f32.mxu0 0.0
        %1629 = vmatmul.mubr.f32.gmra.mrb[0].mxu0 %v1553
        %v1630 = vpop.f32.mrb[0].mxu0
        %v1631 = vadd.f32 0.0, %v1630
        %v1632 = vpop.f32.mrb[0].mxu0
        %v1633 = vadd.f32 0.0, %v1632
        %1634 = vmatprep.mubr.f32.mxu0 0.0
        %1635 = vmatmul.mubr.f32.gmra.mrb[0].mxu0 %v1556
        %v1636 = vpop.f32.mrb[0].mxu0
        %v1637 = vadd.f32 0.0, %v1636
        %v1638 = vpop.f32.mrb[0].mxu0
        %v1639 = vadd.f32 0.0, %v1638
        %1640 = vdwg.mxu0
        %v1642 = vsel %vm1499, %v1503, 0
        %v1645 = vsel %vm1499, %v1504, 0
        %v1648 = vsel %vm1123, %v1525, 0
        %v1651 = vsel %vm1123, %v1526, 0
        %1653 = vmatprep.subr.mxu0 %v1506
        %1654 = vmatpush1.msra.mxu0 %v1505
        %1655 = vmatprep.subr.mxu0 %v1508
        %1656 = vmatpush1.msra.mxu0 %v1507
        %1657 = vmatprep.subr.mxu0 %v1510
        %1658 = vmatpush1.msra.mxu0 %v1509
        %1659 = vmatprep.subr.mxu0 %v1512
        %1660 = vmatpush1.msra.mxu0 %v1511
        %1661 = vmatprep.subr.mxu0 %v1514
        %1662 = vmatpush1.msra.mxu0 %v1513
        %1663 = vmatprep.subr.mxu0 %v1516
        %1664 = vmatpush1.msra.mxu0 %v1515
        %1665 = vmatprep.subr.mxu0 %v1518
        %1666 = vmatpush1.msra.mxu0 %v1517
        %1667 = vmatprep.subr.mxu0 %v1520
        %1668 = vmatpush1.msra.mxu0 %v1519
        %1669 = vmatprep.subr.mxu0 %v1522
        %1670 = vmatpush1.msra.mxu0 %v1521
        %1671 = vmatprep.subr.mxu0 %v1524
        %1672 = vmatpush1.msra.mxu0 %v1523
        %1673 = vmatprep.subr.mxu0 %v1651
        %1674 = vmatpush1.msra.mxu0 %v1648
        %1675 = vmatprep.subr.mxu0 0.0
        %1676 = vmatpush1.msra.mxu0 0.0
        %1677 = vmatprep.subr.mxu0 0.0
        %1678 = vmatpush1.msra.mxu0 0.0
        %1679 = vmatprep.subr.mxu0 0.0
        %1680 = vmatpush1.msra.mxu0 0.0
        %1681 = vmatprep.subr.mxu0 0.0
        %1682 = vmatpush1.msra.mxu0 0.0
        %1683 = vmatprep.subr.mxu0 0.0
        %1684 = vmatpush1.msra.mxu0 0.0
        %1685 = vmatprep.subr.mxu0 0.0
        %1686 = vmatpush1.msra.mxu0 0.0
        %1687 = vmatprep.subr.mxu0 0.0
        %1688 = vmatpush1.msra.mxu0 0.0
        %1689 = vmatprep.subr.mxu0 0.0
        %1690 = vmatpush1.msra.mxu0 0.0
        %1691 = vmatprep.subr.mxu0 0.0
        %1692 = vmatpush1.msra.mxu0 0.0
        %1693 = vmatprep.subr.mxu0 0.0
        %1694 = vmatpush1.msra.mxu0 0.0
        %1695 = vmatprep.subr.mxu0 0.0
        %1696 = vmatpush1.msra.mxu0 0.0
        %1697 = vmatprep.subr.mxu0 0.0
        %1698 = vmatpush1.msra.mxu0 0.0
        %1699 = vmatprep.subr.mxu0 0.0
        %1700 = vmatpush1.msra.mxu0 0.0
        %1701 = vmatprep.subr.mxu0 0.0
        %1702 = vmatpush1.msra.mxu0 0.0
        %1703 = vmatprep.subr.mxu0 0.0
        %1704 = vmatpush1.msra.mxu0 0.0
        %1705 = vmatprep.subr.mxu0 0.0
        %1706 = vmatpush1.msra.mxu0 0.0
        %1707 = vmatprep.subr.mxu0 0.0
        %1708 = vmatpush1.msra.mxu0 0.0
        %1709 = vmatprep.subr.mxu0 0.0
        %1710 = vmatpush1.msra.mxu0 0.0
        %1711 = vmatprep.subr.mxu0 0.0
        %1712 = vmatpush1.msra.mxu0 0.0
        %1713 = vmatprep.subr.mxu0 0.0
        %1714 = vmatpush1.msra.mxu0 0.0
        %1715 = vmatprep.subr.mxu0 0.0
        %1716 = vmatpush1.msra.mxu0 0.0
        %1717 = vmatprep.mubr.f32.mxu0 0.0
        %1718 = vmatmul.mubr.f32.gmra.mrb[0].mxu0 %v1642
        %v1719 = vpop.f32.mrb[0].mxu0
        %v1720 = vadd.f32 %v1631, %v1719
        %v1721 = vpop.f32.mrb[0].mxu0
        %v1722 = vadd.f32 %v1633, %v1721
        %1723 = vmatprep.mubr.f32.mxu0 0.0
        %1724 = vmatmul.mubr.f32.gmra.mrb[0].mxu0 %v1645
        %v1725 = vpop.f32.mrb[0].mxu0
        %v1726 = vadd.f32 %v1637, %v1725
        %v1727 = vpop.f32.mrb[0].mxu0
        %v1728 = vadd.f32 %v1639, %v1727
        %1729 = vdwg.mxu0
        %v1730 = vld [vmem:[#allocation2 + $0x2] sm:$0xff]
        %v1731 = vld [vmem:[#allocation2 + $0xa] sm:$0x3]
        %s1732 = scalar_lea.vmem %s5, 352
        %v1733 = vld [vmem:[%s1732] sm:$0xff]
        %v1734 = vld [vmem:[%s1732 + $0x8] sm:$0xff]
        %v1735 = vld [vmem:[%s1732 + $0x10] sm:$0xff]
        %v1736 = vld [vmem:[%s1732 + $0x18] sm:$0xff]
        %v1737 = vld [vmem:[%s1732 + $0x20] sm:$0xff]
        %v1738 = vld [vmem:[%s1732 + $0x28] sm:$0xff]
        %v1739 = vld [vmem:[%s1732 + $0x30] sm:$0xff]
        %v1740 = vld [vmem:[%s1732 + $0x38] sm:$0xff]
        %v1741 = vld [vmem:[%s1732 + $0x40] sm:$0xff]
        %v1742 = vld [vmem:[%s1732 + $0x48] sm:$0xff]
        %v1743 = vld [vmem:[%s1732 + $0x50] sm:$0xff]
        %v1744 = vld [vmem:[%s1732 + $0x58] sm:$0xff]
        %v1745 = vld [vmem:[%s1732 + $0x60] sm:$0xff]
        %v1746 = vld [vmem:[%s1732 + $0x68] sm:$0xff]
        %v1747 = vld [vmem:[%s1732 + $0x70] sm:$0xff]
        %v1748 = vld [vmem:[%s1732 + $0x78] sm:$0xff]
        %v1749 = vld [vmem:[%s1732 + $0x80] sm:$0xff]
        %v1750 = vld [vmem:[%s1732 + $0x88] sm:$0xff]
        %v1751 = vld [vmem:[%s1732 + $0x90] sm:$0xff]
        %v1752 = vld [vmem:[%s1732 + $0x98] sm:$0xff]
        %v1753 = vld [vmem:[%s1732 + $0xa0] sm:$0xf]
        %v1754 = vld [vmem:[%s1732 + $0xa8] sm:$0xf]
        %v1756 = vsel %vm1499, %v1730, 0
        %v1759 = vsel %vm1499, %v1731, 0
        %v1762 = vsel %vm1123, %v1753, 0
        %v1765 = vsel %vm1123, %v1754, 0
        %1767 = vmatprep.subr.mxu0 %v1734
        %1768 = vmatpush1.msra.mxu0 %v1733
        %1769 = vmatprep.subr.mxu0 %v1736
        %1770 = vmatpush1.msra.mxu0 %v1735
        %1771 = vmatprep.subr.mxu0 %v1738
        %1772 = vmatpush1.msra.mxu0 %v1737
        %1773 = vmatprep.subr.mxu0 %v1740
        %1774 = vmatpush1.msra.mxu0 %v1739
        %1775 = vmatprep.subr.mxu0 %v1742
        %1776 = vmatpush1.msra.mxu0 %v1741
        %1777 = vmatprep.subr.mxu0 %v1744
        %1778 = vmatpush1.msra.mxu0 %v1743
        %1779 = vmatprep.subr.mxu0 %v1746
        %1780 = vmatpush1.msra.mxu0 %v1745
        %1781 = vmatprep.subr.mxu0 %v1748
        %1782 = vmatpush1.msra.mxu0 %v1747
        %1783 = vmatprep.subr.mxu0 %v1750
        %1784 = vmatpush1.msra.mxu0 %v1749
        %1785 = vmatprep.subr.mxu0 %v1752
        %1786 = vmatpush1.msra.mxu0 %v1751
        %1787 = vmatprep.subr.mxu0 %v1765
        %1788 = vmatpush1.msra.mxu0 %v1762
        %1789 = vmatprep.subr.mxu0 0.0
        %1790 = vmatpush1.msra.mxu0 0.0
        %1791 = vmatprep.subr.mxu0 0.0
        %1792 = vmatpush1.msra.mxu0 0.0
        %1793 = vmatprep.subr.mxu0 0.0
        %1794 = vmatpush1.msra.mxu0 0.0
        %1795 = vmatprep.subr.mxu0 0.0
        %1796 = vmatpush1.msra.mxu0 0.0
        %1797 = vmatprep.subr.mxu0 0.0
        %1798 = vmatpush1.msra.mxu0 0.0
        %1799 = vmatprep.subr.mxu0 0.0
        %1800 = vmatpush1.msra.mxu0 0.0
        %1801 = vmatprep.subr.mxu0 0.0
        %1802 = vmatpush1.msra.mxu0 0.0
        %1803 = vmatprep.subr.mxu0 0.0
        %1804 = vmatpush1.msra.mxu0 0.0
        %1805 = vmatprep.subr.mxu0 0.0
        %1806 = vmatpush1.msra.mxu0 0.0
        %1807 = vmatprep.subr.mxu0 0.0
        %1808 = vmatpush1.msra.mxu0 0.0
        %1809 = vmatprep.subr.mxu0 0.0
        %1810 = vmatpush1.msra.mxu0 0.0
        %1811 = vmatprep.subr.mxu0 0.0
        %1812 = vmatpush1.msra.mxu0 0.0
        %1813 = vmatprep.subr.mxu0 0.0
        %1814 = vmatpush1.msra.mxu0 0.0
        %1815 = vmatprep.subr.mxu0 0.0
        %1816 = vmatpush1.msra.mxu0 0.0
        %1817 = vmatprep.subr.mxu0 0.0
        %1818 = vmatpush1.msra.mxu0 0.0
        %1819 = vmatprep.subr.mxu0 0.0
        %1820 = vmatpush1.msra.mxu0 0.0
        %1821 = vmatprep.subr.mxu0 0.0
        %1822 = vmatpush1.msra.mxu0 0.0
        %1823 = vmatprep.subr.mxu0 0.0
        %1824 = vmatpush1.msra.mxu0 0.0
        %1825 = vmatprep.subr.mxu0 0.0
        %1826 = vmatpush1.msra.mxu0 0.0
        %1827 = vmatprep.subr.mxu0 0.0
        %1828 = vmatpush1.msra.mxu0 0.0
        %1829 = vmatprep.subr.mxu0 0.0
        %1830 = vmatpush1.msra.mxu0 0.0
        %1831 = vmatprep.mubr.f32.mxu0 0.0
        %1832 = vmatmul.mubr.f32.gmra.mrb[0].mxu0 %v1756
        %v1833 = vpop.f32.mrb[0].mxu0
        %v1834 = vadd.f32 0.0, %v1833
        %v1835 = vpop.f32.mrb[0].mxu0
        %v1836 = vadd.f32 0.0, %v1835
        %1837 = vmatprep.mubr.f32.mxu0 0.0
        %1838 = vmatmul.mubr.f32.gmra.mrb[0].mxu0 %v1759
        %v1839 = vpop.f32.mrb[0].mxu0
        %v1840 = vadd.f32 0.0, %v1839
        %v1841 = vpop.f32.mrb[0].mxu0
        %v1842 = vadd.f32 0.0, %v1841
        %1843 = vdwg.mxu0
        %v1844 = vadd.f32 %v1720, %v1834
        %v1845 = vadd.f32 %v1722, %v1836
        %v1846 = vadd.f32 %v1726, %v1840
        %v1847 = vadd.f32 %v1728, %v1842
        %v1848 = vld [vmem:[#allocation2 + $0x3] sm:$0xff]
        %v1849 = vld [vmem:[#allocation2 + $0xb] sm:$0x3]
        %s1850 = scalar_lea.vmem %s5, 528
        %v1851 = vld [vmem:[%s1850] sm:$0xff]
        %v1852 = vld [vmem:[%s1850 + $0x8] sm:$0xff]
        %v1853 = vld [vmem:[%s1850 + $0x10] sm:$0xff]
        %v1854 = vld [vmem:[%s1850 + $0x18] sm:$0xff]
        %v1855 = vld [vmem:[%s1850 + $0x20] sm:$0xff]
        %v1856 = vld [vmem:[%s1850 + $0x28] sm:$0xff]
        %v1857 = vld [vmem:[%s1850 + $0x30] sm:$0xff]
        %v1858 = vld [vmem:[%s1850 + $0x38] sm:$0xff]
        %v1859 = vld [vmem:[%s1850 + $0x40] sm:$0xff]
        %v1860 = vld [vmem:[%s1850 + $0x48] sm:$0xff]
        %v1861 = vld [vmem:[%s1850 + $0x50] sm:$0xff]
        %v1862 = vld [vmem:[%s1850 + $0x58] sm:$0xff]
        %v1863 = vld [vmem:[%s1850 + $0x60] sm:$0xff]
        %v1864 = vld [vmem:[%s1850 + $0x68] sm:$0xff]
        %v1865 = vld [vmem:[%s1850 + $0x70] sm:$0xff]
        %v1866 = vld [vmem:[%s1850 + $0x78] sm:$0xff]
        %v1867 = vld [vmem:[%s1850 + $0x80] sm:$0xff]
        %v1868 = vld [vmem:[%s1850 + $0x88] sm:$0xff]
        %v1869 = vld [vmem:[%s1850 + $0x90] sm:$0xff]
        %v1870 = vld [vmem:[%s1850 + $0x98] sm:$0xff]
        %v1871 = vld [vmem:[%s1850 + $0xa0] sm:$0xf]
        %v1872 = vld [vmem:[%s1850 + $0xa8] sm:$0xf]
        %v1874 = vsel %vm1499, %v1848, 0
        %v1877 = vsel %vm1499, %v1849, 0
        %v1880 = vsel %vm1123, %v1871, 0
        %v1883 = vsel %vm1123, %v1872, 0
        %1885 = vmatprep.subr.mxu0 %v1852
        %1886 = vmatpush1.msra.mxu0 %v1851
        %1887 = vmatprep.subr.mxu0 %v1854
        %1888 = vmatpush1.msra.mxu0 %v1853
        %1889 = vmatprep.subr.mxu0 %v1856
        %1890 = vmatpush1.msra.mxu0 %v1855
        %1891 = vmatprep.subr.mxu0 %v1858
        %1892 = vmatpush1.msra.mxu0 %v1857
        %1893 = vmatprep.subr.mxu0 %v1860
        %1894 = vmatpush1.msra.mxu0 %v1859
        %1895 = vmatprep.subr.mxu0 %v1862
        %1896 = vmatpush1.msra.mxu0 %v1861
        %1897 = vmatprep.subr.mxu0 %v1864
        %1898 = vmatpush1.msra.mxu0 %v1863
        %1899 = vmatprep.subr.mxu0 %v1866
        %1900 = vmatpush1.msra.mxu0 %v1865
        %1901 = vmatprep.subr.mxu0 %v1868
        %1902 = vmatpush1.msra.mxu0 %v1867
        %1903 = vmatprep.subr.mxu0 %v1870
        %1904 = vmatpush1.msra.mxu0 %v1869
        %1905 = vmatprep.subr.mxu0 %v1883
        %1906 = vmatpush1.msra.mxu0 %v1880
        %1907 = vmatprep.subr.mxu0 0.0
        %1908 = vmatpush1.msra.mxu0 0.0
        %1909 = vmatprep.subr.mxu0 0.0
        %1910 = vmatpush1.msra.mxu0 0.0
        %1911 = vmatprep.subr.mxu0 0.0
        %1912 = vmatpush1.msra.mxu0 0.0
        %1913 = vmatprep.subr.mxu0 0.0
        %1914 = vmatpush1.msra.mxu0 0.0
        %1915 = vmatprep.subr.mxu0 0.0
        %1916 = vmatpush1.msra.mxu0 0.0
        %1917 = vmatprep.subr.mxu0 0.0
        %1918 = vmatpush1.msra.mxu0 0.0
        %1919 = vmatprep.subr.mxu0 0.0
        %1920 = vmatpush1.msra.mxu0 0.0
        %1921 = vmatprep.subr.mxu0 0.0
        %1922 = vmatpush1.msra.mxu0 0.0
        %1923 = vmatprep.subr.mxu0 0.0
        %1924 = vmatpush1.msra.mxu0 0.0
        %1925 = vmatprep.subr.mxu0 0.0
        %1926 = vmatpush1.msra.mxu0 0.0
        %1927 = vmatprep.subr.mxu0 0.0
        %1928 = vmatpush1.msra.mxu0 0.0
        %1929 = vmatprep.subr.mxu0 0.0
        %1930 = vmatpush1.msra.mxu0 0.0
        %1931 = vmatprep.subr.mxu0 0.0
        %1932 = vmatpush1.msra.mxu0 0.0
        %1933 = vmatprep.subr.mxu0 0.0
        %1934 = vmatpush1.msra.mxu0 0.0
        %1935 = vmatprep.subr.mxu0 0.0
        %1936 = vmatpush1.msra.mxu0 0.0
        %1937 = vmatprep.subr.mxu0 0.0
        %1938 = vmatpush1.msra.mxu0 0.0
        %1939 = vmatprep.subr.mxu0 0.0
        %1940 = vmatpush1.msra.mxu0 0.0
        %1941 = vmatprep.subr.mxu0 0.0
        %1942 = vmatpush1.msra.mxu0 0.0
        %1943 = vmatprep.subr.mxu0 0.0
        %1944 = vmatpush1.msra.mxu0 0.0
        %1945 = vmatprep.subr.mxu0 0.0
        %1946 = vmatpush1.msra.mxu0 0.0
        %1947 = vmatprep.subr.mxu0 0.0
        %1948 = vmatpush1.msra.mxu0 0.0
        %1949 = vmatprep.mubr.f32.mxu0 0.0
        %1950 = vmatmul.mubr.f32.gmra.mrb[0].mxu0 %v1874
        %v1951 = vpop.f32.mrb[0].mxu0
        %v1952 = vadd.f32 0.0, %v1951
        %v1953 = vpop.f32.mrb[0].mxu0
        %v1954 = vadd.f32 0.0, %v1953
        %1955 = vmatprep.mubr.f32.mxu0 0.0
        %1956 = vmatmul.mubr.f32.gmra.mrb[0].mxu0 %v1877
        %v1957 = vpop.f32.mrb[0].mxu0
        %v1958 = vadd.f32 0.0, %v1957
        %v1959 = vpop.f32.mrb[0].mxu0
        %v1960 = vadd.f32 0.0, %v1959
        %1961 = vdwg.mxu0
        %v1962 = vadd.f32 %v1844, %v1952
        %v1963 = vadd.f32 %v1845, %v1954
        %v1964 = vadd.f32 %v1846, %v1958
        %v1965 = vadd.f32 %v1847, %v1960
        %v1966 = vld [vmem:[#allocation2 + $0x4] sm:$0xff]
        %v1967 = vld [vmem:[#allocation2 + $0xc] sm:$0x3]
        %s1968 = scalar_lea.vmem %s5, 704
        %v1969 = vld [vmem:[%s1968] sm:$0xff]
        %v1970 = vld [vmem:[%s1968 + $0x8] sm:$0xff]
        %v1971 = vld [vmem:[%s1968 + $0x10] sm:$0xff]
        %v1972 = vld [vmem:[%s1968 + $0x18] sm:$0xff]
        %v1973 = vld [vmem:[%s1968 + $0x20] sm:$0xff]
        %v1974 = vld [vmem:[%s1968 + $0x28] sm:$0xff]
        %v1975 = vld [vmem:[%s1968 + $0x30] sm:$0xff]
        %v1976 = vld [vmem:[%s1968 + $0x38] sm:$0xff]
        %v1977 = vld [vmem:[%s1968 + $0x40] sm:$0xff]
        %v1978 = vld [vmem:[%s1968 + $0x48] sm:$0xff]
        %v1979 = vld [vmem:[%s1968 + $0x50] sm:$0xff]
        %v1980 = vld [vmem:[%s1968 + $0x58] sm:$0xff]
        %v1981 = vld [vmem:[%s1968 + $0x60] sm:$0xff]
        %v1982 = vld [vmem:[%s1968 + $0x68] sm:$0xff]
        %v1983 = vld [vmem:[%s1968 + $0x70] sm:$0xff]
        %v1984 = vld [vmem:[%s1968 + $0x78] sm:$0xff]
        %v1985 = vld [vmem:[%s1968 + $0x80] sm:$0xff]
        %v1986 = vld [vmem:[%s1968 + $0x88] sm:$0xff]
        %v1987 = vld [vmem:[%s1968 + $0x90] sm:$0xff]
        %v1988 = vld [vmem:[%s1968 + $0x98] sm:$0xff]
        %v1989 = vld [vmem:[%s1968 + $0xa0] sm:$0xf]
        %v1990 = vld [vmem:[%s1968 + $0xa8] sm:$0xf]
        %v1992 = vsel %vm1499, %v1966, 0
        %v1995 = vsel %vm1499, %v1967, 0
        %v1998 = vsel %vm1123, %v1989, 0
        %v2001 = vsel %vm1123, %v1990, 0
        %2003 = vmatprep.subr.mxu0 %v1970
        %2004 = vmatpush1.msra.mxu0 %v1969
        %2005 = vmatprep.subr.mxu0 %v1972
        %2006 = vmatpush1.msra.mxu0 %v1971
        %2007 = vmatprep.subr.mxu0 %v1974
        %2008 = vmatpush1.msra.mxu0 %v1973
        %2009 = vmatprep.subr.mxu0 %v1976
        %2010 = vmatpush1.msra.mxu0 %v1975
        %2011 = vmatprep.subr.mxu0 %v1978
        %2012 = vmatpush1.msra.mxu0 %v1977
        %2013 = vmatprep.subr.mxu0 %v1980
        %2014 = vmatpush1.msra.mxu0 %v1979
        %2015 = vmatprep.subr.mxu0 %v1982
        %2016 = vmatpush1.msra.mxu0 %v1981
        %2017 = vmatprep.subr.mxu0 %v1984
        %2018 = vmatpush1.msra.mxu0 %v1983
        %2019 = vmatprep.subr.mxu0 %v1986
        %2020 = vmatpush1.msra.mxu0 %v1985
        %2021 = vmatprep.subr.mxu0 %v1988
        %2022 = vmatpush1.msra.mxu0 %v1987
        %2023 = vmatprep.subr.mxu0 %v2001
        %2024 = vmatpush1.msra.mxu0 %v1998
        %2025 = vmatprep.subr.mxu0 0.0
        %2026 = vmatpush1.msra.mxu0 0.0
        %2027 = vmatprep.subr.mxu0 0.0
        %2028 = vmatpush1.msra.mxu0 0.0
        %2029 = vmatprep.subr.mxu0 0.0
        %2030 = vmatpush1.msra.mxu0 0.0
        %2031 = vmatprep.subr.mxu0 0.0
        %2032 = vmatpush1.msra.mxu0 0.0
        %2033 = vmatprep.subr.mxu0 0.0
        %2034 = vmatpush1.msra.mxu0 0.0
        %2035 = vmatprep.subr.mxu0 0.0
        %2036 = vmatpush1.msra.mxu0 0.0
        %2037 = vmatprep.subr.mxu0 0.0
        %2038 = vmatpush1.msra.mxu0 0.0
        %2039 = vmatprep.subr.mxu0 0.0
        %2040 = vmatpush1.msra.mxu0 0.0
        %2041 = vmatprep.subr.mxu0 0.0
        %2042 = vmatpush1.msra.mxu0 0.0
        %2043 = vmatprep.subr.mxu0 0.0
        %2044 = vmatpush1.msra.mxu0 0.0
        %2045 = vmatprep.subr.mxu0 0.0
        %2046 = vmatpush1.msra.mxu0 0.0
        %2047 = vmatprep.subr.mxu0 0.0
        %2048 = vmatpush1.msra.mxu0 0.0
        %2049 = vmatprep.subr.mxu0 0.0
        %2050 = vmatpush1.msra.mxu0 0.0
        %2051 = vmatprep.subr.mxu0 0.0
        %2052 = vmatpush1.msra.mxu0 0.0
        %2053 = vmatprep.subr.mxu0 0.0
        %2054 = vmatpush1.msra.mxu0 0.0
        %2055 = vmatprep.subr.mxu0 0.0
        %2056 = vmatpush1.msra.mxu0 0.0
        %2057 = vmatprep.subr.mxu0 0.0
        %2058 = vmatpush1.msra.mxu0 0.0
        %2059 = vmatprep.subr.mxu0 0.0
        %2060 = vmatpush1.msra.mxu0 0.0
        %2061 = vmatprep.subr.mxu0 0.0
        %2062 = vmatpush1.msra.mxu0 0.0
        %2063 = vmatprep.subr.mxu0 0.0
        %2064 = vmatpush1.msra.mxu0 0.0
        %2065 = vmatprep.subr.mxu0 0.0
        %2066 = vmatpush1.msra.mxu0 0.0
        %2067 = vmatprep.mubr.f32.mxu0 0.0
        %2068 = vmatmul.mubr.f32.gmra.mrb[0].mxu0 %v1992
        %v2069 = vpop.f32.mrb[0].mxu0
        %v2070 = vadd.f32 0.0, %v2069
        %v2071 = vpop.f32.mrb[0].mxu0
        %v2072 = vadd.f32 0.0, %v2071
        %2073 = vmatprep.mubr.f32.mxu0 0.0
        %2074 = vmatmul.mubr.f32.gmra.mrb[0].mxu0 %v1995
        %v2075 = vpop.f32.mrb[0].mxu0
        %v2076 = vadd.f32 0.0, %v2075
        %v2077 = vpop.f32.mrb[0].mxu0
        %v2078 = vadd.f32 0.0, %v2077
        %2079 = vdwg.mxu0
        %v2080 = vadd.f32 %v1962, %v2070
        %v2081 = vadd.f32 %v1963, %v2072
        %v2082 = vadd.f32 %v1964, %v2076
        %v2083 = vadd.f32 %v1965, %v2078
        %v2084 = vld [vmem:[%s6] sm:$0x3]
        %v2086 = vlaneseq
        %v2087 = vshrl.u32 %v2086, 7
        %v2088 = vsub.s32 0, %v2087
        %v2089 = vrot.slane %v2084, %v2088
        %v2090 = vlaneseq
        %v2091 = vshrl.u32 %v2090, 7
        %v2092 = vsub.s32 1, %v2091
        %v2093 = vrot.slane %v2084, %v2092
        %v2096 = vadd.f32 %v2080, %v2089
        %v2097 = vadd.f32 %v2081, %v2093
        %v2098 = vadd.f32 %v2082, %v2089
        %v2099 = vadd.f32 %v2083, %v2093
        %v2100 = vld [vmem:[%s7] sm:$0x1f]
        %vm2101 = vcmask 80896
        %v2103 = vsel %vm2101, %v2100, 0
        %vm2105 = vcmask 1041408
        %v2107 = vsel %vm2105, %v2098, 0
        %v2110 = vsel %vm2105, %v2099, 0
        %2112 = vmatprep.subr.mxu0 %v2097
        %2113 = vmatpush1.msra.mxu0 %v2096
        %2114 = vmatprep.subr.mxu0 %v2110
        %2115 = vmatpush1.msra.mxu0 %v2107
        %2116 = vmatprep.subr.mxu0 0.0
        %2117 = vmatpush1.msra.mxu0 0.0
        %2118 = vmatprep.subr.mxu0 0.0
        %2119 = vmatpush1.msra.mxu0 0.0
        %2120 = vmatprep.subr.mxu0 0.0
        %2121 = vmatpush1.msra.mxu0 0.0
        %2122 = vmatprep.subr.mxu0 0.0
        %2123 = vmatpush1.msra.mxu0 0.0
        %2124 = vmatprep.subr.mxu0 0.0
        %2125 = vmatpush1.msra.mxu0 0.0
        %2126 = vmatprep.subr.mxu0 0.0
        %2127 = vmatpush1.msra.mxu0 0.0
        %2128 = vmatprep.subr.mxu0 0.0
        %2129 = vmatpush1.msra.mxu0 0.0
        %2130 = vmatprep.subr.mxu0 0.0
        %2131 = vmatpush1.msra.mxu0 0.0
        %2132 = vmatprep.subr.mxu0 0.0
        %2133 = vmatpush1.msra.mxu0 0.0
        %2134 = vmatprep.subr.mxu0 0.0
        %2135 = vmatpush1.msra.mxu0 0.0
        %2136 = vmatprep.subr.mxu0 0.0
        %2137 = vmatpush1.msra.mxu0 0.0
        %2138 = vmatprep.subr.mxu0 0.0
        %2139 = vmatpush1.msra.mxu0 0.0
        %2140 = vmatprep.subr.mxu0 0.0
        %2141 = vmatpush1.msra.mxu0 0.0
        %2142 = vmatprep.subr.mxu0 0.0
        %2143 = vmatpush1.msra.mxu0 0.0
        %2144 = vmatprep.subr.mxu0 0.0
        %2145 = vmatpush1.msra.mxu0 0.0
        %2146 = vmatprep.subr.mxu0 0.0
        %2147 = vmatpush1.msra.mxu0 0.0
        %2148 = vmatprep.subr.mxu0 0.0
        %2149 = vmatpush1.msra.mxu0 0.0
        %2150 = vmatprep.subr.mxu0 0.0
        %2151 = vmatpush1.msra.mxu0 0.0
        %2152 = vmatprep.subr.mxu0 0.0
        %2153 = vmatpush1.msra.mxu0 0.0
        %2154 = vmatprep.subr.mxu0 0.0
        %2155 = vmatpush1.msra.mxu0 0.0
        %2156 = vmatprep.subr.mxu0 0.0
        %2157 = vmatpush1.msra.mxu0 0.0
        %2158 = vmatprep.subr.mxu0 0.0
        %2159 = vmatpush1.msra.mxu0 0.0
        %2160 = vmatprep.subr.mxu0 0.0
        %2161 = vmatpush1.msra.mxu0 0.0
        %2162 = vmatprep.subr.mxu0 0.0
        %2163 = vmatpush1.msra.mxu0 0.0
        %2164 = vmatprep.subr.mxu0 0.0
        %2165 = vmatpush1.msra.mxu0 0.0
        %2166 = vmatprep.subr.mxu0 0.0
        %2167 = vmatpush1.msra.mxu0 0.0
        %2168 = vmatprep.subr.mxu0 0.0
        %2169 = vmatpush1.msra.mxu0 0.0
        %2170 = vmatprep.subr.mxu0 0.0
        %2171 = vmatpush1.msra.mxu0 0.0
        %2172 = vmatprep.subr.mxu0 0.0
        %2173 = vmatpush1.msra.mxu0 0.0
        %2174 = vmatprep.subr.mxu0 0.0
        %2175 = vmatpush1.msra.mxu0 0.0
        %2176 = vmatprep.mubr.f32.mxu0 0.0
        %2177 = vmatmul.mubr.f32.gmra.mrb[0].mxu0 %v2103
        %v2178 = vpop.f32.mrb[0].mxu0
        %v2179 = vadd.f32 0.0, %v2178
        %v2180 = vpop.f32.mrb[0].mxu0
        %v2181 = vadd.f32 0.0, %v2180
        %2182 = vdwg.mxu0
        %s2183 = scalar_lea.vmem %s7, 8
        %v2184 = vld [vmem:[%s2183] sm:$0x1f]
        %v2186 = vsel %vm2101, %v2184, 0
        %2188 = vmatprep.subr.mxu0 %v2097
        %2189 = vmatpush1.msra.mxu0 %v2096
        %2190 = vmatprep.subr.mxu0 %v2110
        %2191 = vmatpush1.msra.mxu0 %v2107
        %2192 = vmatprep.subr.mxu0 0.0
        %2193 = vmatpush1.msra.mxu0 0.0
        %2194 = vmatprep.subr.mxu0 0.0
        %2195 = vmatpush1.msra.mxu0 0.0
        %2196 = vmatprep.subr.mxu0 0.0
        %2197 = vmatpush1.msra.mxu0 0.0
        %2198 = vmatprep.subr.mxu0 0.0
        %2199 = vmatpush1.msra.mxu0 0.0
        %2200 = vmatprep.subr.mxu0 0.0
        %2201 = vmatpush1.msra.mxu0 0.0
        %2202 = vmatprep.subr.mxu0 0.0
        %2203 = vmatpush1.msra.mxu0 0.0
        %2204 = vmatprep.subr.mxu0 0.0
        %2205 = vmatpush1.msra.mxu0 0.0
        %2206 = vmatprep.subr.mxu0 0.0
        %2207 = vmatpush1.msra.mxu0 0.0
        %2208 = vmatprep.subr.mxu0 0.0
        %2209 = vmatpush1.msra.mxu0 0.0
        %2210 = vmatprep.subr.mxu0 0.0
        %2211 = vmatpush1.msra.mxu0 0.0
        %2212 = vmatprep.subr.mxu0 0.0
        %2213 = vmatpush1.msra.mxu0 0.0
        %2214 = vmatprep.subr.mxu0 0.0
        %2215 = vmatpush1.msra.mxu0 0.0
        %2216 = vmatprep.subr.mxu0 0.0
        %2217 = vmatpush1.msra.mxu0 0.0
        %2218 = vmatprep.subr.mxu0 0.0
        %2219 = vmatpush1.msra.mxu0 0.0
        %2220 = vmatprep.subr.mxu0 0.0
        %2221 = vmatpush1.msra.mxu0 0.0
        %2222 = vmatprep.subr.mxu0 0.0
        %2223 = vmatpush1.msra.mxu0 0.0
        %2224 = vmatprep.subr.mxu0 0.0
        %2225 = vmatpush1.msra.mxu0 0.0
        %2226 = vmatprep.subr.mxu0 0.0
        %2227 = vmatpush1.msra.mxu0 0.0
        %2228 = vmatprep.subr.mxu0 0.0
        %2229 = vmatpush1.msra.mxu0 0.0
        %2230 = vmatprep.subr.mxu0 0.0
        %2231 = vmatpush1.msra.mxu0 0.0
        %2232 = vmatprep.subr.mxu0 0.0
        %2233 = vmatpush1.msra.mxu0 0.0
        %2234 = vmatprep.subr.mxu0 0.0
        %2235 = vmatpush1.msra.mxu0 0.0
        %2236 = vmatprep.subr.mxu0 0.0
        %2237 = vmatpush1.msra.mxu0 0.0
        %2238 = vmatprep.subr.mxu0 0.0
        %2239 = vmatpush1.msra.mxu0 0.0
        %2240 = vmatprep.subr.mxu0 0.0
        %2241 = vmatpush1.msra.mxu0 0.0
        %2242 = vmatprep.subr.mxu0 0.0
        %2243 = vmatpush1.msra.mxu0 0.0
        %2244 = vmatprep.subr.mxu0 0.0
        %2245 = vmatpush1.msra.mxu0 0.0
        %2246 = vmatprep.subr.mxu0 0.0
        %2247 = vmatpush1.msra.mxu0 0.0
        %2248 = vmatprep.subr.mxu0 0.0
        %2249 = vmatpush1.msra.mxu0 0.0
        %2250 = vmatprep.subr.mxu0 0.0
        %2251 = vmatpush1.msra.mxu0 0.0
        %2252 = vmatprep.mubr.f32.mxu0 0.0
        %2253 = vmatmul.mubr.f32.gmra.mrb[0].mxu0 %v2186
        %v2254 = vpop.f32.mrb[0].mxu0
        %v2255 = vadd.f32 0.0, %v2254
        %v2256 = vpop.f32.mrb[0].mxu0
        %v2257 = vadd.f32 0.0, %v2256
        %2258 = vdwg.mxu0
        %v2259 = vmax.f32 %v2179, %v2255
        %v2260 = vmax.f32 %v2181, %v2257
        %v2261 = vld [vmem:[%s8] sm:$0xff]
        %v2262 = vld [vmem:[%s8 + $0x8] sm:$0xff]
        %v2263 = vld [vmem:[%s8 + $0x10] sm:$0xff]
        %v2264 = vld [vmem:[%s8 + $0x18] sm:$0xff]
        %v2265 = vld [vmem:[%s8 + $0x20] sm:$0xff]
        %v2266 = vld [vmem:[%s8 + $0x28] sm:$0xff]
        %v2267 = vld [vmem:[%s8 + $0x30] sm:$0xff]
        %v2268 = vld [vmem:[%s8 + $0x38] sm:$0xff]
        %v2269 = vld [vmem:[%s8 + $0x40] sm:$0xff]
        %v2270 = vld [vmem:[%s8 + $0x48] sm:$0xff]
        %v2271 = vld [vmem:[%s8 + $0x50] sm:$0xff]
        %v2272 = vld [vmem:[%s8 + $0x58] sm:$0xff]
        %v2273 = vld [vmem:[%s8 + $0x60] sm:$0xff]
        %v2274 = vld [vmem:[%s8 + $0x68] sm:$0xff]
        %v2275 = vld [vmem:[%s8 + $0x70] sm:$0xff]
        %v2276 = vld [vmem:[%s8 + $0x78] sm:$0xff]
        %v2277 = vld [vmem:[%s8 + $0x80] sm:$0xff]
        %v2278 = vld [vmem:[%s8 + $0x88] sm:$0xff]
        %v2279 = vld [vmem:[%s8 + $0x90] sm:$0xff]
        %v2280 = vld [vmem:[%s8 + $0x98] sm:$0xff]
        %v2282 = vsel %vm517, %v2260, 0
        %2284 = vmatprep.subr.mxu0 0.0
        %2285 = vmatpush1.msra.mxu0 %v2261
        %2286 = vmatprep.subr.mxu0 0.0
        %2287 = vmatpush1.msra.mxu0 %v2262
        %2288 = vmatprep.subr.mxu0 0.0
        %2289 = vmatpush1.msra.mxu0 %v2263
        %2290 = vmatprep.subr.mxu0 0.0
        %2291 = vmatpush1.msra.mxu0 %v2264
        %2292 = vmatprep.subr.mxu0 0.0
        %2293 = vmatpush1.msra.mxu0 %v2265
        %2294 = vmatprep.subr.mxu0 0.0
        %2295 = vmatpush1.msra.mxu0 %v2266
        %2296 = vmatprep.subr.mxu0 0.0
        %2297 = vmatpush1.msra.mxu0 %v2267
        %2298 = vmatprep.subr.mxu0 0.0
        %2299 = vmatpush1.msra.mxu0 %v2268
        %2300 = vmatprep.subr.mxu0 0.0
        %2301 = vmatpush1.msra.mxu0 %v2269
        %2302 = vmatprep.subr.mxu0 0.0
        %2303 = vmatpush1.msra.mxu0 %v2270
        %2304 = vmatprep.subr.mxu0 0.0
        %2305 = vmatpush1.msra.mxu0 %v2271
        %2306 = vmatprep.subr.mxu0 0.0
        %2307 = vmatpush1.msra.mxu0 %v2272
        %2308 = vmatprep.subr.mxu0 0.0
        %2309 = vmatpush1.msra.mxu0 %v2273
        %2310 = vmatprep.subr.mxu0 0.0
        %2311 = vmatpush1.msra.mxu0 %v2274
        %2312 = vmatprep.subr.mxu0 0.0
        %2313 = vmatpush1.msra.mxu0 %v2275
        %2314 = vmatprep.subr.mxu0 0.0
        %2315 = vmatpush1.msra.mxu0 %v2276
        %2316 = vmatprep.subr.mxu0 0.0
        %2317 = vmatpush1.msra.mxu0 %v2277
        %2318 = vmatprep.subr.mxu0 0.0
        %2319 = vmatpush1.msra.mxu0 %v2278
        %2320 = vmatprep.subr.mxu0 0.0
        %2321 = vmatpush1.msra.mxu0 %v2279
        %2322 = vmatprep.subr.mxu0 0.0
        %2323 = vmatpush1.msra.mxu0 %v2280
        %2324 = vmatprep.subr.mxu0 0.0
        %2325 = vmatpush1.msra.mxu0 0.0
        %2326 = vmatprep.subr.mxu0 0.0
        %2327 = vmatpush1.msra.mxu0 0.0
        %2328 = vmatprep.subr.mxu0 0.0
        %2329 = vmatpush1.msra.mxu0 0.0
        %2330 = vmatprep.subr.mxu0 0.0
        %2331 = vmatpush1.msra.mxu0 0.0
        %2332 = vmatprep.subr.mxu0 0.0
        %2333 = vmatpush1.msra.mxu0 0.0
        %2334 = vmatprep.subr.mxu0 0.0
        %2335 = vmatpush1.msra.mxu0 0.0
        %2336 = vmatprep.subr.mxu0 0.0
        %2337 = vmatpush1.msra.mxu0 0.0
        %2338 = vmatprep.subr.mxu0 0.0
        %2339 = vmatpush1.msra.mxu0 0.0
        %2340 = vmatprep.subr.mxu0 0.0
        %2341 = vmatpush1.msra.mxu0 0.0
        %2342 = vmatprep.subr.mxu0 0.0
        %2343 = vmatpush1.msra.mxu0 0.0
        %2344 = vmatprep.subr.mxu0 0.0
        %2345 = vmatpush1.msra.mxu0 0.0
        %2346 = vmatprep.subr.mxu0 0.0
        %2347 = vmatpush1.msra.mxu0 0.0
        %2348 = vmatprep.mubr.f32.mxu0 %v2282
        %2349 = vmatmul.mubr.f32.gmra.mrb[0].mxu0 %v2259
        %v2350 = vpop.f32.mrb[0].mxu0
        %v2351 = vadd.f32 0.0, %v2350
        %v2352 = vpop.f32.mrb[0].mxu0
        %2353 = vdwg.mxu0
        %s2354 = scalar_lea.vmem %s8, 160
        %v2355 = vld [vmem:[%s2354] sm:$0xff]
        %v2356 = vld [vmem:[%s2354 + $0x8] sm:$0xff]
        %v2357 = vld [vmem:[%s2354 + $0x10] sm:$0xff]
        %v2358 = vld [vmem:[%s2354 + $0x18] sm:$0xff]
        %v2359 = vld [vmem:[%s2354 + $0x20] sm:$0xff]
        %v2360 = vld [vmem:[%s2354 + $0x28] sm:$0xff]
        %v2361 = vld [vmem:[%s2354 + $0x30] sm:$0xff]
        %v2362 = vld [vmem:[%s2354 + $0x38] sm:$0xff]
        %v2363 = vld [vmem:[%s2354 + $0x40] sm:$0xff]
        %v2364 = vld [vmem:[%s2354 + $0x48] sm:$0xff]
        %v2365 = vld [vmem:[%s2354 + $0x50] sm:$0xff]
        %v2366 = vld [vmem:[%s2354 + $0x58] sm:$0xff]
        %v2367 = vld [vmem:[%s2354 + $0x60] sm:$0xff]
        %v2368 = vld [vmem:[%s2354 + $0x68] sm:$0xff]
        %v2369 = vld [vmem:[%s2354 + $0x70] sm:$0xff]
        %v2370 = vld [vmem:[%s2354 + $0x78] sm:$0xff]
        %v2371 = vld [vmem:[%s2354 + $0x80] sm:$0xff]
        %v2372 = vld [vmem:[%s2354 + $0x88] sm:$0xff]
        %v2373 = vld [vmem:[%s2354 + $0x90] sm:$0xff]
        %v2374 = vld [vmem:[%s2354 + $0x98] sm:$0xff]
        %2375 = vmatprep.subr.mxu0 0.0
        %2376 = vmatpush1.msra.mxu0 %v2355
        %2377 = vmatprep.subr.mxu0 0.0
        %2378 = vmatpush1.msra.mxu0 %v2356
        %2379 = vmatprep.subr.mxu0 0.0
        %2380 = vmatpush1.msra.mxu0 %v2357
        %2381 = vmatprep.subr.mxu0 0.0
        %2382 = vmatpush1.msra.mxu0 %v2358
        %2383 = vmatprep.subr.mxu0 0.0
        %2384 = vmatpush1.msra.mxu0 %v2359
        %2385 = vmatprep.subr.mxu0 0.0
        %2386 = vmatpush1.msra.mxu0 %v2360
        %2387 = vmatprep.subr.mxu0 0.0
        %2388 = vmatpush1.msra.mxu0 %v2361
        %2389 = vmatprep.subr.mxu0 0.0
        %2390 = vmatpush1.msra.mxu0 %v2362
        %2391 = vmatprep.subr.mxu0 0.0
        %2392 = vmatpush1.msra.mxu0 %v2363
        %2393 = vmatprep.subr.mxu0 0.0
        %2394 = vmatpush1.msra.mxu0 %v2364
        %2395 = vmatprep.subr.mxu0 0.0
        %2396 = vmatpush1.msra.mxu0 %v2365
        %2397 = vmatprep.subr.mxu0 0.0
        %2398 = vmatpush1.msra.mxu0 %v2366
        %2399 = vmatprep.subr.mxu0 0.0
        %2400 = vmatpush1.msra.mxu0 %v2367
        %2401 = vmatprep.subr.mxu0 0.0
        %2402 = vmatpush1.msra.mxu0 %v2368
        %2403 = vmatprep.subr.mxu0 0.0
        %2404 = vmatpush1.msra.mxu0 %v2369
        %2405 = vmatprep.subr.mxu0 0.0
        %2406 = vmatpush1.msra.mxu0 %v2370
        %2407 = vmatprep.subr.mxu0 0.0
        %2408 = vmatpush1.msra.mxu0 %v2371
        %2409 = vmatprep.subr.mxu0 0.0
        %2410 = vmatpush1.msra.mxu0 %v2372
        %2411 = vmatprep.subr.mxu0 0.0
        %2412 = vmatpush1.msra.mxu0 %v2373
        %2413 = vmatprep.subr.mxu0 0.0
        %2414 = vmatpush1.msra.mxu0 %v2374
        %2415 = vmatprep.subr.mxu0 0.0
        %2416 = vmatpush1.msra.mxu0 0.0
        %2417 = vmatprep.subr.mxu0 0.0
        %2418 = vmatpush1.msra.mxu0 0.0
        %2419 = vmatprep.subr.mxu0 0.0
        %2420 = vmatpush1.msra.mxu0 0.0
        %2421 = vmatprep.subr.mxu0 0.0
        %2422 = vmatpush1.msra.mxu0 0.0
        %2423 = vmatprep.subr.mxu0 0.0
        %2424 = vmatpush1.msra.mxu0 0.0
        %2425 = vmatprep.subr.mxu0 0.0
        %2426 = vmatpush1.msra.mxu0 0.0
        %2427 = vmatprep.subr.mxu0 0.0
        %2428 = vmatpush1.msra.mxu0 0.0
        %2429 = vmatprep.subr.mxu0 0.0
        %2430 = vmatpush1.msra.mxu0 0.0
        %2431 = vmatprep.subr.mxu0 0.0
        %2432 = vmatpush1.msra.mxu0 0.0
        %2433 = vmatprep.subr.mxu0 0.0
        %2434 = vmatpush1.msra.mxu0 0.0
        %2435 = vmatprep.subr.mxu0 0.0
        %2436 = vmatpush1.msra.mxu0 0.0
        %2437 = vmatprep.subr.mxu0 0.0
        %2438 = vmatpush1.msra.mxu0 0.0
        %2439 = vmatprep.mubr.f32.mxu0 %v2282
        %2440 = vmatmul.mubr.f32.gmra.mrb[0].mxu0 %v2259
        %v2441 = vpop.f32.mrb[0].mxu0
        %v2442 = vadd.f32 0.0, %v2441
        %v2443 = vpop.f32.mrb[0].mxu0
        %2444 = vdwg.mxu0
        %v2445 = vmax.f32 %v2351, %v2442
        %vm2446 = vcmask 651264
        %2447 = vst.msk [vmem:[#allocation3] sm:$0x1f] %vm2446, %v2445
        %v2448 = vld [vmem:[#allocation3] sm:$0x1]
        %v2449 = vld [vmem:[%s9] sm:$0xff]
        %v2450 = vld [vmem:[%s9 + $0x8] sm:$0xff]
        %v2451 = vld [vmem:[%s9 + $0x10] sm:$0xff]
        %v2452 = vld [vmem:[%s9 + $0x18] sm:$0xff]
        %v2453 = vld [vmem:[%s9 + $0x20] sm:$0xff]
        %v2454 = vld [vmem:[%s9 + $0x28] sm:$0xff]
        %v2455 = vld [vmem:[%s9 + $0x30] sm:$0xff]
        %v2456 = vld [vmem:[%s9 + $0x38] sm:$0xff]
        %v2457 = vld [vmem:[%s9 + $0x40] sm:$0xff]
        %v2458 = vld [vmem:[%s9 + $0x48] sm:$0xff]
        %v2459 = vld [vmem:[#allocation3 + $0x1] sm:$0x1]
        %s2460 = scalar_lea.vmem %s9, 80
        %v2461 = vld [vmem:[%s2460] sm:$0xff]
        %v2462 = vld [vmem:[%s2460 + $0x8] sm:$0xff]
        %v2463 = vld [vmem:[%s2460 + $0x10] sm:$0xff]
        %v2464 = vld [vmem:[%s2460 + $0x18] sm:$0xff]
        %v2465 = vld [vmem:[%s2460 + $0x20] sm:$0xff]
        %v2466 = vld [vmem:[%s2460 + $0x28] sm:$0xff]
        %v2467 = vld [vmem:[%s2460 + $0x30] sm:$0xff]
        %v2468 = vld [vmem:[%s2460 + $0x38] sm:$0xff]
        %v2469 = vld [vmem:[%s2460 + $0x40] sm:$0xff]
        %v2470 = vld [vmem:[%s2460 + $0x48] sm:$0xff]
        %vm2471 = vcmask 654336
        %v2473 = vsel %vm2471, %v2459, 0
        %2475 = vmatprep.subr.mxu0 0.0
        %2476 = vmatpush1.msra.mxu0 %v2461
        %2477 = vmatprep.subr.mxu0 0.0
        %2478 = vmatpush1.msra.mxu0 %v2462
        %2479 = vmatprep.subr.mxu0 0.0
        %2480 = vmatpush1.msra.mxu0 %v2463
        %2481 = vmatprep.subr.mxu0 0.0
        %2482 = vmatpush1.msra.mxu0 %v2464
        %2483 = vmatprep.subr.mxu0 0.0
        %2484 = vmatpush1.msra.mxu0 %v2465
        %2485 = vmatprep.subr.mxu0 0.0
        %2486 = vmatpush1.msra.mxu0 %v2466
        %2487 = vmatprep.subr.mxu0 0.0
        %2488 = vmatpush1.msra.mxu0 %v2467
        %2489 = vmatprep.subr.mxu0 0.0
        %2490 = vmatpush1.msra.mxu0 %v2468
        %2491 = vmatprep.subr.mxu0 0.0
        %2492 = vmatpush1.msra.mxu0 %v2469
        %2493 = vmatprep.subr.mxu0 0.0
        %2494 = vmatpush1.msra.mxu0 %v2470
        %2495 = vmatprep.subr.mxu0 0.0
        %2496 = vmatpush1.msra.mxu0 0.0
        %2497 = vmatprep.subr.mxu0 0.0
        %2498 = vmatpush1.msra.mxu0 0.0
        %2499 = vmatprep.subr.mxu0 0.0
        %2500 = vmatpush1.msra.mxu0 0.0
        %2501 = vmatprep.subr.mxu0 0.0
        %2502 = vmatpush1.msra.mxu0 0.0
        %2503 = vmatprep.subr.mxu0 0.0
        %2504 = vmatpush1.msra.mxu0 0.0
        %2505 = vmatprep.subr.mxu0 0.0
        %2506 = vmatpush1.msra.mxu0 0.0
        %2507 = vmatprep.subr.mxu0 0.0
        %2508 = vmatpush1.msra.mxu0 0.0
        %2509 = vmatprep.subr.mxu0 0.0
        %2510 = vmatpush1.msra.mxu0 0.0
        %2511 = vmatprep.subr.mxu0 0.0
        %2512 = vmatpush1.msra.mxu0 0.0
        %2513 = vmatprep.subr.mxu0 0.0
        %2514 = vmatpush1.msra.mxu0 0.0
        %2515 = vmatprep.subr.mxu0 0.0
        %2516 = vmatpush1.msra.mxu0 0.0
        %2517 = vmatprep.subr.mxu0 0.0
        %2518 = vmatpush1.msra.mxu0 0.0
        %2519 = vmatprep.subr.mxu0 0.0
        %2520 = vmatpush1.msra.mxu0 0.0
        %2521 = vmatprep.subr.mxu0 0.0
        %2522 = vmatpush1.msra.mxu0 0.0
        %2523 = vmatprep.subr.mxu0 0.0
        %2524 = vmatpush1.msra.mxu0 0.0
        %2525 = vmatprep.subr.mxu0 0.0
        %2526 = vmatpush1.msra.mxu0 0.0
        %2527 = vmatprep.subr.mxu0 0.0
        %2528 = vmatpush1.msra.mxu0 0.0
        %2529 = vmatprep.subr.mxu0 0.0
        %2530 = vmatpush1.msra.mxu0 0.0
        %2531 = vmatprep.subr.mxu0 0.0
        %2532 = vmatpush1.msra.mxu0 0.0
        %2533 = vmatprep.subr.mxu0 0.0
        %2534 = vmatpush1.msra.mxu0 0.0
        %2535 = vmatprep.subr.mxu0 0.0
        %2536 = vmatpush1.msra.mxu0 0.0
        %2537 = vmatprep.subr.mxu0 0.0
        %2538 = vmatpush1.msra.mxu0 0.0
        %2539 = vmatprep.mubr.f32.mxu0 0.0
        %2540 = vmatmul.mubr.f32.gmra.mrb[0].mxu0 %v2473
        %v2541 = vpop.f32.mrb[0].mxu0
        %v2542 = vadd.f32 0.0, %v2541
        %v2543 = vpop.f32.mrb[0].mxu0
        %2544 = vdwg.mxu0
        %v2546 = vsel %vm2471, %v2448, 0
        %2548 = vmatprep.subr.mxu0 0.0
        %2549 = vmatpush1.msra.mxu0 %v2449
        %2550 = vmatprep.subr.mxu0 0.0
        %2551 = vmatpush1.msra.mxu0 %v2450
        %2552 = vmatprep.subr.mxu0 0.0
        %2553 = vmatpush1.msra.mxu0 %v2451
        %2554 = vmatprep.subr.mxu0 0.0
        %2555 = vmatpush1.msra.mxu0 %v2452
        %2556 = vmatprep.subr.mxu0 0.0
        %2557 = vmatpush1.msra.mxu0 %v2453
        %2558 = vmatprep.subr.mxu0 0.0
        %2559 = vmatpush1.msra.mxu0 %v2454
        %2560 = vmatprep.subr.mxu0 0.0
        %2561 = vmatpush1.msra.mxu0 %v2455
        %2562 = vmatprep.subr.mxu0 0.0
        %2563 = vmatpush1.msra.mxu0 %v2456
        %2564 = vmatprep.subr.mxu0 0.0
        %2565 = vmatpush1.msra.mxu0 %v2457
        %2566 = vmatprep.subr.mxu0 0.0
        %2567 = vmatpush1.msra.mxu0 %v2458
        %2568 = vmatprep.subr.mxu0 0.0
        %2569 = vmatpush1.msra.mxu0 0.0
        %2570 = vmatprep.subr.mxu0 0.0
        %2571 = vmatpush1.msra.mxu0 0.0
        %2572 = vmatprep.subr.mxu0 0.0
        %2573 = vmatpush1.msra.mxu0 0.0
        %2574 = vmatprep.subr.mxu0 0.0
        %2575 = vmatpush1.msra.mxu0 0.0
        %2576 = vmatprep.subr.mxu0 0.0
        %2577 = vmatpush1.msra.mxu0 0.0
        %2578 = vmatprep.subr.mxu0 0.0
        %2579 = vmatpush1.msra.mxu0 0.0
        %2580 = vmatprep.subr.mxu0 0.0
        %2581 = vmatpush1.msra.mxu0 0.0
        %2582 = vmatprep.subr.mxu0 0.0
        %2583 = vmatpush1.msra.mxu0 0.0
        %2584 = vmatprep.subr.mxu0 0.0
        %2585 = vmatpush1.msra.mxu0 0.0
        %2586 = vmatprep.subr.mxu0 0.0
        %2587 = vmatpush1.msra.mxu0 0.0
        %2588 = vmatprep.subr.mxu0 0.0
        %2589 = vmatpush1.msra.mxu0 0.0
        %2590 = vmatprep.subr.mxu0 0.0
        %2591 = vmatpush1.msra.mxu0 0.0
        %2592 = vmatprep.subr.mxu0 0.0
        %2593 = vmatpush1.msra.mxu0 0.0
        %2594 = vmatprep.subr.mxu0 0.0
        %2595 = vmatpush1.msra.mxu0 0.0
        %2596 = vmatprep.subr.mxu0 0.0
        %2597 = vmatpush1.msra.mxu0 0.0
        %2598 = vmatprep.subr.mxu0 0.0
        %2599 = vmatpush1.msra.mxu0 0.0
        %2600 = vmatprep.subr.mxu0 0.0
        %2601 = vmatpush1.msra.mxu0 0.0
        %2602 = vmatprep.subr.mxu0 0.0
        %2603 = vmatpush1.msra.mxu0 0.0
        %2604 = vmatprep.subr.mxu0 0.0
        %2605 = vmatpush1.msra.mxu0 0.0
        %2606 = vmatprep.subr.mxu0 0.0
        %2607 = vmatpush1.msra.mxu0 0.0
        %2608 = vmatprep.subr.mxu0 0.0
        %2609 = vmatpush1.msra.mxu0 0.0
        %2610 = vmatprep.subr.mxu0 0.0
        %2611 = vmatpush1.msra.mxu0 0.0
        %2612 = vmatprep.mubr.f32.mxu0 0.0
        %2613 = vmatmul.mubr.f32.gmra.mrb[0].mxu0 %v2546
        %v2614 = vpop.f32.mrb[0].mxu0
        %v2615 = vadd.f32 %v2542, %v2614
        %v2616 = vpop.f32.mrb[0].mxu0
        %2617 = vdwg.mxu0
        %v2618 = vld [vmem:[#allocation3 + $0x2] sm:$0x1]
        %s2619 = scalar_lea.vmem %s9, 160
        %v2620 = vld [vmem:[%s2619] sm:$0xff]
        %v2621 = vld [vmem:[%s2619 + $0x8] sm:$0xff]
        %v2622 = vld [vmem:[%s2619 + $0x10] sm:$0xff]
        %v2623 = vld [vmem:[%s2619 + $0x18] sm:$0xff]
        %v2624 = vld [vmem:[%s2619 + $0x20] sm:$0xff]
        %v2625 = vld [vmem:[%s2619 + $0x28] sm:$0xff]
        %v2626 = vld [vmem:[%s2619 + $0x30] sm:$0xff]
        %v2627 = vld [vmem:[%s2619 + $0x38] sm:$0xff]
        %v2628 = vld [vmem:[%s2619 + $0x40] sm:$0xff]
        %v2629 = vld [vmem:[%s2619 + $0x48] sm:$0xff]
        %v2631 = vsel %vm2471, %v2618, 0
        %2633 = vmatprep.subr.mxu0 0.0
        %2634 = vmatpush1.msra.mxu0 %v2620
        %2635 = vmatprep.subr.mxu0 0.0
        %2636 = vmatpush1.msra.mxu0 %v2621
        %2637 = vmatprep.subr.mxu0 0.0
        %2638 = vmatpush1.msra.mxu0 %v2622
        %2639 = vmatprep.subr.mxu0 0.0
        %2640 = vmatpush1.msra.mxu0 %v2623
        %2641 = vmatprep.subr.mxu0 0.0
        %2642 = vmatpush1.msra.mxu0 %v2624
        %2643 = vmatprep.subr.mxu0 0.0
        %2644 = vmatpush1.msra.mxu0 %v2625
        %2645 = vmatprep.subr.mxu0 0.0
        %2646 = vmatpush1.msra.mxu0 %v2626
        %2647 = vmatprep.subr.mxu0 0.0
        %2648 = vmatpush1.msra.mxu0 %v2627
        %2649 = vmatprep.subr.mxu0 0.0
        %2650 = vmatpush1.msra.mxu0 %v2628
        %2651 = vmatprep.subr.mxu0 0.0
        %2652 = vmatpush1.msra.mxu0 %v2629
        %2653 = vmatprep.subr.mxu0 0.0
        %2654 = vmatpush1.msra.mxu0 0.0
        %2655 = vmatprep.subr.mxu0 0.0
        %2656 = vmatpush1.msra.mxu0 0.0
        %2657 = vmatprep.subr.mxu0 0.0
        %2658 = vmatpush1.msra.mxu0 0.0
        %2659 = vmatprep.subr.mxu0 0.0
        %2660 = vmatpush1.msra.mxu0 0.0
        %2661 = vmatprep.subr.mxu0 0.0
        %2662 = vmatpush1.msra.mxu0 0.0
        %2663 = vmatprep.subr.mxu0 0.0
        %2664 = vmatpush1.msra.mxu0 0.0
        %2665 = vmatprep.subr.mxu0 0.0
        %2666 = vmatpush1.msra.mxu0 0.0
        %2667 = vmatprep.subr.mxu0 0.0
        %2668 = vmatpush1.msra.mxu0 0.0
        %2669 = vmatprep.subr.mxu0 0.0
        %2670 = vmatpush1.msra.mxu0 0.0
        %2671 = vmatprep.subr.mxu0 0.0
        %2672 = vmatpush1.msra.mxu0 0.0
        %2673 = vmatprep.subr.mxu0 0.0
        %2674 = vmatpush1.msra.mxu0 0.0
        %2675 = vmatprep.subr.mxu0 0.0
        %2676 = vmatpush1.msra.mxu0 0.0
        %2677 = vmatprep.subr.mxu0 0.0
        %2678 = vmatpush1.msra.mxu0 0.0
        %2679 = vmatprep.subr.mxu0 0.0
        %2680 = vmatpush1.msra.mxu0 0.0
        %2681 = vmatprep.subr.mxu0 0.0
        %2682 = vmatpush1.msra.mxu0 0.0
        %2683 = vmatprep.subr.mxu0 0.0
        %2684 = vmatpush1.msra.mxu0 0.0
        %2685 = vmatprep.subr.mxu0 0.0
        %2686 = vmatpush1.msra.mxu0 0.0
        %2687 = vmatprep.subr.mxu0 0.0
        %2688 = vmatpush1.msra.mxu0 0.0
        %2689 = vmatprep.subr.mxu0 0.0
        %2690 = vmatpush1.msra.mxu0 0.0
        %2691 = vmatprep.subr.mxu0 0.0
        %2692 = vmatpush1.msra.mxu0 0.0
        %2693 = vmatprep.subr.mxu0 0.0
        %2694 = vmatpush1.msra.mxu0 0.0
        %2695 = vmatprep.subr.mxu0 0.0
        %2696 = vmatpush1.msra.mxu0 0.0
        %2697 = vmatprep.mubr.f32.mxu0 0.0
        %2698 = vmatmul.mubr.f32.gmra.mrb[0].mxu0 %v2631
        %v2699 = vpop.f32.mrb[0].mxu0
        %v2700 = vadd.f32 0.0, %v2699
        %v2701 = vpop.f32.mrb[0].mxu0
        %2702 = vdwg.mxu0
        %v2703 = vadd.f32 %v2615, %v2700
        %v2704 = vld [vmem:[#allocation3 + $0x3] sm:$0x1]
        %s2705 = scalar_lea.vmem %s9, 240
        %v2706 = vld [vmem:[%s2705] sm:$0xff]
        %v2707 = vld [vmem:[%s2705 + $0x8] sm:$0xff]
        %v2708 = vld [vmem:[%s2705 + $0x10] sm:$0xff]
        %v2709 = vld [vmem:[%s2705 + $0x18] sm:$0xff]
        %v2710 = vld [vmem:[%s2705 + $0x20] sm:$0xff]
        %v2711 = vld [vmem:[%s2705 + $0x28] sm:$0xff]
        %v2712 = vld [vmem:[%s2705 + $0x30] sm:$0xff]
        %v2713 = vld [vmem:[%s2705 + $0x38] sm:$0xff]
        %v2714 = vld [vmem:[%s2705 + $0x40] sm:$0xff]
        %v2715 = vld [vmem:[%s2705 + $0x48] sm:$0xff]
        %v2717 = vsel %vm2471, %v2704, 0
        %2719 = vmatprep.subr.mxu0 0.0
        %2720 = vmatpush1.msra.mxu0 %v2706
        %2721 = vmatprep.subr.mxu0 0.0
        %2722 = vmatpush1.msra.mxu0 %v2707
        %2723 = vmatprep.subr.mxu0 0.0
        %2724 = vmatpush1.msra.mxu0 %v2708
        %2725 = vmatprep.subr.mxu0 0.0
        %2726 = vmatpush1.msra.mxu0 %v2709
        %2727 = vmatprep.subr.mxu0 0.0
        %2728 = vmatpush1.msra.mxu0 %v2710
        %2729 = vmatprep.subr.mxu0 0.0
        %2730 = vmatpush1.msra.mxu0 %v2711
        %2731 = vmatprep.subr.mxu0 0.0
        %2732 = vmatpush1.msra.mxu0 %v2712
        %2733 = vmatprep.subr.mxu0 0.0
        %2734 = vmatpush1.msra.mxu0 %v2713
        %2735 = vmatprep.subr.mxu0 0.0
        %2736 = vmatpush1.msra.mxu0 %v2714
        %2737 = vmatprep.subr.mxu0 0.0
        %2738 = vmatpush1.msra.mxu0 %v2715
        %2739 = vmatprep.subr.mxu0 0.0
        %2740 = vmatpush1.msra.mxu0 0.0
        %2741 = vmatprep.subr.mxu0 0.0
        %2742 = vmatpush1.msra.mxu0 0.0
        %2743 = vmatprep.subr.mxu0 0.0
        %2744 = vmatpush1.msra.mxu0 0.0
        %2745 = vmatprep.subr.mxu0 0.0
        %2746 = vmatpush1.msra.mxu0 0.0
        %2747 = vmatprep.subr.mxu0 0.0
        %2748 = vmatpush1.msra.mxu0 0.0
        %2749 = vmatprep.subr.mxu0 0.0
        %2750 = vmatpush1.msra.mxu0 0.0
        %2751 = vmatprep.subr.mxu0 0.0
        %2752 = vmatpush1.msra.mxu0 0.0
        %2753 = vmatprep.subr.mxu0 0.0
        %2754 = vmatpush1.msra.mxu0 0.0
        %2755 = vmatprep.subr.mxu0 0.0
        %2756 = vmatpush1.msra.mxu0 0.0
        %2757 = vmatprep.subr.mxu0 0.0
        %2758 = vmatpush1.msra.mxu0 0.0
        %2759 = vmatprep.subr.mxu0 0.0
        %2760 = vmatpush1.msra.mxu0 0.0
        %2761 = vmatprep.subr.mxu0 0.0
        %2762 = vmatpush1.msra.mxu0 0.0
        %2763 = vmatprep.subr.mxu0 0.0
        %2764 = vmatpush1.msra.mxu0 0.0
        %2765 = vmatprep.subr.mxu0 0.0
        %2766 = vmatpush1.msra.mxu0 0.0
        %2767 = vmatprep.subr.mxu0 0.0
        %2768 = vmatpush1.msra.mxu0 0.0
        %2769 = vmatprep.subr.mxu0 0.0
        %2770 = vmatpush1.msra.mxu0 0.0
        %2771 = vmatprep.subr.mxu0 0.0
        %2772 = vmatpush1.msra.mxu0 0.0
        %2773 = vmatprep.subr.mxu0 0.0
        %2774 = vmatpush1.msra.mxu0 0.0
        %2775 = vmatprep.subr.mxu0 0.0
        %2776 = vmatpush1.msra.mxu0 0.0
        %2777 = vmatprep.subr.mxu0 0.0
        %2778 = vmatpush1.msra.mxu0 0.0
        %2779 = vmatprep.subr.mxu0 0.0
        %2780 = vmatpush1.msra.mxu0 0.0
        %2781 = vmatprep.subr.mxu0 0.0
        %2782 = vmatpush1.msra.mxu0 0.0
        %2783 = vmatprep.mubr.f32.mxu0 0.0
        %2784 = vmatmul.mubr.f32.gmra.mrb[0].mxu0 %v2717
        %v2785 = vpop.f32.mrb[0].mxu0
        %v2786 = vadd.f32 0.0, %v2785
        %v2787 = vpop.f32.mrb[0].mxu0
        %2788 = vdwg.mxu0
        %v2789 = vadd.f32 %v2703, %v2786
        %v2790 = vld [vmem:[#allocation3 + $0x4] sm:$0x1]
        %s2791 = scalar_lea.vmem %s9, 320
        %v2792 = vld [vmem:[%s2791] sm:$0xff]
        %v2793 = vld [vmem:[%s2791 + $0x8] sm:$0xff]
        %v2794 = vld [vmem:[%s2791 + $0x10] sm:$0xff]
        %v2795 = vld [vmem:[%s2791 + $0x18] sm:$0xff]
        %v2796 = vld [vmem:[%s2791 + $0x20] sm:$0xff]
        %v2797 = vld [vmem:[%s2791 + $0x28] sm:$0xff]
        %v2798 = vld [vmem:[%s2791 + $0x30] sm:$0xff]
        %v2799 = vld [vmem:[%s2791 + $0x38] sm:$0xff]
        %v2800 = vld [vmem:[%s2791 + $0x40] sm:$0xff]
        %v2801 = vld [vmem:[%s2791 + $0x48] sm:$0xff]
        %v2803 = vsel %vm2471, %v2790, 0
        %2805 = vmatprep.subr.mxu0 0.0
        %2806 = vmatpush1.msra.mxu0 %v2792
        %2807 = vmatprep.subr.mxu0 0.0
        %2808 = vmatpush1.msra.mxu0 %v2793
        %2809 = vmatprep.subr.mxu0 0.0
        %2810 = vmatpush1.msra.mxu0 %v2794
        %2811 = vmatprep.subr.mxu0 0.0
        %2812 = vmatpush1.msra.mxu0 %v2795
        %2813 = vmatprep.subr.mxu0 0.0
        %2814 = vmatpush1.msra.mxu0 %v2796
        %2815 = vmatprep.subr.mxu0 0.0
        %2816 = vmatpush1.msra.mxu0 %v2797
        %2817 = vmatprep.subr.mxu0 0.0
        %2818 = vmatpush1.msra.mxu0 %v2798
        %2819 = vmatprep.subr.mxu0 0.0
        %2820 = vmatpush1.msra.mxu0 %v2799
        %2821 = vmatprep.subr.mxu0 0.0
        %2822 = vmatpush1.msra.mxu0 %v2800
        %2823 = vmatprep.subr.mxu0 0.0
        %2824 = vmatpush1.msra.mxu0 %v2801
        %2825 = vmatprep.subr.mxu0 0.0
        %2826 = vmatpush1.msra.mxu0 0.0
        %2827 = vmatprep.subr.mxu0 0.0
        %2828 = vmatpush1.msra.mxu0 0.0
        %2829 = vmatprep.subr.mxu0 0.0
        %2830 = vmatpush1.msra.mxu0 0.0
        %2831 = vmatprep.subr.mxu0 0.0
        %2832 = vmatpush1.msra.mxu0 0.0
        %2833 = vmatprep.subr.mxu0 0.0
        %2834 = vmatpush1.msra.mxu0 0.0
        %2835 = vmatprep.subr.mxu0 0.0
        %2836 = vmatpush1.msra.mxu0 0.0
        %2837 = vmatprep.subr.mxu0 0.0
        %2838 = vmatpush1.msra.mxu0 0.0
        %2839 = vmatprep.subr.mxu0 0.0
        %2840 = vmatpush1.msra.mxu0 0.0
        %2841 = vmatprep.subr.mxu0 0.0
        %2842 = vmatpush1.msra.mxu0 0.0
        %2843 = vmatprep.subr.mxu0 0.0
        %2844 = vmatpush1.msra.mxu0 0.0
        %2845 = vmatprep.subr.mxu0 0.0
        %2846 = vmatpush1.msra.mxu0 0.0
        %2847 = vmatprep.subr.mxu0 0.0
        %2848 = vmatpush1.msra.mxu0 0.0
        %2849 = vmatprep.subr.mxu0 0.0
        %2850 = vmatpush1.msra.mxu0 0.0
        %2851 = vmatprep.subr.mxu0 0.0
        %2852 = vmatpush1.msra.mxu0 0.0
        %2853 = vmatprep.subr.mxu0 0.0
        %2854 = vmatpush1.msra.mxu0 0.0
        %2855 = vmatprep.subr.mxu0 0.0
        %2856 = vmatpush1.msra.mxu0 0.0
        %2857 = vmatprep.subr.mxu0 0.0
        %2858 = vmatpush1.msra.mxu0 0.0
        %2859 = vmatprep.subr.mxu0 0.0
        %2860 = vmatpush1.msra.mxu0 0.0
        %2861 = vmatprep.subr.mxu0 0.0
        %2862 = vmatpush1.msra.mxu0 0.0
        %2863 = vmatprep.subr.mxu0 0.0
        %2864 = vmatpush1.msra.mxu0 0.0
        %2865 = vmatprep.subr.mxu0 0.0
        %2866 = vmatpush1.msra.mxu0 0.0
        %2867 = vmatprep.subr.mxu0 0.0
        %2868 = vmatpush1.msra.mxu0 0.0
        %2869 = vmatprep.mubr.f32.mxu0 0.0
        %2870 = vmatmul.mubr.f32.gmra.mrb[0].mxu0 %v2803
        %v2871 = vpop.f32.mrb[0].mxu0
        %v2872 = vadd.f32 0.0, %v2871
        %v2873 = vpop.f32.mrb[0].mxu0
        %2874 = vdwg.mxu0
        %v2875 = vadd.f32 %v2789, %v2872
        %v2876 = vld [vmem:[%s10] sm:$0x1]
        %v2877 = vadd.f32 %v2875, %v2876
        %v2878 = vmax.f32 %v2877, 0.0
        %v2879 = vld [vmem:[%s11] sm:$0xff]
        %v2880 = vld [vmem:[%s11 + $0x8] sm:$0xff]
        %v2881 = vld [vmem:[%s11 + $0x10] sm:$0xff]
        %v2882 = vld [vmem:[%s11 + $0x18] sm:$0xff]
        %v2883 = vld [vmem:[%s11 + $0x20] sm:$0xff]
        %v2884 = vld [vmem:[%s11 + $0x28] sm:$0xff]
        %v2885 = vld [vmem:[%s11 + $0x30] sm:$0xff]
        %v2886 = vld [vmem:[%s11 + $0x38] sm:$0xff]
        %v2887 = vld [vmem:[%s11 + $0x40] sm:$0xff]
        %v2888 = vld [vmem:[%s11 + $0x48] sm:$0xff]
        %v2889 = vld [vmem:[%s11 + $0x50] sm:$0xff]
        %v2890 = vld [vmem:[%s11 + $0x58] sm:$0xff]
        %v2891 = vld [vmem:[%s11 + $0x60] sm:$0xff]
        %v2892 = vld [vmem:[%s11 + $0x68] sm:$0xff]
        %v2893 = vld [vmem:[%s11 + $0x70] sm:$0xff]
        %v2894 = vld [vmem:[%s12] sm:$0x1]
        %vm2895 = vcmask 982016
        %v2897 = vsel %vm2895, %v2878, 0
        %2899 = vmatprep.subr.mxu0 0.0
        %2900 = vmatpush1.msra.mxu0 %v2879
        %2901 = vmatprep.subr.mxu0 0.0
        %2902 = vmatpush1.msra.mxu0 %v2880
        %2903 = vmatprep.subr.mxu0 0.0
        %2904 = vmatpush1.msra.mxu0 %v2881
        %2905 = vmatprep.subr.mxu0 0.0
        %2906 = vmatpush1.msra.mxu0 %v2882
        %2907 = vmatprep.subr.mxu0 0.0
        %2908 = vmatpush1.msra.mxu0 %v2883
        %2909 = vmatprep.subr.mxu0 0.0
        %2910 = vmatpush1.msra.mxu0 %v2884
        %2911 = vmatprep.subr.mxu0 0.0
        %2912 = vmatpush1.msra.mxu0 %v2885
        %2913 = vmatprep.subr.mxu0 0.0
        %2914 = vmatpush1.msra.mxu0 %v2886
        %2915 = vmatprep.subr.mxu0 0.0
        %2916 = vmatpush1.msra.mxu0 %v2887
        %2917 = vmatprep.subr.mxu0 0.0
        %2918 = vmatpush1.msra.mxu0 %v2888
        %2919 = vmatprep.subr.mxu0 0.0
        %2920 = vmatpush1.msra.mxu0 %v2889
        %2921 = vmatprep.subr.mxu0 0.0
        %2922 = vmatpush1.msra.mxu0 %v2890
        %2923 = vmatprep.subr.mxu0 0.0
        %2924 = vmatpush1.msra.mxu0 %v2891
        %2925 = vmatprep.subr.mxu0 0.0
        %2926 = vmatpush1.msra.mxu0 %v2892
        %2927 = vmatprep.subr.mxu0 0.0
        %2928 = vmatpush1.msra.mxu0 %v2893
        %2929 = vmatprep.subr.mxu0 0.0
        %2930 = vmatpush1.msra.mxu0 0.0
        %2931 = vmatprep.subr.mxu0 0.0
        %2932 = vmatpush1.msra.mxu0 0.0
        %2933 = vmatprep.subr.mxu0 0.0
        %2934 = vmatpush1.msra.mxu0 0.0
        %2935 = vmatprep.subr.mxu0 0.0
        %2936 = vmatpush1.msra.mxu0 0.0
        %2937 = vmatprep.subr.mxu0 0.0
        %2938 = vmatpush1.msra.mxu0 0.0
        %2939 = vmatprep.subr.mxu0 0.0
        %2940 = vmatpush1.msra.mxu0 0.0
        %2941 = vmatprep.subr.mxu0 0.0
        %2942 = vmatpush1.msra.mxu0 0.0
        %2943 = vmatprep.subr.mxu0 0.0
        %2944 = vmatpush1.msra.mxu0 0.0
        %2945 = vmatprep.subr.mxu0 0.0
        %2946 = vmatpush1.msra.mxu0 0.0
        %2947 = vmatprep.subr.mxu0 0.0
        %2948 = vmatpush1.msra.mxu0 0.0
        %2949 = vmatprep.subr.mxu0 0.0
        %2950 = vmatpush1.msra.mxu0 0.0
        %2951 = vmatprep.subr.mxu0 0.0
        %2952 = vmatpush1.msra.mxu0 0.0
        %2953 = vmatprep.subr.mxu0 0.0
        %2954 = vmatpush1.msra.mxu0 0.0
        %2955 = vmatprep.subr.mxu0 0.0
        %2956 = vmatpush1.msra.mxu0 0.0
        %2957 = vmatprep.subr.mxu0 0.0
        %2958 = vmatpush1.msra.mxu0 0.0
        %2959 = vmatprep.subr.mxu0 0.0
        %2960 = vmatpush1.msra.mxu0 0.0
        %2961 = vmatprep.subr.mxu0 0.0
        %2962 = vmatpush1.msra.mxu0 0.0
        %2963 = vmatprep.mubr.f32.mxu0 0.0
        %2964 = vmatmul.mubr.f32.gmra.mrb[0].mxu0 %v2897
        %v2965 = vpop.f32.mrb[0].mxu0
        %v2966 = vadd.f32 %v2894, %v2965
        %v2967 = vpop.f32.mrb[0].mxu0
        %2968 = vdwg.mxu0
        %v2969 = vmax.f32 %v2966, 0.0
        %v2970 = vld [vmem:[%s13] sm:$0xff]
        %v2971 = vld [vmem:[%s13 + $0x8] sm:$0xff]
        %v2972 = vld [vmem:[%s13 + $0x10] sm:$0xff]
        %v2973 = vld [vmem:[%s13 + $0x18] sm:$0xff]
        %v2974 = vld [vmem:[%s13 + $0x20] sm:$0xff]
        %v2975 = vld [vmem:[%s13 + $0x28] sm:$0xff]
        %v2976 = vld [vmem:[%s13 + $0x30] sm:$0xff]
        %v2977 = vld [vmem:[%s13 + $0x38] sm:$0xff]
        %v2978 = vld [vmem:[%s13 + $0x40] sm:$0xff]
        %v2979 = vld [vmem:[%s13 + $0x48] sm:$0xff]
        %v2980 = vld [vmem:[%s13 + $0x50] sm:$0xf]
        %v2981 = vld [vmem:[%s14] sm:$0x1]
        %v2983 = vsel %vm1499, %v2969, 0
        %v2986 = vsel %vm1123, %v2980, 0
        %2988 = vmatprep.subr.mxu0 0.0
        %2989 = vmatpush1.msra.mxu0 %v2970
        %2990 = vmatprep.subr.mxu0 0.0
        %2991 = vmatpush1.msra.mxu0 %v2971
        %2992 = vmatprep.subr.mxu0 0.0
        %2993 = vmatpush1.msra.mxu0 %v2972
        %2994 = vmatprep.subr.mxu0 0.0
        %2995 = vmatpush1.msra.mxu0 %v2973
        %2996 = vmatprep.subr.mxu0 0.0
        %2997 = vmatpush1.msra.mxu0 %v2974
        %2998 = vmatprep.subr.mxu0 0.0
        %2999 = vmatpush1.msra.mxu0 %v2975
        %3000 = vmatprep.subr.mxu0 0.0
        %3001 = vmatpush1.msra.mxu0 %v2976
        %3002 = vmatprep.subr.mxu0 0.0
        %3003 = vmatpush1.msra.mxu0 %v2977
        %3004 = vmatprep.subr.mxu0 0.0
        %3005 = vmatpush1.msra.mxu0 %v2978
        %3006 = vmatprep.subr.mxu0 0.0
        %3007 = vmatpush1.msra.mxu0 %v2979
        %3008 = vmatprep.subr.mxu0 0.0
        %3009 = vmatpush1.msra.mxu0 %v2986
        %3010 = vmatprep.subr.mxu0 0.0
        %3011 = vmatpush1.msra.mxu0 0.0
        %3012 = vmatprep.subr.mxu0 0.0
        %3013 = vmatpush1.msra.mxu0 0.0
        %3014 = vmatprep.subr.mxu0 0.0
        %3015 = vmatpush1.msra.mxu0 0.0
        %3016 = vmatprep.subr.mxu0 0.0
        %3017 = vmatpush1.msra.mxu0 0.0
        %3018 = vmatprep.subr.mxu0 0.0
        %3019 = vmatpush1.msra.mxu0 0.0
        %3020 = vmatprep.subr.mxu0 0.0
        %3021 = vmatpush1.msra.mxu0 0.0
        %3022 = vmatprep.subr.mxu0 0.0
        %3023 = vmatpush1.msra.mxu0 0.0
        %3024 = vmatprep.subr.mxu0 0.0
        %3025 = vmatpush1.msra.mxu0 0.0
        %3026 = vmatprep.subr.mxu0 0.0
        %3027 = vmatpush1.msra.mxu0 0.0
        %3028 = vmatprep.subr.mxu0 0.0
        %3029 = vmatpush1.msra.mxu0 0.0
        %3030 = vmatprep.subr.mxu0 0.0
        %3031 = vmatpush1.msra.mxu0 0.0
        %3032 = vmatprep.subr.mxu0 0.0
        %3033 = vmatpush1.msra.mxu0 0.0
        %3034 = vmatprep.subr.mxu0 0.0
        %3035 = vmatpush1.msra.mxu0 0.0
        %3036 = vmatprep.subr.mxu0 0.0
        %3037 = vmatpush1.msra.mxu0 0.0
        %3038 = vmatprep.subr.mxu0 0.0
        %3039 = vmatpush1.msra.mxu0 0.0
        %3040 = vmatprep.subr.mxu0 0.0
        %3041 = vmatpush1.msra.mxu0 0.0
        %3042 = vmatprep.subr.mxu0 0.0
        %3043 = vmatpush1.msra.mxu0 0.0
        %3044 = vmatprep.subr.mxu0 0.0
        %3045 = vmatpush1.msra.mxu0 0.0
        %3046 = vmatprep.subr.mxu0 0.0
        %3047 = vmatpush1.msra.mxu0 0.0
        %3048 = vmatprep.subr.mxu0 0.0
        %3049 = vmatpush1.msra.mxu0 0.0
        %3050 = vmatprep.subr.mxu0 0.0
        %3051 = vmatpush1.msra.mxu0 0.0
        %3052 = vmatprep.mubr.f32.mxu0 0.0
        %3053 = vmatmul.mubr.f32.gmra.mrb[0].mxu0 %v2983
        %v3054 = vpop.f32.mrb[0].mxu0
        %v3055 = vadd.f32 %v2981, %v3054
        %v3056 = vpop.f32.mrb[0].mxu0
        %3057 = vdwg.mxu0
        %vm3058 = vcmask 73728
        %v3059 = vsel %vm3058, %v3055, -inf
        %3060 = vmax.xlane.f32.xlu0 %v3059
        %v3061 = vpop.xlane.xlu0 %3060
        %v3062 = vsub.f32 %v3055, %v3061
        %v3063 = vmul.f32 %v3062, 1.442695
        %v3064 = vpow.pop %v3063
        %v3065 = vsel %vm3058, %v3064, 0.0
        %3066 = vadd.xlane.f32.xlu0 %v3065
        %v3067 = vpop.xlane.xlu0 %3066
        %v3068 = vlog2.pop %v3067
        %v3069 = vmul.f32 %v3068, 0.6931472
        %v3070 = vsub.f32 %v3062, %v3069
        %3071 = vst.msk [vmem:[%s486] sm:$0x1] %vm3058, %v3070
        %s3072 = sand.u32 %s357, 1
        %s3073 = scalar_lea.sflag [#allocation5], %s3072
        %s3074 = sand.u32 %s357, 1
        %s3075 = scalar_lea.vmem [#allocation4], %s3074
        // Predicated region
        $region81: #{lenet_forward.1} parent=79 // pred_check
          %p3076 = pneg %p367
        $region82: #{lenet_forward.1} parent=79 // pred_check_branch
          %3078 = sbr.rel (%p3076) target = $region84
        $region83: #{lenet_forward.1} parent=79 // pred_region
          %s3080 = ssub.s32 16, 16
          %3081 = vsyncadd %s3073, %s3080
          %s3082 = smul.addr %s29, 16
          %s3083 = scalar_lea.hbm %s15, %s3082
          %s3085 = sshll.u32 %s3075, 4
          %s3086 = int_to_ptr.vmem [resolvable:$true] %s3085
          %3088 = dma.vmem_to_hbm [thread:$0]  %s3086, 16, %s3083, %s3073
        $region84: #{lenet_forward.1} parent=79 // pred_fallthru
          _
      $region80: #{lenet_forward.1} parent=5 // pred_fallthru
        _
      %p3089 = scmp.le.s32.totalorder 2, %s24
      // Predicated region
      $region85: #{lenet_forward.1} parent=5 // pred_check
        %p3090 = pneg %p3089
      $region86: #{lenet_forward.1} parent=5 // pred_check_branch
        %3092 = sbr.rel (%p3090) target = $region88
      $region87: #{lenet_forward.1} parent=5 // pred_region
        %s3093 = ssub.s32 %s24, 2
        // Predicated region
        $region89: #{lenet_forward.1} parent=87 // pred_check
          %p3094 = pneg %p373
        $region90: #{lenet_forward.1} parent=87 // pred_check_branch
          %3096 = sbr.rel (%p3094) target = $region92
        $region91: #{lenet_forward.1} parent=87 // pred_region
          %s3097 = sand.u32 %s358, 1
          %s3098 = scalar_lea.sflag [#allocation5], %s3097
          %s3099 = sand.u32 %s358, 1
          %s3100 = scalar_lea.vmem [#allocation4], %s3099
          %3101 = dma.done %s3098, 16
        $region92: #{lenet_forward.1} parent=87 // pred_fallthru
          _
      $region88: #{lenet_forward.1} parent=5 // pred_fallthru
        _
    $region6: #{lenet_forward.1} parent=1 // loop_footer
      %s28 = sadd.s32 1, %s24
    $region7: #{lenet_forward.1} parent=1 // loop_footer_branch
      %23 = sbr.rel target = $region3
    $region8: #{lenet_forward.1} parent=1 // loop_exit
      _
    %3102 = vsyncpa [#allocation5], 1
    %s3103 = scalar_lea.sflag [#allocation5], 1
    %3104 = vsyncpa %s3103, 1

</llo_original>
